<compile_context>
chip_gen: v7x
topology: tpu7x:2x2x1
jax: 0.10.0
libtpu: 0.0.40
codegen_flags: <defaults>
</compile_context>

<pallas_src>
import functools

import jax
import jax.numpy as jnp
from jax.experimental import pallas as pl
from jax.experimental.pallas import tpu as pltpu


def _round_up(x, m):
    return (x + m - 1) // m * m


# ---------------------------------------------------------------------------
# Fused implicit-GEMM conv3x3 + BN + (residual) + (ReLU) kernel
# ---------------------------------------------------------------------------
def _conv_bn_kernel(relu, has_residual, *refs):
    if has_residual:
        x_ref, w_ref, s_ref, b_ref, r_ref, rs_ref, rb_ref, o_ref = refs
    else:
        x_ref, w_ref, s_ref, b_ref, o_ref = refs

    # Single MXU GEMM over the folded (9*Cin) contraction dimension.
    acc = jnp.dot(x_ref[...], w_ref[...], preferred_element_type=jnp.float32)
    # Fused BatchNorm (inference, folded to scale/bias).
    acc = acc * s_ref[...] + b_ref[...]
    if has_residual:
        # Fused (BN-scaled, zero-channel-padded) shortcut add.
        acc = acc + r_ref[...].astype(jnp.float32) * rs_ref[...] + rb_ref[...]
    if relu:
        acc = jnp.maximum(acc, 0.0)
    o_ref[...] = acc.astype(o_ref.dtype)


def conv3x3_bn(x, w, bn_scale, bn_bias, *, stride=1, relu=True,
               residual=None, res_scale=None, res_bias=None):
    """3x3 conv (pad=1, no bias) + BN + optional residual + optional ReLU.

    x: (N,H,W,Cin) bf16/f32, w: (3,3,Cin,Cout).  Returns (N,Hout,Wout,Cout) bf16.
    """
    N, H, W, Cin = x.shape
    Cout = w.shape[-1]
    Hout = (H - 1) // stride + 1
    Wout = (W - 1) // stride + 1
    M = N * Hout * Wout
    K = 9 * Cin
    Kp = _round_up(K, 16)          # bf16 sublane packing for the weight
    Cp = _round_up(max(Cout, 128), 128)  # lane-dense output / epilogue

    # im2col tap extraction, concatenated along channels -> (M, 9*Cin)  (XLA glue)
    xp = jnp.pad(x, ((0, 0), (1, 1), (1, 1), (0, 0)))
    taps = []
    for dy in range(3):
        for dx in range(3):
            taps.append(xp[:, dy:dy + (Hout - 1) * stride + 1:stride,
                             dx:dx + (Wout - 1) * stride + 1:stride, :])
    x_col = jnp.concatenate(taps, axis=-1).reshape(M, K).astype(jnp.bfloat16)
    if Kp != K:
        x_col = jnp.pad(x_col, ((0, 0), (0, Kp - K)))

    # Weight folded to (9*Cin, Cout), padded to (Kp, Cp), bf16 for the MXU.
    w2 = jnp.pad(w.reshape(K, Cout).astype(jnp.bfloat16),
                 ((0, Kp - K), (0, Cp - Cout)))
    s = jnp.pad(bn_scale.reshape(1, Cout).astype(jnp.float32),
                ((0, 0), (0, Cp - Cout)))
    b = jnp.pad(bn_bias.reshape(1, Cout).astype(jnp.float32),
                ((0, 0), (0, Cp - Cout)))

    # Tile over output rows of the implicit GEMM.
    TM = min(128, _round_up(M, 8))
    Mp = _round_up(M, TM)
    if Mp != M:
        x_col = jnp.pad(x_col, ((0, Mp - M), (0, 0)))

    has_residual = residual is not None
    operands = [x_col, w2, s, b]
    in_specs = [
        pl.BlockSpec((TM, Kp), lambda i: (i, 0)),    # patches
        pl.BlockSpec((Kp, Cp), lambda i: (0, 0)),    # folded weights
        pl.BlockSpec((1, Cp), lambda i: (0, 0)),     # bn scale
        pl.BlockSpec((1, Cp), lambda i: (0, 0)),     # bn bias
    ]
    if has_residual:
        Cres = residual.shape[-1]
        r = jnp.pad(residual.reshape(M, Cres).astype(jnp.bfloat16),
                    ((0, Mp - M), (0, Cp - Cres)))
        rs = jnp.pad(res_scale.reshape(1, Cres).astype(jnp.float32),
                     ((0, 0), (0, Cp - Cres)))
        rb = jnp.pad(res_bias.reshape(1, Cres).astype(jnp.float32),
                     ((0, 0), (0, Cp - Cres)))
        operands += [r, rs, rb]
        in_specs += [
            pl.BlockSpec((TM, Cp), lambda i: (i, 0)),  # residual
            pl.BlockSpec((1, Cp), lambda i: (0, 0)),   # residual scale
            pl.BlockSpec((1, Cp), lambda i: (0, 0)),   # residual bias
        ]

    out = pl.pallas_call(
        functools.partial(_conv_bn_kernel, relu, has_residual),
        out_shape=jax.ShapeDtypeStruct((Mp, Cp), jnp.bfloat16),
        grid_spec=pltpu.PrefetchScalarGridSpec(
            num_scalar_prefetch=0,
            grid=(Mp // TM,),
            in_specs=in_specs,
            out_specs=pl.BlockSpec((TM, Cp), lambda i: (i, 0)),
        ),
        compiler_params=pltpu.CompilerParams(dimension_semantics=("parallel",)),
    )(*operands)
    return out[:M, :Cout].reshape(N, Hout, Wout, Cout)


# ---------------------------------------------------------------------------
# Fused global-average-pool + Linear kernel (class dim padded to 128 lanes)
# ---------------------------------------------------------------------------
def _pool_fc_kernel(x_ref, w_ref, b_ref, o_ref):
    pooled = jnp.mean(x_ref[...].astype(jnp.float32), axis=1)   # (N, C)
    o_ref[...] = (jnp.dot(pooled, w_ref[...], preferred_element_type=jnp.float32)
                  + b_ref[...]).astype(o_ref.dtype)


def avgpool_fc(x, w, b):
    N, H, W, C = x.shape
    num_classes = w.shape[-1]
    Np = _round_up(num_classes, 128)
    wp = jnp.pad(w.astype(jnp.float32), ((0, 0), (0, Np - num_classes)))
    bp = jnp.pad(b.reshape(1, num_classes).astype(jnp.float32),
                 ((0, 0), (0, Np - num_classes)))
    xr = x.reshape(N, H * W, C)
    out = pl.pallas_call(
        _pool_fc_kernel,
        out_shape=jax.ShapeDtypeStruct((N, Np), jnp.float32),
        grid=(1,),
        in_specs=[pl.BlockSpec((N, H * W, C), lambda i: (0, 0, 0)),
                  pl.BlockSpec((C, Np), lambda i: (0, 0)),
                  pl.BlockSpec((1, Np), lambda i: (0, 0))],
        out_specs=pl.BlockSpec((N, Np), lambda i: (0, 0)),
    )(xr, wp, bp)
    return out[:, :num_classes]


# ---------------------------------------------------------------------------
# Model glue (parameters + block / network structure)
# ---------------------------------------------------------------------------
def _bn_fold(c, eps=1e-5):
    # Inference-mode BN with the module's initialized statistics
    # (running_mean=0, running_var=1, gamma=1, beta=0), folded to scale/bias.
    gamma = jnp.ones((c,), jnp.float32)
    beta = jnp.zeros((c,), jnp.float32)
    mean = jnp.zeros((c,), jnp.float32)
    var = jnp.ones((c,), jnp.float32)
    scale = gamma / jnp.sqrt(var + eps)
    bias = beta - mean * scale
    return scale, bias


def init_params(key, layers=(1, 1, 1), num_classes=10, width=16):
    keys = iter(jax.random.split(key, 64))

    def conv_w(cin, cout):
        std = (2.0 / (cout * 9)) ** 0.5  # kaiming_normal, fan_out, relu
        return std * jax.random.normal(next(keys), (3, 3, cin, cout), jnp.float32)

    params = {}
    params['conv1_w'] = conv_w(3, width)
    params['bn1_s'], params['bn1_b'] = _bn_fold(width)

    inplanes = width

    def make_layer(planes, blocks, stride):
        nonlocal inplanes
        blist = []
        for bi in range(blocks):
            st = stride if bi == 0 else 1
            p = {'stride': st}
            p['c1_w'] = conv_w(inplanes, planes)
            p['bn1_s'], p['bn1_b'] = _bn_fold(planes)
            p['c2_w'] = conv_w(planes, planes)
            p['bn2_s'], p['bn2_b'] = _bn_fold(planes)
            if bi == 0 and stride != 1:
                # downsample = AvgPool2d(1, stride) + BatchNorm2d(inplanes)
                p['ds_s'], p['ds_b'] = _bn_fold(inplanes)
            else:
                p['ds_s'], p['ds_b'] = None, None
            inplanes = planes
            blist.append(p)
        return blist

    params['layer1'] = make_layer(width, layers[0], 1)
    params['layer2'] = make_layer(width * 2, layers[1], 2)
    params['layer3'] = make_layer(width * 4, layers[2], 2)

    fan_in = width * 4
    bound = 1.0 / (fan_in ** 0.5)
    params['fc_w'] = jax.random.uniform(next(keys), (fan_in, num_classes),
                                        jnp.float32, -bound, bound)
    params['fc_b'] = jax.random.uniform(next(keys), (num_classes,),
                                        jnp.float32, -bound, bound)
    return params


def basic_block(x, p):
    stride = p['stride']
    out = conv3x3_bn(x, p['c1_w'], p['bn1_s'], p['bn1_b'],
                     stride=stride, relu=True)
    if p['ds_s'] is not None:
        # AvgPool2d(kernel=1, stride=stride) == strided subsampling
        res = x[:, ::stride, ::stride, :]
        rs, rb = p['ds_s'], p['ds_b']
    else:
        res = x
        cin = x.shape[-1]
        rs = jnp.ones((cin,), jnp.float32)
        rb = jnp.zeros((cin,), jnp.float32)
    # conv2 + bn2 + residual-add + relu, all fused in one kernel call
    out = conv3x3_bn(out, p['c2_w'], p['bn2_s'], p['bn2_b'],
                     stride=1, relu=True,
                     residual=res, res_scale=rs, res_bias=rb)
    return out


def resnet_forward(params, x_nchw):
    # NCHW -> NHWC, bf16 activations between layers (matmul operands); all
    # accumulation / BN / residual math inside the kernels is f32.
    x = jnp.transpose(x_nchw, (0, 2, 3, 1)).astype(jnp.bfloat16)
    x = conv3x3_bn(x, params['conv1_w'], params['bn1_s'], params['bn1_b'],
                   stride=1, relu=True)
    for lp in params['layer1']:
        x = basic_block(x, lp)
    for lp in params['layer2']:
        x = basic_block(x, lp)
    for lp in params['layer3']:
        x = basic_block(x, lp)
    return avgpool_fc(x, params['fc_w'], params['fc_b'])


if __name__ == "__main__":
    key = jax.random.PRNGKey(0)
    pkey, xkey = jax.random.split(key)
    params = init_params(pkey, layers=(1, 1, 1), num_classes=10, width=16)
    x = jax.random.normal(xkey, (2, 3, 16, 16), jnp.float32)  # PyTorch NCHW input

    fwd = jax.jit(functools.partial(resnet_forward, params))
    out = fwd(x)
    jax.block_until_ready(out)
    assert out.shape == (2, 10), out.shape
    print("KERNEL_OK")
</pallas_src>

<mosaic_0001>
module attributes {stable_mosaic.version = 11 : i64} {
  func.func @_conv_bn_kernel(%arg0: i32, %arg1: memref<128x32xbf16, #tpu.memory_space<vmem>>, %arg2: memref<32x128xbf16, #tpu.memory_space<vmem>>, %arg3: memref<1x128xf32, #tpu.memory_space<vmem>>, %arg4: memref<1x128xf32, #tpu.memory_space<vmem>>, %arg5: memref<128x128xbf16, #tpu.memory_space<vmem>>) attributes {dimension_semantics = [#tpu.dimension_semantics<parallel>], iteration_bounds = array<i64: 4>, scalar_prefetch = 0 : i64, scratch_operands = 0 : i64, tpu.core_type = #tpu.core_type<tc>, window_params = [{transform_indices = @transform_0, window_bounds = array<i64: 128, 32>}, {pipeline_mode = #tpu.pipeline_mode<synchronous>, transform_indices = @transform_1, window_bounds = array<i64: 32, 128>}, {pipeline_mode = #tpu.pipeline_mode<synchronous>, transform_indices = @transform_2, window_bounds = array<i64: 1, 128>}, {pipeline_mode = #tpu.pipeline_mode<synchronous>, transform_indices = @transform_3, window_bounds = array<i64: 1, 128>}, {transform_indices = @transform_4, window_bounds = array<i64: 128, 128>}]} {
    %c0 = arith.constant 0 : index
    %c0_0 = arith.constant 0 : index
    %0 = vector.load %arg1[%c0, %c0_0] : memref<128x32xbf16, #tpu.memory_space<vmem>>, vector<128x32xbf16>
    %c0_1 = arith.constant 0 : index
    %c0_2 = arith.constant 0 : index
    %1 = vector.load %arg2[%c0_1, %c0_2] : memref<32x128xbf16, #tpu.memory_space<vmem>>, vector<32x128xbf16>
    %cst = arith.constant dense<0.000000e+00> : vector<128x128xf32>
    %2 = tpu.matmul %0, %1, %cst {dimension_numbers = #tpu.dot_dimension_numbers<[1], [0], [0], [1], [0, 0, 1, 1], [], []>} : vector<128x32xbf16>, vector<32x128xbf16>, vector<128x128xf32> -> vector<128x128xf32>
    %c0_3 = arith.constant 0 : index
    %c0_4 = arith.constant 0 : index
    %3 = vector.load %arg3[%c0_3, %c0_4] : memref<1x128xf32, #tpu.memory_space<vmem>>, vector<1x128xf32>
    %4 = vector.broadcast %3 : vector<1x128xf32> to vector<128x128xf32>
    %5 = arith.mulf %2, %4 : vector<128x128xf32>
    %c0_5 = arith.constant 0 : index
    %c0_6 = arith.constant 0 : index
    %6 = vector.load %arg4[%c0_5, %c0_6] : memref<1x128xf32, #tpu.memory_space<vmem>>, vector<1x128xf32>
    %7 = vector.broadcast %6 : vector<1x128xf32> to vector<128x128xf32>
    %8 = arith.addf %5, %7 : vector<128x128xf32>
    %cst_7 = arith.constant 0.000000e+00 : f32
    %9 = vector.broadcast %cst_7 : f32 to vector<128x128xf32>
    %10 = arith.maximumf %8, %9 : vector<128x128xf32>
    %11 = arith.truncf %10 : vector<128x128xf32> to vector<128x128xbf16>
    %c0_8 = arith.constant 0 : index
    %c0_9 = arith.constant 0 : index
    %12 = vector.load %arg5[%c0_8, %c0_9] : memref<128x128xbf16, #tpu.memory_space<vmem>>, vector<128x128xbf16>
    tpu.vector_store %arg5[%c0_8, %c0_9], %11 {strides = array<i32>} : memref<128x128xbf16, #tpu.memory_space<vmem>>, vector<128x128xbf16>,
    return
  }
  func.func @transform_0(%arg0: i32) -> (i32, i32) {
    %c0_i32 = arith.constant 0 : i32
    %c0_i32_0 = arith.constant 0 : i32
    return %arg0, %c0_i32 : i32, i32
  }
  func.func @transform_1(%arg0: i32) -> (i32, i32) {
    %c0_i32 = arith.constant 0 : i32
    %c0_i32_0 = arith.constant 0 : i32
    %c0_i32_1 = arith.constant 0 : i32
    return %c0_i32, %c0_i32_0 : i32, i32
  }
  func.func @transform_2(%arg0: i32) -> (i32, i32) {
    %c0_i32 = arith.constant 0 : i32
    %c0_i32_0 = arith.constant 0 : i32
    %c0_i32_1 = arith.constant 0 : i32
    return %c0_i32, %c0_i32_0 : i32, i32
  }
  func.func @transform_3(%arg0: i32) -> (i32, i32) {
    %c0_i32 = arith.constant 0 : i32
    %c0_i32_0 = arith.constant 0 : i32
    %c0_i32_1 = arith.constant 0 : i32
    return %c0_i32, %c0_i32_0 : i32, i32
  }
  func.func @transform_4(%arg0: i32) -> (i32, i32) {
    %c0_i32 = arith.constant 0 : i32
    %c0_i32_0 = arith.constant 0 : i32
    return %arg0, %c0_i32 : i32, i32
  }
}

module attributes {stable_mosaic.version = 11 : i64} {
  func.func @_conv_bn_kernel(%arg0: i32, %arg1: memref<128x144xbf16, #tpu.memory_space<vmem>>, %arg2: memref<144x128xbf16, #tpu.memory_space<vmem>>, %arg3: memref<1x128xf32, #tpu.memory_space<vmem>>, %arg4: memref<1x128xf32, #tpu.memory_space<vmem>>, %arg5: memref<128x128xbf16, #tpu.memory_space<vmem>>) attributes {dimension_semantics = [#tpu.dimension_semantics<parallel>], iteration_bounds = array<i64: 4>, scalar_prefetch = 0 : i64, scratch_operands = 0 : i64, tpu.core_type = #tpu.core_type<tc>, window_params = [{transform_indices = @transform_0, window_bounds = array<i64: 128, 144>}, {pipeline_mode = #tpu.pipeline_mode<synchronous>, transform_indices = @transform_1, window_bounds = array<i64: 144, 128>}, {pipeline_mode = #tpu.pipeline_mode<synchronous>, transform_indices = @transform_2, window_bounds = array<i64: 1, 128>}, {pipeline_mode = #tpu.pipeline_mode<synchronous>, transform_indices = @transform_3, window_bounds = array<i64: 1, 128>}, {transform_indices = @transform_4, window_bounds = array<i64: 128, 128>}]} {
    %c0 = arith.constant 0 : index
    %c0_0 = arith.constant 0 : index
    %0 = vector.load %arg1[%c0, %c0_0] : memref<128x144xbf16, #tpu.memory_space<vmem>>, vector<128x144xbf16>
    %c0_1 = arith.constant 0 : index
    %c0_2 = arith.constant 0 : index
    %1 = vector.load %arg2[%c0_1, %c0_2] : memref<144x128xbf16, #tpu.memory_space<vmem>>, vector<144x128xbf16>
    %cst = arith.constant dense<0.000000e+00> : vector<128x128xf32>
    %2 = tpu.matmul %0, %1, %cst {dimension_numbers = #tpu.dot_dimension_numbers<[1], [0], [0], [1], [0, 0, 1, 1], [], []>} : vector<128x144xbf16>, vector<144x128xbf16>, vector<128x128xf32> -> vector<128x128xf32>
    %c0_3 = arith.constant 0 : index
    %c0_4 = arith.constant 0 : index
    %3 = vector.load %arg3[%c0_3, %c0_4] : memref<1x128xf32, #tpu.memory_space<vmem>>, vector<1x128xf32>
    %4 = vector.broadcast %3 : vector<1x128xf32> to vector<128x128xf32>
    %5 = arith.mulf %2, %4 : vector<128x128xf32>
    %c0_5 = arith.constant 0 : index
    %c0_6 = arith.constant 0 : index
    %6 = vector.load %arg4[%c0_5, %c0_6] : memref<1x128xf32, #tpu.memory_space<vmem>>, vector<1x128xf32>
    %7 = vector.broadcast %6 : vector<1x128xf32> to vector<128x128xf32>
    %8 = arith.addf %5, %7 : vector<128x128xf32>
    %cst_7 = arith.constant 0.000000e+00 : f32
    %9 = vector.broadcast %cst_7 : f32 to vector<128x128xf32>
    %10 = arith.maximumf %8, %9 : vector<128x128xf32>
    %11 = arith.truncf %10 : vector<128x128xf32> to vector<128x128xbf16>
    %c0_8 = arith.constant 0 : index
    %c0_9 = arith.constant 0 : index
    %12 = vector.load %arg5[%c0_8, %c0_9] : memref<128x128xbf16, #tpu.memory_space<vmem>>, vector<128x128xbf16>
    tpu.vector_store %arg5[%c0_8, %c0_9], %11 {strides = array<i32>} : memref<128x128xbf16, #tpu.memory_space<vmem>>, vector<128x128xbf16>,
    return
  }
  func.func @transform_0(%arg0: i32) -> (i32, i32) {
    %c0_i32 = arith.constant 0 : i32
    %c0_i32_0 = arith.constant 0 : i32
    return %arg0, %c0_i32 : i32, i32
  }
  func.func @transform_1(%arg0: i32) -> (i32, i32) {
    %c0_i32 = arith.constant 0 : i32
    %c0_i32_0 = arith.constant 0 : i32
    %c0_i32_1 = arith.constant 0 : i32
    return %c0_i32, %c0_i32_0 : i32, i32
  }
  func.func @transform_2(%arg0: i32) -> (i32, i32) {
    %c0_i32 = arith.constant 0 : i32
    %c0_i32_0 = arith.constant 0 : i32
    %c0_i32_1 = arith.constant 0 : i32
    return %c0_i32, %c0_i32_0 : i32, i32
  }
  func.func @transform_3(%arg0: i32) -> (i32, i32) {
    %c0_i32 = arith.constant 0 : i32
    %c0_i32_0 = arith.constant 0 : i32
    %c0_i32_1 = arith.constant 0 : i32
    return %c0_i32, %c0_i32_0 : i32, i32
  }
  func.func @transform_4(%arg0: i32) -> (i32, i32) {
    %c0_i32 = arith.constant 0 : i32
    %c0_i32_0 = arith.constant 0 : i32
    return %arg0, %c0_i32 : i32, i32
  }
}

module attributes {stable_mosaic.version = 11 : i64} {
  func.func @_conv_bn_kernel(%arg0: i32, %arg1: memref<128x144xbf16, #tpu.memory_space<vmem>>, %arg2: memref<144x128xbf16, #tpu.memory_space<vmem>>, %arg3: memref<1x128xf32, #tpu.memory_space<vmem>>, %arg4: memref<1x128xf32, #tpu.memory_space<vmem>>, %arg5: memref<128x128xbf16, #tpu.memory_space<vmem>>, %arg6: memref<1x128xf32, #tpu.memory_space<vmem>>, %arg7: memref<1x128xf32, #tpu.memory_space<vmem>>, %arg8: memref<128x128xbf16, #tpu.memory_space<vmem>>) attributes {dimension_semantics = [#tpu.dimension_semantics<parallel>], iteration_bounds = array<i64: 4>, scalar_prefetch = 0 : i64, scratch_operands = 0 : i64, tpu.core_type = #tpu.core_type<tc>, window_params = [{transform_indices = @transform_0, window_bounds = array<i64: 128, 144>}, {pipeline_mode = #tpu.pipeline_mode<synchronous>, transform_indices = @transform_1, window_bounds = array<i64: 144, 128>}, {pipeline_mode = #tpu.pipeline_mode<synchronous>, transform_indices = @transform_2, window_bounds = array<i64: 1, 128>}, {pipeline_mode = #tpu.pipeline_mode<synchronous>, transform_indices = @transform_3, window_bounds = array<i64: 1, 128>}, {transform_indices = @transform_4, window_bounds = array<i64: 128, 128>}, {pipeline_mode = #tpu.pipeline_mode<synchronous>, transform_indices = @transform_5, window_bounds = array<i64: 1, 128>}, {pipeline_mode = #tpu.pipeline_mode<synchronous>, transform_indices = @transform_6, window_bounds = array<i64: 1, 128>}, {transform_indices = @transform_7, window_bounds = array<i64: 128, 128>}]} {
    %c0 = arith.constant 0 : index
    %c0_0 = arith.constant 0 : index
    %0 = vector.load %arg1[%c0, %c0_0] : memref<128x144xbf16, #tpu.memory_space<vmem>>, vector<128x144xbf16>
    %c0_1 = arith.constant 0 : index
    %c0_2 = arith.constant 0 : index
    %1 = vector.load %arg2[%c0_1, %c0_2] : memref<144x128xbf16, #tpu.memory_space<vmem>>, vector<144x128xbf16>
    %cst = arith.constant dense<0.000000e+00> : vector<128x128xf32>
    %2 = tpu.matmul %0, %1, %cst {dimension_numbers = #tpu.dot_dimension_numbers<[1], [0], [0], [1], [0, 0, 1, 1], [], []>} : vector<128x144xbf16>, vector<144x128xbf16>, vector<128x128xf32> -> vector<128x128xf32>
    %c0_3 = arith.constant 0 : index
    %c0_4 = arith.constant 0 : index
    %3 = vector.load %arg3[%c0_3, %c0_4] : memref<1x128xf32, #tpu.memory_space<vmem>>, vector<1x128xf32>
    %4 = vector.broadcast %3 : vector<1x128xf32> to vector<128x128xf32>
    %5 = arith.mulf %2, %4 : vector<128x128xf32>
    %c0_5 = arith.constant 0 : index
    %c0_6 = arith.constant 0 : index
    %6 = vector.load %arg4[%c0_5, %c0_6] : memref<1x128xf32, #tpu.memory_space<vmem>>, vector<1x128xf32>
    %7 = vector.broadcast %6 : vector<1x128xf32> to vector<128x128xf32>
    %8 = arith.addf %5, %7 : vector<128x128xf32>
    %c0_7 = arith.constant 0 : index
    %c0_8 = arith.constant 0 : index
    %9 = vector.load %arg5[%c0_7, %c0_8] : memref<128x128xbf16, #tpu.memory_space<vmem>>, vector<128x128xbf16>
    %10 = arith.extf %9 : vector<128x128xbf16> to vector<128x128xf32>
    %c0_9 = arith.constant 0 : index
    %c0_10 = arith.constant 0 : index
    %11 = vector.load %arg6[%c0_9, %c0_10] : memref<1x128xf32, #tpu.memory_space<vmem>>, vector<1x128xf32>
    %12 = vector.broadcast %11 : vector<1x128xf32> to vector<128x128xf32>
    %13 = arith.mulf %10, %12 : vector<128x128xf32>
    %14 = arith.addf %8, %13 : vector<128x128xf32>
    %c0_11 = arith.constant 0 : index
    %c0_12 = arith.constant 0 : index
    %15 = vector.load %arg7[%c0_11, %c0_12] : memref<1x128xf32, #tpu.memory_space<vmem>>, vector<1x128xf32>
    %16 = vector.broadcast %15 : vector<1x128xf32> to vector<128x128xf32>
    %17 = arith.addf %14, %16 : vector<128x128xf32>
    %cst_13 = arith.constant 0.000000e+00 : f32
    %18 = vector.broadcast %cst_13 : f32 to vector<128x128xf32>
    %19 = arith.maximumf %17, %18 : vector<128x128xf32>
    %20 = arith.truncf %19 : vector<128x128xf32> to vector<128x128xbf16>
    %c0_14 = arith.constant 0 : index
    %c0_15 = arith.constant 0 : index
    %21 = vector.load %arg8[%c0_14, %c0_15] : memref<128x128xbf16, #tpu.memory_space<vmem>>, vector<128x128xbf16>
    tpu.vector_store %arg8[%c0_14, %c0_15], %20 {strides = array<i32>} : memref<128x128xbf16, #tpu.memory_space<vmem>>, vector<128x128xbf16>,
    return
  }
  func.func @transform_0(%arg0: i32) -> (i32, i32) {
    %c0_i32 = arith.constant 0 : i32
    %c0_i32_0 = arith.constant 0 : i32
    return %arg0, %c0_i32 : i32, i32
  }
  func.func @transform_1(%arg0: i32) -> (i32, i32) {
    %c0_i32 = arith.constant 0 : i32
    %c0_i32_0 = arith.constant 0 : i32
    %c0_i32_1 = arith.constant 0 : i32
    return %c0_i32, %c0_i32_0 : i32, i32
  }
  func.func @transform_2(%arg0: i32) -> (i32, i32) {
    %c0_i32 = arith.constant 0 : i32
    %c0_i32_0 = arith.constant 0 : i32
    %c0_i32_1 = arith.constant 0 : i32
    return %c0_i32, %c0_i32_0 : i32, i32
  }
  func.func @transform_3(%arg0: i32) -> (i32, i32) {
    %c0_i32 = arith.constant 0 : i32
    %c0_i32_0 = arith.constant 0 : i32
    %c0_i32_1 = arith.constant 0 : i32
    return %c0_i32, %c0_i32_0 : i32, i32
  }
  func.func @transform_4(%arg0: i32) -> (i32, i32) {
    %c0_i32 = arith.constant 0 : i32
    %c0_i32_0 = arith.constant 0 : i32
    return %arg0, %c0_i32 : i32, i32
  }
  func.func @transform_5(%arg0: i32) -> (i32, i32) {
    %c0_i32 = arith.constant 0 : i32
    %c0_i32_0 = arith.constant 0 : i32
    %c0_i32_1 = arith.constant 0 : i32
    return %c0_i32, %c0_i32_0 : i32, i32
  }
  func.func @transform_6(%arg0: i32) -> (i32, i32) {
    %c0_i32 = arith.constant 0 : i32
    %c0_i32_0 = arith.constant 0 : i32
    %c0_i32_1 = arith.constant 0 : i32
    return %c0_i32, %c0_i32_0 : i32, i32
  }
  func.func @transform_7(%arg0: i32) -> (i32, i32) {
    %c0_i32 = arith.constant 0 : i32
    %c0_i32_0 = arith.constant 0 : i32
    return %arg0, %c0_i32 : i32, i32
  }
}

module attributes {stable_mosaic.version = 11 : i64} {
  func.func @_conv_bn_kernel(%arg0: i32, %arg1: memref<128x144xbf16, #tpu.memory_space<vmem>>, %arg2: memref<144x128xbf16, #tpu.memory_space<vmem>>, %arg3: memref<1x128xf32, #tpu.memory_space<vmem>>, %arg4: memref<1x128xf32, #tpu.memory_space<vmem>>, %arg5: memref<128x128xbf16, #tpu.memory_space<vmem>>) attributes {dimension_semantics = [#tpu.dimension_semantics<parallel>], iteration_bounds = array<i64: 1>, scalar_prefetch = 0 : i64, scratch_operands = 0 : i64, tpu.core_type = #tpu.core_type<tc>, window_params = [{transform_indices = @transform_0, window_bounds = array<i64: 128, 144>}, {pipeline_mode = #tpu.pipeline_mode<synchronous>, transform_indices = @transform_1, window_bounds = array<i64: 144, 128>}, {pipeline_mode = #tpu.pipeline_mode<synchronous>, transform_indices = @transform_2, window_bounds = array<i64: 1, 128>}, {pipeline_mode = #tpu.pipeline_mode<synchronous>, transform_indices = @transform_3, window_bounds = array<i64: 1, 128>}, {transform_indices = @transform_4, window_bounds = array<i64: 128, 128>}]} {
    %c0 = arith.constant 0 : index
    %c0_0 = arith.constant 0 : index
    %0 = vector.load %arg1[%c0, %c0_0] : memref<128x144xbf16, #tpu.memory_space<vmem>>, vector<128x144xbf16>
    %c0_1 = arith.constant 0 : index
    %c0_2 = arith.constant 0 : index
    %1 = vector.load %arg2[%c0_1, %c0_2] : memref<144x128xbf16, #tpu.memory_space<vmem>>, vector<144x128xbf16>
    %cst = arith.constant dense<0.000000e+00> : vector<128x128xf32>
    %2 = tpu.matmul %0, %1, %cst {dimension_numbers = #tpu.dot_dimension_numbers<[1], [0], [0], [1], [0, 0, 1, 1], [], []>} : vector<128x144xbf16>, vector<144x128xbf16>, vector<128x128xf32> -> vector<128x128xf32>
    %c0_3 = arith.constant 0 : index
    %c0_4 = arith.constant 0 : index
    %3 = vector.load %arg3[%c0_3, %c0_4] : memref<1x128xf32, #tpu.memory_space<vmem>>, vector<1x128xf32>
    %4 = vector.broadcast %3 : vector<1x128xf32> to vector<128x128xf32>
    %5 = arith.mulf %2, %4 : vector<128x128xf32>
    %c0_5 = arith.constant 0 : index
    %c0_6 = arith.constant 0 : index
    %6 = vector.load %arg4[%c0_5, %c0_6] : memref<1x128xf32, #tpu.memory_space<vmem>>, vector<1x128xf32>
    %7 = vector.broadcast %6 : vector<1x128xf32> to vector<128x128xf32>
    %8 = arith.addf %5, %7 : vector<128x128xf32>
    %cst_7 = arith.constant 0.000000e+00 : f32
    %9 = vector.broadcast %cst_7 : f32 to vector<128x128xf32>
    %10 = arith.maximumf %8, %9 : vector<128x128xf32>
    %11 = arith.truncf %10 : vector<128x128xf32> to vector<128x128xbf16>
    %c0_8 = arith.constant 0 : index
    %c0_9 = arith.constant 0 : index
    %12 = vector.load %arg5[%c0_8, %c0_9] : memref<128x128xbf16, #tpu.memory_space<vmem>>, vector<128x128xbf16>
    tpu.vector_store %arg5[%c0_8, %c0_9], %11 {strides = array<i32>} : memref<128x128xbf16, #tpu.memory_space<vmem>>, vector<128x128xbf16>,
    return
  }
  func.func @transform_0(%arg0: i32) -> (i32, i32) {
    %c0_i32 = arith.constant 0 : i32
    %c0_i32_0 = arith.constant 0 : i32
    return %arg0, %c0_i32 : i32, i32
  }
  func.func @transform_1(%arg0: i32) -> (i32, i32) {
    %c0_i32 = arith.constant 0 : i32
    %c0_i32_0 = arith.constant 0 : i32
    %c0_i32_1 = arith.constant 0 : i32
    return %c0_i32, %c0_i32_0 : i32, i32
  }
  func.func @transform_2(%arg0: i32) -> (i32, i32) {
    %c0_i32 = arith.constant 0 : i32
    %c0_i32_0 = arith.constant 0 : i32
    %c0_i32_1 = arith.constant 0 : i32
    return %c0_i32, %c0_i32_0 : i32, i32
  }
  func.func @transform_3(%arg0: i32) -> (i32, i32) {
    %c0_i32 = arith.constant 0 : i32
    %c0_i32_0 = arith.constant 0 : i32
    %c0_i32_1 = arith.constant 0 : i32
    return %c0_i32, %c0_i32_0 : i32, i32
  }
  func.func @transform_4(%arg0: i32) -> (i32, i32) {
    %c0_i32 = arith.constant 0 : i32
    %c0_i32_0 = arith.constant 0 : i32
    return %arg0, %c0_i32 : i32, i32
  }
}

module attributes {stable_mosaic.version = 11 : i64} {
  func.func @_conv_bn_kernel(%arg0: i32, %arg1: memref<128x288xbf16, #tpu.memory_space<vmem>>, %arg2: memref<288x128xbf16, #tpu.memory_space<vmem>>, %arg3: memref<1x128xf32, #tpu.memory_space<vmem>>, %arg4: memref<1x128xf32, #tpu.memory_space<vmem>>, %arg5: memref<128x128xbf16, #tpu.memory_space<vmem>>, %arg6: memref<1x128xf32, #tpu.memory_space<vmem>>, %arg7: memref<1x128xf32, #tpu.memory_space<vmem>>, %arg8: memref<128x128xbf16, #tpu.memory_space<vmem>>) attributes {dimension_semantics = [#tpu.dimension_semantics<parallel>], iteration_bounds = array<i64: 1>, scalar_prefetch = 0 : i64, scratch_operands = 0 : i64, tpu.core_type = #tpu.core_type<tc>, window_params = [{transform_indices = @transform_0, window_bounds = array<i64: 128, 288>}, {pipeline_mode = #tpu.pipeline_mode<synchronous>, transform_indices = @transform_1, window_bounds = array<i64: 288, 128>}, {pipeline_mode = #tpu.pipeline_mode<synchronous>, transform_indices = @transform_2, window_bounds = array<i64: 1, 128>}, {pipeline_mode = #tpu.pipeline_mode<synchronous>, transform_indices = @transform_3, window_bounds = array<i64: 1, 128>}, {transform_indices = @transform_4, window_bounds = array<i64: 128, 128>}, {pipeline_mode = #tpu.pipeline_mode<synchronous>, transform_indices = @transform_5, window_bounds = array<i64: 1, 128>}, {pipeline_mode = #tpu.pipeline_mode<synchronous>, transform_indices = @transform_6, window_bounds = array<i64: 1, 128>}, {transform_indices = @transform_7, window_bounds = array<i64: 128, 128>}]} {
    %c0 = arith.constant 0 : index
    %c0_0 = arith.constant 0 : index
    %0 = vector.load %arg1[%c0, %c0_0] : memref<128x288xbf16, #tpu.memory_space<vmem>>, vector<128x288xbf16>
    %c0_1 = arith.constant 0 : index
    %c0_2 = arith.constant 0 : index
    %1 = vector.load %arg2[%c0_1, %c0_2] : memref<288x128xbf16, #tpu.memory_space<vmem>>, vector<288x128xbf16>
    %cst = arith.constant dense<0.000000e+00> : vector<128x128xf32>
    %2 = tpu.matmul %0, %1, %cst {dimension_numbers = #tpu.dot_dimension_numbers<[1], [0], [0], [1], [0, 0, 1, 1], [], []>} : vector<128x288xbf16>, vector<288x128xbf16>, vector<128x128xf32> -> vector<128x128xf32>
    %c0_3 = arith.constant 0 : index
    %c0_4 = arith.constant 0 : index
    %3 = vector.load %arg3[%c0_3, %c0_4] : memref<1x128xf32, #tpu.memory_space<vmem>>, vector<1x128xf32>
    %4 = vector.broadcast %3 : vector<1x128xf32> to vector<128x128xf32>
    %5 = arith.mulf %2, %4 : vector<128x128xf32>
    %c0_5 = arith.constant 0 : index
    %c0_6 = arith.constant 0 : index
    %6 = vector.load %arg4[%c0_5, %c0_6] : memref<1x128xf32, #tpu.memory_space<vmem>>, vector<1x128xf32>
    %7 = vector.broadcast %6 : vector<1x128xf32> to vector<128x128xf32>
    %8 = arith.addf %5, %7 : vector<128x128xf32>
    %c0_7 = arith.constant 0 : index
    %c0_8 = arith.constant 0 : index
    %9 = vector.load %arg5[%c0_7, %c0_8] : memref<128x128xbf16, #tpu.memory_space<vmem>>, vector<128x128xbf16>
    %10 = arith.extf %9 : vector<128x128xbf16> to vector<128x128xf32>
    %c0_9 = arith.constant 0 : index
    %c0_10 = arith.constant 0 : index
    %11 = vector.load %arg6[%c0_9, %c0_10] : memref<1x128xf32, #tpu.memory_space<vmem>>, vector<1x128xf32>
    %12 = vector.broadcast %11 : vector<1x128xf32> to vector<128x128xf32>
    %13 = arith.mulf %10, %12 : vector<128x128xf32>
    %14 = arith.addf %8, %13 : vector<128x128xf32>
    %c0_11 = arith.constant 0 : index
    %c0_12 = arith.constant 0 : index
    %15 = vector.load %arg7[%c0_11, %c0_12] : memref<1x128xf32, #tpu.memory_space<vmem>>, vector<1x128xf32>
    %16 = vector.broadcast %15 : vector<1x128xf32> to vector<128x128xf32>
    %17 = arith.addf %14, %16 : vector<128x128xf32>
    %cst_13 = arith.constant 0.000000e+00 : f32
    %18 = vector.broadcast %cst_13 : f32 to vector<128x128xf32>
    %19 = arith.maximumf %17, %18 : vector<128x128xf32>
    %20 = arith.truncf %19 : vector<128x128xf32> to vector<128x128xbf16>
    %c0_14 = arith.constant 0 : index
    %c0_15 = arith.constant 0 : index
    %21 = vector.load %arg8[%c0_14, %c0_15] : memref<128x128xbf16, #tpu.memory_space<vmem>>, vector<128x128xbf16>
    tpu.vector_store %arg8[%c0_14, %c0_15], %20 {strides = array<i32>} : memref<128x128xbf16, #tpu.memory_space<vmem>>, vector<128x128xbf16>,
    return
  }
  func.func @transform_0(%arg0: i32) -> (i32, i32) {
    %c0_i32 = arith.constant 0 : i32
    %c0_i32_0 = arith.constant 0 : i32
    return %arg0, %c0_i32 : i32, i32
  }
  func.func @transform_1(%arg0: i32) -> (i32, i32) {
    %c0_i32 = arith.constant 0 : i32
    %c0_i32_0 = arith.constant 0 : i32
    %c0_i32_1 = arith.constant 0 : i32
    return %c0_i32, %c0_i32_0 : i32, i32
  }
  func.func @transform_2(%arg0: i32) -> (i32, i32) {
    %c0_i32 = arith.constant 0 : i32
    %c0_i32_0 = arith.constant 0 : i32
    %c0_i32_1 = arith.constant 0 : i32
    return %c0_i32, %c0_i32_0 : i32, i32
  }
  func.func @transform_3(%arg0: i32) -> (i32, i32) {
    %c0_i32 = arith.constant 0 : i32
    %c0_i32_0 = arith.constant 0 : i32
    %c0_i32_1 = arith.constant 0 : i32
    return %c0_i32, %c0_i32_0 : i32, i32
  }
  func.func @transform_4(%arg0: i32) -> (i32, i32) {
    %c0_i32 = arith.constant 0 : i32
    %c0_i32_0 = arith.constant 0 : i32
    return %arg0, %c0_i32 : i32, i32
  }
  func.func @transform_5(%arg0: i32) -> (i32, i32) {
    %c0_i32 = arith.constant 0 : i32
    %c0_i32_0 = arith.constant 0 : i32
    %c0_i32_1 = arith.constant 0 : i32
    return %c0_i32, %c0_i32_0 : i32, i32
  }
  func.func @transform_6(%arg0: i32) -> (i32, i32) {
    %c0_i32 = arith.constant 0 : i32
    %c0_i32_0 = arith.constant 0 : i32
    %c0_i32_1 = arith.constant 0 : i32
    return %c0_i32, %c0_i32_0 : i32, i32
  }
  func.func @transform_7(%arg0: i32) -> (i32, i32) {
    %c0_i32 = arith.constant 0 : i32
    %c0_i32_0 = arith.constant 0 : i32
    return %arg0, %c0_i32 : i32, i32
  }
}

module attributes {stable_mosaic.version = 11 : i64} {
  func.func @_conv_bn_kernel(%arg0: i32, %arg1: memref<32x288xbf16, #tpu.memory_space<vmem>>, %arg2: memref<288x128xbf16, #tpu.memory_space<vmem>>, %arg3: memref<1x128xf32, #tpu.memory_space<vmem>>, %arg4: memref<1x128xf32, #tpu.memory_space<vmem>>, %arg5: memref<32x128xbf16, #tpu.memory_space<vmem>>) attributes {dimension_semantics = [#tpu.dimension_semantics<parallel>], iteration_bounds = array<i64: 1>, scalar_prefetch = 0 : i64, scratch_operands = 0 : i64, tpu.core_type = #tpu.core_type<tc>, window_params = [{transform_indices = @transform_0, window_bounds = array<i64: 32, 288>}, {pipeline_mode = #tpu.pipeline_mode<synchronous>, transform_indices = @transform_1, window_bounds = array<i64: 288, 128>}, {pipeline_mode = #tpu.pipeline_mode<synchronous>, transform_indices = @transform_2, window_bounds = array<i64: 1, 128>}, {pipeline_mode = #tpu.pipeline_mode<synchronous>, transform_indices = @transform_3, window_bounds = array<i64: 1, 128>}, {transform_indices = @transform_4, window_bounds = array<i64: 32, 128>}]} {
    %c0 = arith.constant 0 : index
    %c0_0 = arith.constant 0 : index
    %0 = vector.load %arg1[%c0, %c0_0] : memref<32x288xbf16, #tpu.memory_space<vmem>>, vector<32x288xbf16>
    %c0_1 = arith.constant 0 : index
    %c0_2 = arith.constant 0 : index
    %1 = vector.load %arg2[%c0_1, %c0_2] : memref<288x128xbf16, #tpu.memory_space<vmem>>, vector<288x128xbf16>
    %cst = arith.constant dense<0.000000e+00> : vector<32x128xf32>
    %2 = tpu.matmul %0, %1, %cst {dimension_numbers = #tpu.dot_dimension_numbers<[1], [0], [0], [1], [0, 0, 1, 1], [], []>} : vector<32x288xbf16>, vector<288x128xbf16>, vector<32x128xf32> -> vector<32x128xf32>
    %c0_3 = arith.constant 0 : index
    %c0_4 = arith.constant 0 : index
    %3 = vector.load %arg3[%c0_3, %c0_4] : memref<1x128xf32, #tpu.memory_space<vmem>>, vector<1x128xf32>
    %4 = vector.broadcast %3 : vector<1x128xf32> to vector<32x128xf32>
    %5 = arith.mulf %2, %4 : vector<32x128xf32>
    %c0_5 = arith.constant 0 : index
    %c0_6 = arith.constant 0 : index
    %6 = vector.load %arg4[%c0_5, %c0_6] : memref<1x128xf32, #tpu.memory_space<vmem>>, vector<1x128xf32>
    %7 = vector.broadcast %6 : vector<1x128xf32> to vector<32x128xf32>
    %8 = arith.addf %5, %7 : vector<32x128xf32>
    %cst_7 = arith.constant 0.000000e+00 : f32
    %9 = vector.broadcast %cst_7 : f32 to vector<32x128xf32>
    %10 = arith.maximumf %8, %9 : vector<32x128xf32>
    %11 = arith.truncf %10 : vector<32x128xf32> to vector<32x128xbf16>
    %c0_8 = arith.constant 0 : index
    %c0_9 = arith.constant 0 : index
    %12 = vector.load %arg5[%c0_8, %c0_9] : memref<32x128xbf16, #tpu.memory_space<vmem>>, vector<32x128xbf16>
    tpu.vector_store %arg5[%c0_8, %c0_9], %11 {strides = array<i32>} : memref<32x128xbf16, #tpu.memory_space<vmem>>, vector<32x128xbf16>,
    return
  }
  func.func @transform_0(%arg0: i32) -> (i32, i32) {
    %c0_i32 = arith.constant 0 : i32
    %c0_i32_0 = arith.constant 0 : i32
    return %arg0, %c0_i32 : i32, i32
  }
  func.func @transform_1(%arg0: i32) -> (i32, i32) {
    %c0_i32 = arith.constant 0 : i32
    %c0_i32_0 = arith.constant 0 : i32
    %c0_i32_1 = arith.constant 0 : i32
    return %c0_i32, %c0_i32_0 : i32, i32
  }
  func.func @transform_2(%arg0: i32) -> (i32, i32) {
    %c0_i32 = arith.constant 0 : i32
    %c0_i32_0 = arith.constant 0 : i32
    %c0_i32_1 = arith.constant 0 : i32
    return %c0_i32, %c0_i32_0 : i32, i32
  }
  func.func @transform_3(%arg0: i32) -> (i32, i32) {
    %c0_i32 = arith.constant 0 : i32
    %c0_i32_0 = arith.constant 0 : i32
    %c0_i32_1 = arith.constant 0 : i32
    return %c0_i32, %c0_i32_0 : i32, i32
  }
  func.func @transform_4(%arg0: i32) -> (i32, i32) {
    %c0_i32 = arith.constant 0 : i32
    %c0_i32_0 = arith.constant 0 : i32
    return %arg0, %c0_i32 : i32, i32
  }
}

module attributes {stable_mosaic.version = 11 : i64} {
  func.func @_pool_fc_kernel(%arg0: i32, %arg1: memref<2x16x64xbf16, #tpu.memory_space<vmem>>, %arg2: memref<64x128xf32, #tpu.memory_space<vmem>>, %arg3: memref<1x128xf32, #tpu.memory_space<vmem>>, %arg4: memref<2x128xf32, #tpu.memory_space<vmem>>) attributes {dimension_semantics = [#tpu.dimension_semantics<arbitrary>], iteration_bounds = array<i64: 1>, scalar_prefetch = 0 : i64, scratch_operands = 0 : i64, tpu.core_type = #tpu.core_type<tc>, window_params = [{pipeline_mode = #tpu.pipeline_mode<synchronous>, transform_indices = @transform_0, window_bounds = array<i64: 2, 16, 64>}, {pipeline_mode = #tpu.pipeline_mode<synchronous>, transform_indices = @transform_1, window_bounds = array<i64: 64, 128>}, {pipeline_mode = #tpu.pipeline_mode<synchronous>, transform_indices = @transform_2, window_bounds = array<i64: 1, 128>}, {pipeline_mode = #tpu.pipeline_mode<synchronous>, transform_indices = @transform_3, window_bounds = array<i64: 2, 128>}]} {
    %c0 = arith.constant 0 : index
    %c0_0 = arith.constant 0 : index
    %c0_1 = arith.constant 0 : index
    %0 = vector.load %arg1[%c0, %c0_0, %c0_1] : memref<2x16x64xbf16, #tpu.memory_space<vmem>>, vector<2x16x64xbf16>
    %1 = arith.extf %0 : vector<2x16x64xbf16> to vector<2x16x64xf32>
    %cst = arith.constant dense<0.000000e+00> : vector<2x64xf32>
    %2 = vector.multi_reduction <add>, %1, %cst [1] : vector<2x16x64xf32> to vector<2x64xf32>
    %cst_2 = arith.constant 1.600000e+01 : f32
    %3 = vector.broadcast %cst_2 : f32 to vector<2x64xf32>
    %4 = arith.divf %2, %3 : vector<2x64xf32>
    %c0_3 = arith.constant 0 : index
    %c0_4 = arith.constant 0 : index
    %5 = vector.load %arg2[%c0_3, %c0_4] : memref<64x128xf32, #tpu.memory_space<vmem>>, vector<64x128xf32>
    %cst_5 = arith.constant dense<0.000000e+00> : vector<2x128xf32>
    %6 = tpu.matmul %4, %5, %cst_5 {dimension_numbers = #tpu.dot_dimension_numbers<[1], [0], [0], [1], [0, 0, 1, 1], [], []>} : vector<2x64xf32>, vector<64x128xf32>, vector<2x128xf32> -> vector<2x128xf32>
    %c0_6 = arith.constant 0 : index
    %c0_7 = arith.constant 0 : index
    %7 = vector.load %arg3[%c0_6, %c0_7] : memref<1x128xf32, #tpu.memory_space<vmem>>, vector<1x128xf32>
    %8 = vector.broadcast %7 : vector<1x128xf32> to vector<2x128xf32>
    %9 = arith.addf %6, %8 : vector<2x128xf32>
    %c0_8 = arith.constant 0 : index
    %c0_9 = arith.constant 0 : index
    %10 = vector.load %arg4[%c0_8, %c0_9] : memref<2x128xf32, #tpu.memory_space<vmem>>, vector<2x128xf32>
    tpu.vector_store %arg4[%c0_8, %c0_9], %9 {strides = array<i32>} : memref<2x128xf32, #tpu.memory_space<vmem>>, vector<2x128xf32>,
    return
  }
  func.func @transform_0(%arg0: i32) -> (i32, i32, i32) {
    %c0_i32 = arith.constant 0 : i32
    %c0_i32_0 = arith.constant 0 : i32
    %c0_i32_1 = arith.constant 0 : i32
    %c0_i32_2 = arith.constant 0 : i32
    return %c0_i32, %c0_i32_0, %c0_i32_1 : i32, i32, i32
  }
  func.func @transform_1(%arg0: i32) -> (i32, i32) {
    %c0_i32 = arith.constant 0 : i32
    %c0_i32_0 = arith.constant 0 : i32
    %c0_i32_1 = arith.constant 0 : i32
    return %c0_i32, %c0_i32_0 : i32, i32
  }
  func.func @transform_2(%arg0: i32) -> (i32, i32) {
    %c0_i32 = arith.constant 0 : i32
    %c0_i32_0 = arith.constant 0 : i32
    %c0_i32_1 = arith.constant 0 : i32
    return %c0_i32, %c0_i32_0 : i32, i32
  }
  func.func @transform_3(%arg0: i32) -> (i32, i32) {
    %c0_i32 = arith.constant 0 : i32
    %c0_i32_0 = arith.constant 0 : i32
    %c0_i32_1 = arith.constant 0 : i32
    return %c0_i32, %c0_i32_0 : i32, i32
  }
}

module attributes {stable_mosaic.version = 11 : i64} {
  func.func @_conv_bn_kernel(%arg0: i32, %arg1: memref<32x576xbf16, #tpu.memory_space<vmem>>, %arg2: memref<576x128xbf16, #tpu.memory_space<vmem>>, %arg3: memref<1x128xf32, #tpu.memory_space<vmem>>, %arg4: memref<1x128xf32, #tpu.memory_space<vmem>>, %arg5: memref<32x128xbf16, #tpu.memory_space<vmem>>, %arg6: memref<1x128xf32, #tpu.memory_space<vmem>>, %arg7: memref<1x128xf32, #tpu.memory_space<vmem>>, %arg8: memref<32x128xbf16, #tpu.memory_space<vmem>>) attributes {dimension_semantics = [#tpu.dimension_semantics<parallel>], iteration_bounds = array<i64: 1>, scalar_prefetch = 0 : i64, scratch_operands = 0 : i64, tpu.core_type = #tpu.core_type<tc>, window_params = [{transform_indices = @transform_0, window_bounds = array<i64: 32, 576>}, {pipeline_mode = #tpu.pipeline_mode<synchronous>, transform_indices = @transform_1, window_bounds = array<i64: 576, 128>}, {pipeline_mode = #tpu.pipeline_mode<synchronous>, transform_indices = @transform_2, window_bounds = array<i64: 1, 128>}, {pipeline_mode = #tpu.pipeline_mode<synchronous>, transform_indices = @transform_3, window_bounds = array<i64: 1, 128>}, {transform_indices = @transform_4, window_bounds = array<i64: 32, 128>}, {pipeline_mode = #tpu.pipeline_mode<synchronous>, transform_indices = @transform_5, window_bounds = array<i64: 1, 128>}, {pipeline_mode = #tpu.pipeline_mode<synchronous>, transform_indices = @transform_6, window_bounds = array<i64: 1, 128>}, {transform_indices = @transform_7, window_bounds = array<i64: 32, 128>}]} {
    %c0 = arith.constant 0 : index
    %c0_0 = arith.constant 0 : index
    %0 = vector.load %arg1[%c0, %c0_0] : memref<32x576xbf16, #tpu.memory_space<vmem>>, vector<32x576xbf16>
    %c0_1 = arith.constant 0 : index
    %c0_2 = arith.constant 0 : index
    %1 = vector.load %arg2[%c0_1, %c0_2] : memref<576x128xbf16, #tpu.memory_space<vmem>>, vector<576x128xbf16>
    %cst = arith.constant dense<0.000000e+00> : vector<32x128xf32>
    %2 = tpu.matmul %0, %1, %cst {dimension_numbers = #tpu.dot_dimension_numbers<[1], [0], [0], [1], [0, 0, 1, 1], [], []>} : vector<32x576xbf16>, vector<576x128xbf16>, vector<32x128xf32> -> vector<32x128xf32>
    %c0_3 = arith.constant 0 : index
    %c0_4 = arith.constant 0 : index
    %3 = vector.load %arg3[%c0_3, %c0_4] : memref<1x128xf32, #tpu.memory_space<vmem>>, vector<1x128xf32>
    %4 = vector.broadcast %3 : vector<1x128xf32> to vector<32x128xf32>
    %5 = arith.mulf %2, %4 : vector<32x128xf32>
    %c0_5 = arith.constant 0 : index
    %c0_6 = arith.constant 0 : index
    %6 = vector.load %arg4[%c0_5, %c0_6] : memref<1x128xf32, #tpu.memory_space<vmem>>, vector<1x128xf32>
    %7 = vector.broadcast %6 : vector<1x128xf32> to vector<32x128xf32>
    %8 = arith.addf %5, %7 : vector<32x128xf32>
    %c0_7 = arith.constant 0 : index
    %c0_8 = arith.constant 0 : index
    %9 = vector.load %arg5[%c0_7, %c0_8] : memref<32x128xbf16, #tpu.memory_space<vmem>>, vector<32x128xbf16>
    %10 = arith.extf %9 : vector<32x128xbf16> to vector<32x128xf32>
    %c0_9 = arith.constant 0 : index
    %c0_10 = arith.constant 0 : index
    %11 = vector.load %arg6[%c0_9, %c0_10] : memref<1x128xf32, #tpu.memory_space<vmem>>, vector<1x128xf32>
    %12 = vector.broadcast %11 : vector<1x128xf32> to vector<32x128xf32>
    %13 = arith.mulf %10, %12 : vector<32x128xf32>
    %14 = arith.addf %8, %13 : vector<32x128xf32>
    %c0_11 = arith.constant 0 : index
    %c0_12 = arith.constant 0 : index
    %15 = vector.load %arg7[%c0_11, %c0_12] : memref<1x128xf32, #tpu.memory_space<vmem>>, vector<1x128xf32>
    %16 = vector.broadcast %15 : vector<1x128xf32> to vector<32x128xf32>
    %17 = arith.addf %14, %16 : vector<32x128xf32>
    %cst_13 = arith.constant 0.000000e+00 : f32
    %18 = vector.broadcast %cst_13 : f32 to vector<32x128xf32>
    %19 = arith.maximumf %17, %18 : vector<32x128xf32>
    %20 = arith.truncf %19 : vector<32x128xf32> to vector<32x128xbf16>
    %c0_14 = arith.constant 0 : index
    %c0_15 = arith.constant 0 : index
    %21 = vector.load %arg8[%c0_14, %c0_15] : memref<32x128xbf16, #tpu.memory_space<vmem>>, vector<32x128xbf16>
    tpu.vector_store %arg8[%c0_14, %c0_15], %20 {strides = array<i32>} : memref<32x128xbf16, #tpu.memory_space<vmem>>, vector<32x128xbf16>,
    return
  }
  func.func @transform_0(%arg0: i32) -> (i32, i32) {
    %c0_i32 = arith.constant 0 : i32
    %c0_i32_0 = arith.constant 0 : i32
    return %arg0, %c0_i32 : i32, i32
  }
  func.func @transform_1(%arg0: i32) -> (i32, i32) {
    %c0_i32 = arith.constant 0 : i32
    %c0_i32_0 = arith.constant 0 : i32
    %c0_i32_1 = arith.constant 0 : i32
    return %c0_i32, %c0_i32_0 : i32, i32
  }
  func.func @transform_2(%arg0: i32) -> (i32, i32) {
    %c0_i32 = arith.constant 0 : i32
    %c0_i32_0 = arith.constant 0 : i32
    %c0_i32_1 = arith.constant 0 : i32
    return %c0_i32, %c0_i32_0 : i32, i32
  }
  func.func @transform_3(%arg0: i32) -> (i32, i32) {
    %c0_i32 = arith.constant 0 : i32
    %c0_i32_0 = arith.constant 0 : i32
    %c0_i32_1 = arith.constant 0 : i32
    return %c0_i32, %c0_i32_0 : i32, i32
  }
  func.func @transform_4(%arg0: i32) -> (i32, i32) {
    %c0_i32 = arith.constant 0 : i32
    %c0_i32_0 = arith.constant 0 : i32
    return %arg0, %c0_i32 : i32, i32
  }
  func.func @transform_5(%arg0: i32) -> (i32, i32) {
    %c0_i32 = arith.constant 0 : i32
    %c0_i32_0 = arith.constant 0 : i32
    %c0_i32_1 = arith.constant 0 : i32
    return %c0_i32, %c0_i32_0 : i32, i32
  }
  func.func @transform_6(%arg0: i32) -> (i32, i32) {
    %c0_i32 = arith.constant 0 : i32
    %c0_i32_0 = arith.constant 0 : i32
    %c0_i32_1 = arith.constant 0 : i32
    return %c0_i32, %c0_i32_0 : i32, i32
  }
  func.func @transform_7(%arg0: i32) -> (i32, i32) {
    %c0_i32 = arith.constant 0 : i32
    %c0_i32_0 = arith.constant 0 : i32
    return %arg0, %c0_i32 : i32, i32
  }
}

</mosaic_0001>

<llo_original>
// kernel: resnet_forward.8
$region0: #{resnet_forward.8}
  #allocation0 [shape = 'u32[]', space=smem, size = 0x4, offset = 0x4, fixed_abs, tag = 'smem constant byte address 0x4 - core index']
  #allocation1 [shape = 'u32[144,128]{1,0:T(1,128)}', space=vmem, size = 0x12000, scoped, tag = 'internal scratch']
  %s0 = inlined_call_operand.vmem [shape: bf16[512,32], index: 0, kind: input, shape index: {}]
  %s1 = inlined_call_operand.vmem [shape: bf16[32,128], index: 1, kind: input, shape index: {}]
  %s2 = inlined_call_operand.vmem [shape: f32[1,128], index: 2, kind: input, shape index: {}]
  %s3 = inlined_call_operand.vmem [shape: f32[1,128], index: 3, kind: input, shape index: {}]
  %s4 = inlined_call_operand.vmem [shape: bf16[512,128], index: 4, kind: output, shape index: {}]
  %s5 = sld [smem:[#allocation0]]
  $region49: #{resnet_forward.8} parent=0
    _
  %s7 = ssub.s32 1, %s5
  %s8 = scalar_select 0, %s7, %s5
  loop: start=0, step=1, limit=6
  $region2: #{resnet_forward.8} parent=0 // loop_pre_header
    _
  $region3: #{resnet_forward.8} parent=0 // loop_header
    %s10 = sphi 0, %s14
    %p11 = scmp.ge.s32.totalorder %s10, 6
    %s20 = sphi 0, %s22
    %s23 = sphi 0, %s20
    %s24 = sphi 0, %s23
    %s40 = sphi 0, %s24
    %s44 = sphi 0, %s44
    %s46 = sphi 0, %s44
    %s47 = sphi 0, %s46
    %s61 = sphi 0, %s47
    %s65 = sphi 0, %s65
    %s67 = sphi 0, %s65
    %s68 = sphi 0, %s67
    %s82 = sphi 0, %s68
    %s86 = sphi 0, %s86
    %s88 = sphi 0, %s86
    %s89 = sphi 0, %s88
    %s103 = sphi 0, %s89
    %s109 = sphi 0, %s111
    %s112 = sphi 0, %s109
    %s113 = sphi 0, %s112
    %s129 = sphi 0, %s113
  $region4: #{resnet_forward.8} parent=0 // loop_header_branch
    %13 = sbr.rel (%p11) target = $region8
  $region5: #{resnet_forward.8} parent=0 // loop_body
    %s15 = ssub.s32 %s10, 1
    %s16 = ssub.s32 %s10, 2
    %s17 = sadd.s32 %s10, 1
    %s18 = ssub.s32 %s10, %s17
    %p19 = scmp.eq.s32.totalorder %s18, 0
    %s21 = sadd.s32 %s20, 1
    %s22 = scalar_select %p19, %s20, %s21
    %p25 = pneg %p19
    %p26 = scmp.eq.s32.totalorder %s10, 3
    %p27 = por %p25, %p26
    %p28 = scmp.ne.s32.totalorder %s20, %s23
    %p29 = scmp.eq.s32.totalorder %s10, 0
    %p30 = por %p28, %p29
    %p31 = scmp.ne.s32.totalorder %s20, %s23
    %p32 = scmp.eq.s32.totalorder %s15, 3
    %p33 = por %p31, %p32
    %p34 = scmp.ne.s32.totalorder %s23, %s24
    %p35 = scmp.eq.s32.totalorder %s15, 0
    %p36 = por %p34, %p35
    %p37 = scmp.ne.s32.totalorder %s23, %s24
    %p38 = scmp.eq.s32.totalorder %s16, 3
    %p39 = por %p37, %p38
    %p41 = scmp.ne.s32.totalorder %s24, %s40
    %p42 = scmp.eq.s32.totalorder %s16, 0
    %p43 = por %p41, %p42
    %s45 = sadd.s32 %s44, 1
    %p48 = scmp.eq.s32.totalorder %s10, 3
    %p49 = scmp.ne.s32.totalorder %s44, %s46
    %p50 = scmp.eq.s32.totalorder %s10, 0
    %p51 = por %p49, %p50
    %p52 = scmp.ne.s32.totalorder %s44, %s46
    %p53 = scmp.eq.s32.totalorder %s15, 3
    %p54 = por %p52, %p53
    %p55 = scmp.ne.s32.totalorder %s46, %s47
    %p56 = scmp.eq.s32.totalorder %s15, 0
    %p57 = por %p55, %p56
    %p58 = scmp.ne.s32.totalorder %s46, %s47
    %p59 = scmp.eq.s32.totalorder %s16, 3
    %p60 = por %p58, %p59
    %p62 = scmp.ne.s32.totalorder %s47, %s61
    %p63 = scmp.eq.s32.totalorder %s16, 0
    %p64 = por %p62, %p63
    %s66 = sadd.s32 %s65, 1
    %p69 = scmp.eq.s32.totalorder %s10, 3
    %p70 = scmp.ne.s32.totalorder %s65, %s67
    %p71 = scmp.eq.s32.totalorder %s10, 0
    %p72 = por %p70, %p71
    %p73 = scmp.ne.s32.totalorder %s65, %s67
    %p74 = scmp.eq.s32.totalorder %s15, 3
    %p75 = por %p73, %p74
    %p76 = scmp.ne.s32.totalorder %s67, %s68
    %p77 = scmp.eq.s32.totalorder %s15, 0
    %p78 = por %p76, %p77
    %p79 = scmp.ne.s32.totalorder %s67, %s68
    %p80 = scmp.eq.s32.totalorder %s16, 3
    %p81 = por %p79, %p80
    %p83 = scmp.ne.s32.totalorder %s68, %s82
    %p84 = scmp.eq.s32.totalorder %s16, 0
    %p85 = por %p83, %p84
    %s87 = sadd.s32 %s86, 1
    %p90 = scmp.eq.s32.totalorder %s10, 3
    %p91 = scmp.ne.s32.totalorder %s86, %s88
    %p92 = scmp.eq.s32.totalorder %s10, 0
    %p93 = por %p91, %p92
    %p94 = scmp.ne.s32.totalorder %s86, %s88
    %p95 = scmp.eq.s32.totalorder %s15, 3
    %p96 = por %p94, %p95
    %p97 = scmp.ne.s32.totalorder %s88, %s89
    %p98 = scmp.eq.s32.totalorder %s15, 0
    %p99 = por %p97, %p98
    %p100 = scmp.ne.s32.totalorder %s88, %s89
    %p101 = scmp.eq.s32.totalorder %s16, 3
    %p102 = por %p100, %p101
    %p104 = scmp.ne.s32.totalorder %s89, %s103
    %p105 = scmp.eq.s32.totalorder %s16, 0
    %p106 = por %p104, %p105
    %s107 = ssub.s32 %s10, %s17
    %p108 = scmp.eq.s32.totalorder %s107, 0
    %s110 = sadd.s32 %s109, 1
    %s111 = scalar_select %p108, %s109, %s110
    %p114 = pneg %p108
    %p115 = scmp.eq.s32.totalorder %s10, 3
    %p116 = por %p114, %p115
    %p117 = scmp.ne.s32.totalorder %s109, %s112
    %p118 = scmp.eq.s32.totalorder %s10, 0
    %p119 = por %p117, %p118
    %p120 = scmp.ne.s32.totalorder %s109, %s112
    %p121 = scmp.eq.s32.totalorder %s15, 3
    %p122 = por %p120, %p121
    %p123 = scmp.ne.s32.totalorder %s112, %s113
    %p124 = scmp.eq.s32.totalorder %s15, 0
    %p125 = por %p123, %p124
    %p126 = scmp.ne.s32.totalorder %s112, %s113
    %p127 = scmp.eq.s32.totalorder %s16, 3
    %p128 = por %p126, %p127
    %p130 = scmp.ne.s32.totalorder %s113, %s129
    %p131 = scmp.eq.s32.totalorder %s16, 0
    %p132 = por %p130, %p131
    %p133 = scmp.le.s32.totalorder 1, %s10
    %p134 = scmp.lt.s32.totalorder %s10, 5
    %p135 = pnand %p133, %p134
    %p136 = pneg %p135
    // Predicated region
    $region9: #{resnet_forward.8} parent=5 // pred_check
      _
    $region10: #{resnet_forward.8} parent=5 // pred_check_branch
      %138 = sbr.rel (%p135) target = $region12
    $region11: #{resnet_forward.8} parent=5 // pred_region
      %s139 = ssub.s32 %s10, 1
      // Predicated region
      $region13: #{resnet_forward.8} parent=11 // pred_check
        %p140 = pneg %p57
      $region14: #{resnet_forward.8} parent=11 // pred_check_branch
        %142 = sbr.rel (%p140) target = $region16
      $region15: #{resnet_forward.8} parent=11 // pred_region
        _
      $region16: #{resnet_forward.8} parent=11 // pred_fallthru
        _
      // Predicated region
      $region17: #{resnet_forward.8} parent=11 // pred_check
        %p143 = pneg %p78
      $region18: #{resnet_forward.8} parent=11 // pred_check_branch
        %145 = sbr.rel (%p143) target = $region20
      $region19: #{resnet_forward.8} parent=11 // pred_region
        _
      $region20: #{resnet_forward.8} parent=11 // pred_fallthru
        _
      // Predicated region
      $region21: #{resnet_forward.8} parent=11 // pred_check
        %p146 = pneg %p99
      $region22: #{resnet_forward.8} parent=11 // pred_check_branch
        %148 = sbr.rel (%p146) target = $region24
      $region23: #{resnet_forward.8} parent=11 // pred_region
        _
      $region24: #{resnet_forward.8} parent=11 // pred_fallthru
        _
    $region12: #{resnet_forward.8} parent=5 // pred_fallthru
      _
    %p149 = scmp.lt.s32.totalorder %s10, 4
    // Predicated region
    $region25: #{resnet_forward.8} parent=5 // pred_check
      %p150 = pneg %p149
    $region26: #{resnet_forward.8} parent=5 // pred_check_branch
      %152 = sbr.rel (%p150) target = $region28
    $region27: #{resnet_forward.8} parent=5 // pred_region
      // Predicated region
      $region29: #{resnet_forward.8} parent=27 // pred_check
        %p153 = pneg %p30
      $region30: #{resnet_forward.8} parent=27 // pred_check_branch
        %155 = sbr.rel (%p153) target = $region32
      $region31: #{resnet_forward.8} parent=27 // pred_region
        %s156 = smul.u32 16, %s10
        %p157 = scmp.lt.s32.totalorder %s156, 63
        %s158 = scalar_select %p157, %s156, 63
        %s159 = smul.addr %s158, 4
        %s160 = scalar_lea.vmem %s0, %s159
        %s161 = smul.u32 16, %s10
      $region32: #{resnet_forward.8} parent=27 // pred_fallthru
        _
    $region28: #{resnet_forward.8} parent=5 // pred_fallthru
      _
    %p162 = scmp.le.s32.totalorder 1, %s10
    %p163 = scmp.lt.s32.totalorder %s10, 5
    %p164 = pnand %p162, %p163
    %p165 = pneg %p164
    // Predicated region
    $region33: #{resnet_forward.8} parent=5 // pred_check
      _
    $region34: #{resnet_forward.8} parent=5 // pred_check_branch
      %167 = sbr.rel (%p164) target = $region36
    $region35: #{resnet_forward.8} parent=5 // pred_region
      %s168 = ssub.s32 %s10, 1
      %s169 = smul.u32 16, %s15
      %p170 = scmp.lt.s32.totalorder %s169, 63
      %s171 = scalar_select %p170, %s169, 63
      %s172 = smul.addr %s171, 4
      %s173 = scalar_lea.vmem %s0, %s172
      %p174 = pneg %p36
      %p175 = pneg %p33
      %p176 = pneg %p57
      %p177 = pneg %p54
      %p178 = pneg %p78
      %p179 = pneg %p75
      %p180 = pneg %p99
      %p181 = pneg %p96
      %p182 = pneg %p125
      %p183 = pneg %p122
      %s184 = smul.u32 16, %s15
      %p185 = scmp.lt.s32.totalorder %s184, 63
      %s186 = scalar_select %p185, %s184, 63
      %s187 = smul.addr %s186, 4
      %s188 = scalar_lea.vmem %s4, %s187
      %s189 = smul.u32 16, %s15
      %p190 = scmp.lt.s32.totalorder %s189, 63
      %s191 = scalar_select %p190, %s189, 63
      %s192 = smul.addr %s191, 4
      %s193 = scalar_lea.vmem %s0, %s192
      %s194 = smul.u32 16, %s15
      %s195 = smul.u32 16, %s15
      %p196 = scmp.lt.s32.totalorder %s195, 63
      %s197 = scalar_select %p196, %s195, 63
      %s198 = smul.addr %s197, 4
      %s199 = scalar_lea.vmem %s4, %s198
      %s200 = smul.u32 16, %s15
      %v202 = vld [vmem:[%s193] sm:$0xf]
      %v203 = vld [vmem:[%s193 + $0x4] sm:$0xf]
      %v204 = vld [vmem:[%s193 + $0x8] sm:$0xf]
      %v205 = vld [vmem:[%s193 + $0xc] sm:$0xf]
      %v206 = vld [vmem:[%s193 + $0x10] sm:$0xf]
      %v207 = vld [vmem:[%s193 + $0x14] sm:$0xf]
      %v208 = vld [vmem:[%s193 + $0x18] sm:$0xf]
      %v209 = vld [vmem:[%s193 + $0x1c] sm:$0xf]
      %v210 = vld [vmem:[%s193 + $0x20] sm:$0xf]
      %v211 = vld [vmem:[%s193 + $0x24] sm:$0xf]
      %v212 = vld [vmem:[%s193 + $0x28] sm:$0xf]
      %v213 = vld [vmem:[%s193 + $0x2c] sm:$0xf]
      %v214 = vld [vmem:[%s193 + $0x30] sm:$0xf]
      %v215 = vld [vmem:[%s193 + $0x34] sm:$0xf]
      %v216 = vld [vmem:[%s193 + $0x38] sm:$0xf]
      %v217 = vld [vmem:[%s193 + $0x3c] sm:$0xf]
      %v218 = vld [vmem:[%s1] sm:$0xf]
      %v219 = vld [vmem:[%s1 + $0x4] sm:$0xf]
      %v220 = vld [vmem:[%s1 + $0x8] sm:$0xf]
      %v221 = vld [vmem:[%s1 + $0xc] sm:$0xf]
      %v238 = vunpack.c.l.b16 %v202
      %v239 = vunpack.c.l.b16 %v203
      %v240 = vunpack.c.l.b16 %v204
      %v241 = vunpack.c.l.b16 %v205
      %v242 = vunpack.c.l.b16 %v206
      %v243 = vunpack.c.l.b16 %v207
      %v244 = vunpack.c.l.b16 %v208
      %v245 = vunpack.c.l.b16 %v209
      %v246 = vunpack.c.l.b16 %v210
      %v247 = vunpack.c.l.b16 %v211
      %v248 = vunpack.c.l.b16 %v212
      %v249 = vunpack.c.l.b16 %v213
      %v250 = vunpack.c.l.b16 %v214
      %v251 = vunpack.c.l.b16 %v215
      %v252 = vunpack.c.l.b16 %v216
      %v253 = vunpack.c.l.b16 %v217
      %v254 = vpack.c.b16 %v239, %v238
      %v255 = vpack.c.b16 %v241, %v240
      %v256 = vpack.c.b16 %v243, %v242
      %v257 = vpack.c.b16 %v245, %v244
      %v258 = vpack.c.b16 %v247, %v246
      %v259 = vpack.c.b16 %v249, %v248
      %v260 = vpack.c.b16 %v251, %v250
      %v261 = vpack.c.b16 %v253, %v252
      %v266 = vunpack.c.l.b16 %v218
      %v267 = vunpack.c.l.b16 %v219
      %v268 = vunpack.c.l.b16 %v220
      %v269 = vunpack.c.l.b16 %v221
      %v270 = vpack.c.b16 %v267, %v266
      %v271 = vpack.c.b16 %v269, %v268
      %vm274 = vcmask 261120
      %v276 = vsel %vm274, %v254, 0
      %v279 = vsel %vm274, %v255, 0
      %v282 = vsel %vm274, %v256, 0
      %v285 = vsel %vm274, %v257, 0
      %v288 = vsel %vm274, %v258, 0
      %v291 = vsel %vm274, %v259, 0
      %v294 = vsel %vm274, %v260, 0
      %v297 = vsel %vm274, %v261, 0
      %299 = vmatprep.subr.bf16.mxu0 0
      %300 = vmatpush1.bf16.msra.mxu0 %v270
      %301 = vmatprep.subr.bf16.mxu0 0
      %302 = vmatpush1.bf16.msra.mxu0 %v271
      %303 = vmatprep.subr.bf16.mxu0 0
      %304 = vmatpush1.bf16.msra.mxu0 0
      %305 = vmatprep.subr.bf16.mxu0 0
      %306 = vmatpush1.bf16.msra.mxu0 0
      %307 = vmatprep.subr.bf16.mxu0 0
      %308 = vmatpush1.bf16.msra.mxu0 0
      %309 = vmatprep.subr.bf16.mxu0 0
      %310 = vmatpush1.bf16.msra.mxu0 0
      %311 = vmatprep.subr.bf16.mxu0 0
      %312 = vmatpush1.bf16.msra.mxu0 0
      %313 = vmatprep.subr.bf16.mxu0 0
      %314 = vmatpush1.bf16.msra.mxu0 0
      %315 = vmatprep.subr.bf16.mxu0 0
      %316 = vmatpush1.bf16.msra.mxu0 0
      %317 = vmatprep.subr.bf16.mxu0 0
      %318 = vmatpush1.bf16.msra.mxu0 0
      %319 = vmatprep.subr.bf16.mxu0 0
      %320 = vmatpush1.bf16.msra.mxu0 0
      %321 = vmatprep.subr.bf16.mxu0 0
      %322 = vmatpush1.bf16.msra.mxu0 0
      %323 = vmatprep.subr.bf16.mxu0 0
      %324 = vmatpush1.bf16.msra.mxu0 0
      %325 = vmatprep.subr.bf16.mxu0 0
      %326 = vmatpush1.bf16.msra.mxu0 0
      %327 = vmatprep.subr.bf16.mxu0 0
      %328 = vmatpush1.bf16.msra.mxu0 0
      %329 = vmatprep.subr.bf16.mxu0 0
      %330 = vmatpush1.bf16.msra.mxu0 0
      %331 = vmatprep.mubr.bf16.mxu0 0
      %332 = vmatmul.mubr.bf16.gmra.mrb[0].mxu0 %v276
      %v333 = vpop.f32.mrb[0].mxu0
      %v334 = vadd.f32 0.0, %v333
      %v335 = vpop.f32.mrb[0].mxu0
      %v336 = vpop.f32.mrb[0].mxu0
      %v337 = vadd.f32 0.0, %v336
      %v338 = vpop.f32.mrb[0].mxu0
      %339 = vmatprep.mubr.bf16.mxu0 0
      %340 = vmatmul.mubr.bf16.gmra.mrb[0].mxu0 %v279
      %v341 = vpop.f32.mrb[0].mxu0
      %v342 = vadd.f32 0.0, %v341
      %v343 = vpop.f32.mrb[0].mxu0
      %v344 = vpop.f32.mrb[0].mxu0
      %v345 = vadd.f32 0.0, %v344
      %v346 = vpop.f32.mrb[0].mxu0
      %347 = vmatprep.mubr.bf16.mxu0 0
      %348 = vmatmul.mubr.bf16.gmra.mrb[0].mxu0 %v282
      %v349 = vpop.f32.mrb[0].mxu0
      %v350 = vadd.f32 0.0, %v349
      %v351 = vpop.f32.mrb[0].mxu0
      %v352 = vpop.f32.mrb[0].mxu0
      %v353 = vadd.f32 0.0, %v352
      %v354 = vpop.f32.mrb[0].mxu0
      %355 = vmatprep.mubr.bf16.mxu0 0
      %356 = vmatmul.mubr.bf16.gmra.mrb[0].mxu0 %v285
      %v357 = vpop.f32.mrb[0].mxu0
      %v358 = vadd.f32 0.0, %v357
      %v359 = vpop.f32.mrb[0].mxu0
      %v360 = vpop.f32.mrb[0].mxu0
      %v361 = vadd.f32 0.0, %v360
      %v362 = vpop.f32.mrb[0].mxu0
      %363 = vmatprep.mubr.bf16.mxu0 0
      %364 = vmatmul.mubr.bf16.gmra.mrb[0].mxu0 %v288
      %v365 = vpop.f32.mrb[0].mxu0
      %v366 = vadd.f32 0.0, %v365
      %v367 = vpop.f32.mrb[0].mxu0
      %v368 = vpop.f32.mrb[0].mxu0
      %v369 = vadd.f32 0.0, %v368
      %v370 = vpop.f32.mrb[0].mxu0
      %371 = vmatprep.mubr.bf16.mxu0 0
      %372 = vmatmul.mubr.bf16.gmra.mrb[0].mxu0 %v291
      %v373 = vpop.f32.mrb[0].mxu0
      %v374 = vadd.f32 0.0, %v373
      %v375 = vpop.f32.mrb[0].mxu0
      %v376 = vpop.f32.mrb[0].mxu0
      %v377 = vadd.f32 0.0, %v376
      %v378 = vpop.f32.mrb[0].mxu0
      %379 = vmatprep.mubr.bf16.mxu0 0
      %380 = vmatmul.mubr.bf16.gmra.mrb[0].mxu0 %v294
      %v381 = vpop.f32.mrb[0].mxu0
      %v382 = vadd.f32 0.0, %v381
      %v383 = vpop.f32.mrb[0].mxu0
      %v384 = vpop.f32.mrb[0].mxu0
      %v385 = vadd.f32 0.0, %v384
      %v386 = vpop.f32.mrb[0].mxu0
      %387 = vmatprep.mubr.bf16.mxu0 0
      %388 = vmatmul.mubr.bf16.gmra.mrb[0].mxu0 %v297
      %v389 = vpop.f32.mrb[0].mxu0
      %v390 = vadd.f32 0.0, %v389
      %v391 = vpop.f32.mrb[0].mxu0
      %v392 = vpop.f32.mrb[0].mxu0
      %v393 = vadd.f32 0.0, %v392
      %v394 = vpop.f32.mrb[0].mxu0
      %395 = vdwg.mxu0
      %v396 = vld [vmem:[%s2] sm:$0x1]
      %v398 = vlaneseq
      %v399 = vshrl.u32 %v398, 7
      %v400 = vsub.s32 0, %v399
      %v401 = vrot.slane %v396, %v400
      %v403 = vmul.f32 %v334, %v401
      %v404 = vmul.f32 %v337, %v401
      %v405 = vmul.f32 %v342, %v401
      %v406 = vmul.f32 %v345, %v401
      %v407 = vmul.f32 %v350, %v401
      %v408 = vmul.f32 %v353, %v401
      %v409 = vmul.f32 %v358, %v401
      %v410 = vmul.f32 %v361, %v401
      %v411 = vmul.f32 %v366, %v401
      %v412 = vmul.f32 %v369, %v401
      %v413 = vmul.f32 %v374, %v401
      %v414 = vmul.f32 %v377, %v401
      %v415 = vmul.f32 %v382, %v401
      %v416 = vmul.f32 %v385, %v401
      %v417 = vmul.f32 %v390, %v401
      %v418 = vmul.f32 %v393, %v401
      %v419 = vld [vmem:[%s3] sm:$0x1]
      %v421 = vlaneseq
      %v422 = vshrl.u32 %v421, 7
      %v423 = vsub.s32 0, %v422
      %v424 = vrot.slane %v419, %v423
      %v426 = vadd.f32 %v403, %v424
      %v427 = vadd.f32 %v404, %v424
      %v428 = vadd.f32 %v405, %v424
      %v429 = vadd.f32 %v406, %v424
      %v430 = vadd.f32 %v407, %v424
      %v431 = vadd.f32 %v408, %v424
      %v432 = vadd.f32 %v409, %v424
      %v433 = vadd.f32 %v410, %v424
      %v434 = vadd.f32 %v411, %v424
      %v435 = vadd.f32 %v412, %v424
      %v436 = vadd.f32 %v413, %v424
      %v437 = vadd.f32 %v414, %v424
      %v438 = vadd.f32 %v415, %v424
      %v439 = vadd.f32 %v416, %v424
      %v440 = vadd.f32 %v417, %v424
      %v441 = vadd.f32 %v418, %v424
      %v442 = vmax.f32 %v426, 0.0
      %v443 = vmax.f32 %v427, 0.0
      %v444 = vmax.f32 %v428, 0.0
      %v445 = vmax.f32 %v429, 0.0
      %v446 = vmax.f32 %v430, 0.0
      %v447 = vmax.f32 %v431, 0.0
      %v448 = vmax.f32 %v432, 0.0
      %v449 = vmax.f32 %v433, 0.0
      %v450 = vmax.f32 %v434, 0.0
      %v451 = vmax.f32 %v435, 0.0
      %v452 = vmax.f32 %v436, 0.0
      %v453 = vmax.f32 %v437, 0.0
      %v454 = vmax.f32 %v438, 0.0
      %v455 = vmax.f32 %v439, 0.0
      %v456 = vmax.f32 %v440, 0.0
      %v457 = vmax.f32 %v441, 0.0
      %v458 = vpack.c.bf16 %v443, %v442
      %v459 = vpack.c.bf16 %v445, %v444
      %v460 = vpack.c.bf16 %v447, %v446
      %v461 = vpack.c.bf16 %v449, %v448
      %v462 = vpack.c.bf16 %v451, %v450
      %v463 = vpack.c.bf16 %v453, %v452
      %v464 = vpack.c.bf16 %v455, %v454
      %v465 = vpack.c.bf16 %v457, %v456
      %v474 = vunpack.c.l.b16 %v458
      %v475 = vunpack.c.h.b16 %v458
      %v476 = vunpack.c.l.b16 %v459
      %v477 = vunpack.c.h.b16 %v459
      %v478 = vunpack.c.l.b16 %v460
      %v479 = vunpack.c.h.b16 %v460
      %v480 = vunpack.c.l.b16 %v461
      %v481 = vunpack.c.h.b16 %v461
      %v482 = vunpack.c.l.b16 %v462
      %v483 = vunpack.c.h.b16 %v462
      %v484 = vunpack.c.l.b16 %v463
      %v485 = vunpack.c.h.b16 %v463
      %v486 = vunpack.c.l.b16 %v464
      %v487 = vunpack.c.h.b16 %v464
      %v488 = vunpack.c.l.b16 %v465
      %v489 = vunpack.c.h.b16 %v465
      %v490 = vpack.c.b16 %v474, %v474
      %v491 = vpack.c.b16 %v475, %v475
      %v492 = vpack.c.b16 %v476, %v476
      %v493 = vpack.c.b16 %v477, %v477
      %v494 = vpack.c.b16 %v478, %v478
      %v495 = vpack.c.b16 %v479, %v479
      %v496 = vpack.c.b16 %v480, %v480
      %v497 = vpack.c.b16 %v481, %v481
      %v498 = vpack.c.b16 %v482, %v482
      %v499 = vpack.c.b16 %v483, %v483
      %v500 = vpack.c.b16 %v484, %v484
      %v501 = vpack.c.b16 %v485, %v485
      %v502 = vpack.c.b16 %v486, %v486
      %v503 = vpack.c.b16 %v487, %v487
      %v504 = vpack.c.b16 %v488, %v488
      %v505 = vpack.c.b16 %v489, %v489
      %522 = vst [vmem:[%s199] sm:$0xf] %v490
      %523 = vst [vmem:[%s199 + $0x4] sm:$0xf] %v491
      %524 = vst [vmem:[%s199 + $0x8] sm:$0xf] %v492
      %525 = vst [vmem:[%s199 + $0xc] sm:$0xf] %v493
      %526 = vst [vmem:[%s199 + $0x10] sm:$0xf] %v494
      %527 = vst [vmem:[%s199 + $0x14] sm:$0xf] %v495
      %528 = vst [vmem:[%s199 + $0x18] sm:$0xf] %v496
      %529 = vst [vmem:[%s199 + $0x1c] sm:$0xf] %v497
      %530 = vst [vmem:[%s199 + $0x20] sm:$0xf] %v498
      %531 = vst [vmem:[%s199 + $0x24] sm:$0xf] %v499
      %532 = vst [vmem:[%s199 + $0x28] sm:$0xf] %v500
      %533 = vst [vmem:[%s199 + $0x2c] sm:$0xf] %v501
      %534 = vst [vmem:[%s199 + $0x30] sm:$0xf] %v502
      %535 = vst [vmem:[%s199 + $0x34] sm:$0xf] %v503
      %536 = vst [vmem:[%s199 + $0x38] sm:$0xf] %v504
      %537 = vst [vmem:[%s199 + $0x3c] sm:$0xf] %v505
      %s538 = smul.u32 16, %s15
      %p539 = scmp.lt.s32.totalorder %s538, 63
      %s540 = scalar_select %p539, %s538, 63
      %s541 = smul.addr %s540, 4
      %s542 = scalar_lea.vmem %s4, %s541
      // Predicated region
      $region37: #{resnet_forward.8} parent=35 // pred_check
        %p543 = pneg %p122
      $region38: #{resnet_forward.8} parent=35 // pred_check_branch
        %545 = sbr.rel (%p543) target = $region40
      $region39: #{resnet_forward.8} parent=35 // pred_region
        %s546 = smul.u32 16, %s15
      $region40: #{resnet_forward.8} parent=35 // pred_fallthru
        _
    $region36: #{resnet_forward.8} parent=5 // pred_fallthru
      _
    %p547 = scmp.le.s32.totalorder 2, %s10
    // Predicated region
    $region41: #{resnet_forward.8} parent=5 // pred_check
      %p548 = pneg %p547
    $region42: #{resnet_forward.8} parent=5 // pred_check_branch
      %550 = sbr.rel (%p548) target = $region44
    $region43: #{resnet_forward.8} parent=5 // pred_region
      %s551 = ssub.s32 %s10, 2
      // Predicated region
      $region45: #{resnet_forward.8} parent=43 // pred_check
        %p552 = pneg %p128
      $region46: #{resnet_forward.8} parent=43 // pred_check_branch
        %554 = sbr.rel (%p552) target = $region48
      $region47: #{resnet_forward.8} parent=43 // pred_region
        %s555 = smul.u32 16, %s16
        %p556 = scmp.lt.s32.totalorder %s555, 63
        %s557 = scalar_select %p556, %s555, 63
        %s558 = smul.addr %s557, 4
        %s559 = scalar_lea.vmem %s4, %s558
      $region48: #{resnet_forward.8} parent=43 // pred_fallthru
        _
    $region44: #{resnet_forward.8} parent=5 // pred_fallthru
      _
  $region6: #{resnet_forward.8} parent=0 // loop_footer
    %s14 = sadd.s32 1, %s10
  $region7: #{resnet_forward.8} parent=0 // loop_footer_branch
    %9 = sbr.rel target = $region3
  $region8: #{resnet_forward.8} parent=0 // loop_exit
    _

// kernel: resnet_forward.9
$region0: #{resnet_forward.9}
  #allocation0 [shape = 'u32[]', space=smem, size = 0x4, offset = 0x4, fixed_abs, tag = 'smem constant byte address 0x4 - core index']
  #allocation1 [shape = 'u32[144,128]{1,0:T(1,128)}', space=vmem, size = 0x12000, scoped, tag = 'internal scratch']
  %s0 = inlined_call_operand.vmem [shape: bf16[512,144], index: 0, kind: input, shape index: {}]
  %s1 = inlined_call_operand.vmem [shape: bf16[144,128], index: 1, kind: input, shape index: {}]
  %s2 = inlined_call_operand.vmem [shape: f32[1,128], index: 2, kind: input, shape index: {}]
  %s3 = inlined_call_operand.vmem [shape: f32[1,128], index: 3, kind: input, shape index: {}]
  %s4 = inlined_call_operand.vmem [shape: bf16[512,128], index: 4, kind: output, shape index: {}]
  %s5 = sld [smem:[#allocation0]]
  $region49: #{resnet_forward.9} parent=0
    _
  %s7 = ssub.s32 1, %s5
  %s8 = scalar_select 0, %s7, %s5
  loop: start=0, step=1, limit=6
  $region2: #{resnet_forward.9} parent=0 // loop_pre_header
    _
  $region3: #{resnet_forward.9} parent=0 // loop_header
    %s10 = sphi 0, %s14
    %p11 = scmp.ge.s32.totalorder %s10, 6
    %s20 = sphi 0, %s22
    %s23 = sphi 0, %s20
    %s24 = sphi 0, %s23
    %s40 = sphi 0, %s24
    %s44 = sphi 0, %s44
    %s46 = sphi 0, %s44
    %s47 = sphi 0, %s46
    %s61 = sphi 0, %s47
    %s65 = sphi 0, %s65
    %s67 = sphi 0, %s65
    %s68 = sphi 0, %s67
    %s82 = sphi 0, %s68
    %s86 = sphi 0, %s86
    %s88 = sphi 0, %s86
    %s89 = sphi 0, %s88
    %s103 = sphi 0, %s89
    %s109 = sphi 0, %s111
    %s112 = sphi 0, %s109
    %s113 = sphi 0, %s112
    %s129 = sphi 0, %s113
  $region4: #{resnet_forward.9} parent=0 // loop_header_branch
    %13 = sbr.rel (%p11) target = $region8
  $region5: #{resnet_forward.9} parent=0 // loop_body
    %s15 = ssub.s32 %s10, 1
    %s16 = ssub.s32 %s10, 2
    %s17 = sadd.s32 %s10, 1
    %s18 = ssub.s32 %s10, %s17
    %p19 = scmp.eq.s32.totalorder %s18, 0
    %s21 = sadd.s32 %s20, 1
    %s22 = scalar_select %p19, %s20, %s21
    %p25 = pneg %p19
    %p26 = scmp.eq.s32.totalorder %s10, 3
    %p27 = por %p25, %p26
    %p28 = scmp.ne.s32.totalorder %s20, %s23
    %p29 = scmp.eq.s32.totalorder %s10, 0
    %p30 = por %p28, %p29
    %p31 = scmp.ne.s32.totalorder %s20, %s23
    %p32 = scmp.eq.s32.totalorder %s15, 3
    %p33 = por %p31, %p32
    %p34 = scmp.ne.s32.totalorder %s23, %s24
    %p35 = scmp.eq.s32.totalorder %s15, 0
    %p36 = por %p34, %p35
    %p37 = scmp.ne.s32.totalorder %s23, %s24
    %p38 = scmp.eq.s32.totalorder %s16, 3
    %p39 = por %p37, %p38
    %p41 = scmp.ne.s32.totalorder %s24, %s40
    %p42 = scmp.eq.s32.totalorder %s16, 0
    %p43 = por %p41, %p42
    %s45 = sadd.s32 %s44, 1
    %p48 = scmp.eq.s32.totalorder %s10, 3
    %p49 = scmp.ne.s32.totalorder %s44, %s46
    %p50 = scmp.eq.s32.totalorder %s10, 0
    %p51 = por %p49, %p50
    %p52 = scmp.ne.s32.totalorder %s44, %s46
    %p53 = scmp.eq.s32.totalorder %s15, 3
    %p54 = por %p52, %p53
    %p55 = scmp.ne.s32.totalorder %s46, %s47
    %p56 = scmp.eq.s32.totalorder %s15, 0
    %p57 = por %p55, %p56
    %p58 = scmp.ne.s32.totalorder %s46, %s47
    %p59 = scmp.eq.s32.totalorder %s16, 3
    %p60 = por %p58, %p59
    %p62 = scmp.ne.s32.totalorder %s47, %s61
    %p63 = scmp.eq.s32.totalorder %s16, 0
    %p64 = por %p62, %p63
    %s66 = sadd.s32 %s65, 1
    %p69 = scmp.eq.s32.totalorder %s10, 3
    %p70 = scmp.ne.s32.totalorder %s65, %s67
    %p71 = scmp.eq.s32.totalorder %s10, 0
    %p72 = por %p70, %p71
    %p73 = scmp.ne.s32.totalorder %s65, %s67
    %p74 = scmp.eq.s32.totalorder %s15, 3
    %p75 = por %p73, %p74
    %p76 = scmp.ne.s32.totalorder %s67, %s68
    %p77 = scmp.eq.s32.totalorder %s15, 0
    %p78 = por %p76, %p77
    %p79 = scmp.ne.s32.totalorder %s67, %s68
    %p80 = scmp.eq.s32.totalorder %s16, 3
    %p81 = por %p79, %p80
    %p83 = scmp.ne.s32.totalorder %s68, %s82
    %p84 = scmp.eq.s32.totalorder %s16, 0
    %p85 = por %p83, %p84
    %s87 = sadd.s32 %s86, 1
    %p90 = scmp.eq.s32.totalorder %s10, 3
    %p91 = scmp.ne.s32.totalorder %s86, %s88
    %p92 = scmp.eq.s32.totalorder %s10, 0
    %p93 = por %p91, %p92
    %p94 = scmp.ne.s32.totalorder %s86, %s88
    %p95 = scmp.eq.s32.totalorder %s15, 3
    %p96 = por %p94, %p95
    %p97 = scmp.ne.s32.totalorder %s88, %s89
    %p98 = scmp.eq.s32.totalorder %s15, 0
    %p99 = por %p97, %p98
    %p100 = scmp.ne.s32.totalorder %s88, %s89
    %p101 = scmp.eq.s32.totalorder %s16, 3
    %p102 = por %p100, %p101
    %p104 = scmp.ne.s32.totalorder %s89, %s103
    %p105 = scmp.eq.s32.totalorder %s16, 0
    %p106 = por %p104, %p105
    %s107 = ssub.s32 %s10, %s17
    %p108 = scmp.eq.s32.totalorder %s107, 0
    %s110 = sadd.s32 %s109, 1
    %s111 = scalar_select %p108, %s109, %s110
    %p114 = pneg %p108
    %p115 = scmp.eq.s32.totalorder %s10, 3
    %p116 = por %p114, %p115
    %p117 = scmp.ne.s32.totalorder %s109, %s112
    %p118 = scmp.eq.s32.totalorder %s10, 0
    %p119 = por %p117, %p118
    %p120 = scmp.ne.s32.totalorder %s109, %s112
    %p121 = scmp.eq.s32.totalorder %s15, 3
    %p122 = por %p120, %p121
    %p123 = scmp.ne.s32.totalorder %s112, %s113
    %p124 = scmp.eq.s32.totalorder %s15, 0
    %p125 = por %p123, %p124
    %p126 = scmp.ne.s32.totalorder %s112, %s113
    %p127 = scmp.eq.s32.totalorder %s16, 3
    %p128 = por %p126, %p127
    %p130 = scmp.ne.s32.totalorder %s113, %s129
    %p131 = scmp.eq.s32.totalorder %s16, 0
    %p132 = por %p130, %p131
    %p133 = scmp.le.s32.totalorder 1, %s10
    %p134 = scmp.lt.s32.totalorder %s10, 5
    %p135 = pnand %p133, %p134
    %p136 = pneg %p135
    // Predicated region
    $region9: #{resnet_forward.9} parent=5 // pred_check
      _
    $region10: #{resnet_forward.9} parent=5 // pred_check_branch
      %138 = sbr.rel (%p135) target = $region12
    $region11: #{resnet_forward.9} parent=5 // pred_region
      %s139 = ssub.s32 %s10, 1
      // Predicated region
      $region13: #{resnet_forward.9} parent=11 // pred_check
        %p140 = pneg %p57
      $region14: #{resnet_forward.9} parent=11 // pred_check_branch
        %142 = sbr.rel (%p140) target = $region16
      $region15: #{resnet_forward.9} parent=11 // pred_region
        _
      $region16: #{resnet_forward.9} parent=11 // pred_fallthru
        _
      // Predicated region
      $region17: #{resnet_forward.9} parent=11 // pred_check
        %p143 = pneg %p78
      $region18: #{resnet_forward.9} parent=11 // pred_check_branch
        %145 = sbr.rel (%p143) target = $region20
      $region19: #{resnet_forward.9} parent=11 // pred_region
        _
      $region20: #{resnet_forward.9} parent=11 // pred_fallthru
        _
      // Predicated region
      $region21: #{resnet_forward.9} parent=11 // pred_check
        %p146 = pneg %p99
      $region22: #{resnet_forward.9} parent=11 // pred_check_branch
        %148 = sbr.rel (%p146) target = $region24
      $region23: #{resnet_forward.9} parent=11 // pred_region
        _
      $region24: #{resnet_forward.9} parent=11 // pred_fallthru
        _
    $region12: #{resnet_forward.9} parent=5 // pred_fallthru
      _
    %p149 = scmp.lt.s32.totalorder %s10, 4
    // Predicated region
    $region25: #{resnet_forward.9} parent=5 // pred_check
      %p150 = pneg %p149
    $region26: #{resnet_forward.9} parent=5 // pred_check_branch
      %152 = sbr.rel (%p150) target = $region28
    $region27: #{resnet_forward.9} parent=5 // pred_region
      // Predicated region
      $region29: #{resnet_forward.9} parent=27 // pred_check
        %p153 = pneg %p30
      $region30: #{resnet_forward.9} parent=27 // pred_check_branch
        %155 = sbr.rel (%p153) target = $region32
      $region31: #{resnet_forward.9} parent=27 // pred_region
        %s156 = smul.u32 16, %s10
        %p157 = scmp.lt.s32.totalorder %s156, 63
        %s158 = scalar_select %p157, %s156, 63
        %s159 = smul.addr %s158, 2
        %s160 = smul.addr %s159, 4
        %s161 = scalar_lea.vmem %s0, %s160
        %s162 = smul.u32 16, %s10
      $region32: #{resnet_forward.9} parent=27 // pred_fallthru
        _
    $region28: #{resnet_forward.9} parent=5 // pred_fallthru
      _
    %p163 = scmp.le.s32.totalorder 1, %s10
    %p164 = scmp.lt.s32.totalorder %s10, 5
    %p165 = pnand %p163, %p164
    %p166 = pneg %p165
    // Predicated region
    $region33: #{resnet_forward.9} parent=5 // pred_check
      _
    $region34: #{resnet_forward.9} parent=5 // pred_check_branch
      %168 = sbr.rel (%p165) target = $region36
    $region35: #{resnet_forward.9} parent=5 // pred_region
      %s169 = ssub.s32 %s10, 1
      %s170 = smul.u32 16, %s15
      %p171 = scmp.lt.s32.totalorder %s170, 63
      %s172 = scalar_select %p171, %s170, 63
      %s173 = smul.addr %s172, 2
      %s174 = smul.addr %s173, 4
      %s175 = scalar_lea.vmem %s0, %s174
      %p176 = pneg %p36
      %p177 = pneg %p33
      %p178 = pneg %p57
      %p179 = pneg %p54
      %p180 = pneg %p78
      %p181 = pneg %p75
      %p182 = pneg %p99
      %p183 = pneg %p96
      %p184 = pneg %p125
      %p185 = pneg %p122
      %s186 = smul.u32 16, %s15
      %p187 = scmp.lt.s32.totalorder %s186, 63
      %s188 = scalar_select %p187, %s186, 63
      %s189 = smul.addr %s188, 4
      %s190 = scalar_lea.vmem %s4, %s189
      %s191 = smul.u32 16, %s15
      %p192 = scmp.lt.s32.totalorder %s191, 63
      %s193 = scalar_select %p192, %s191, 63
      %s194 = smul.addr %s193, 2
      %s195 = smul.addr %s194, 4
      %s196 = scalar_lea.vmem %s0, %s195
      %s197 = smul.u32 16, %s15
      %s198 = smul.u32 16, %s15
      %p199 = scmp.lt.s32.totalorder %s198, 63
      %s200 = scalar_select %p199, %s198, 63
      %s201 = smul.addr %s200, 4
      %s202 = scalar_lea.vmem %s4, %s201
      %s203 = smul.u32 16, %s15
      %v205 = vld [vmem:[%s196] sm:$0xff]
      %v206 = vld [vmem:[%s196 + $0x8] sm:$0xff]
      %v207 = vld [vmem:[%s196 + $0x10] sm:$0xff]
      %v208 = vld [vmem:[%s196 + $0x18] sm:$0xff]
      %v209 = vld [vmem:[%s196 + $0x20] sm:$0xff]
      %v210 = vld [vmem:[%s196 + $0x28] sm:$0xff]
      %v211 = vld [vmem:[%s196 + $0x30] sm:$0xff]
      %v212 = vld [vmem:[%s196 + $0x38] sm:$0xff]
      %v213 = vld [vmem:[%s196 + $0x40] sm:$0xff]
      %v214 = vld [vmem:[%s196 + $0x48] sm:$0xff]
      %v215 = vld [vmem:[%s196 + $0x50] sm:$0xff]
      %v216 = vld [vmem:[%s196 + $0x58] sm:$0xff]
      %v217 = vld [vmem:[%s196 + $0x60] sm:$0xff]
      %v218 = vld [vmem:[%s196 + $0x68] sm:$0xff]
      %v219 = vld [vmem:[%s196 + $0x70] sm:$0xff]
      %v220 = vld [vmem:[%s196 + $0x78] sm:$0xff]
      %v221 = vld [vmem:[%s1] sm:$0xf]
      %v222 = vld [vmem:[%s1 + $0x4] sm:$0xf]
      %v223 = vld [vmem:[%s1 + $0x8] sm:$0xf]
      %v224 = vld [vmem:[%s1 + $0xc] sm:$0xf]
      %v225 = vld [vmem:[%s1 + $0x10] sm:$0xf]
      %v226 = vld [vmem:[%s1 + $0x14] sm:$0xf]
      %v227 = vld [vmem:[%s1 + $0x18] sm:$0xf]
      %v228 = vld [vmem:[%s1 + $0x1c] sm:$0xf]
      %v229 = vld [vmem:[%s1 + $0x20] sm:$0xf]
      %v230 = vld [vmem:[%s1 + $0x24] sm:$0xf]
      %v231 = vld [vmem:[%s1 + $0x28] sm:$0xf]
      %v232 = vld [vmem:[%s1 + $0x2c] sm:$0xf]
      %v233 = vld [vmem:[%s1 + $0x30] sm:$0xf]
      %v234 = vld [vmem:[%s1 + $0x34] sm:$0xf]
      %v235 = vld [vmem:[%s1 + $0x38] sm:$0xf]
      %v236 = vld [vmem:[%s1 + $0x3c] sm:$0xf]
      %v237 = vld [vmem:[%s1 + $0x40] sm:$0xf]
      %v238 = vld [vmem:[%s1 + $0x44] sm:$0xf]
      %v255 = vunpack.c.l.b16 %v205
      %v256 = vunpack.c.h.b16 %v205
      %v257 = vunpack.c.l.b16 %v206
      %v258 = vunpack.c.h.b16 %v206
      %v259 = vunpack.c.l.b16 %v207
      %v260 = vunpack.c.h.b16 %v207
      %v261 = vunpack.c.l.b16 %v208
      %v262 = vunpack.c.h.b16 %v208
      %v263 = vunpack.c.l.b16 %v209
      %v264 = vunpack.c.h.b16 %v209
      %v265 = vunpack.c.l.b16 %v210
      %v266 = vunpack.c.h.b16 %v210
      %v267 = vunpack.c.l.b16 %v211
      %v268 = vunpack.c.h.b16 %v211
      %v269 = vunpack.c.l.b16 %v212
      %v270 = vunpack.c.h.b16 %v212
      %v271 = vunpack.c.l.b16 %v213
      %v272 = vunpack.c.h.b16 %v213
      %v273 = vunpack.c.l.b16 %v214
      %v274 = vunpack.c.h.b16 %v214
      %v275 = vunpack.c.l.b16 %v215
      %v276 = vunpack.c.h.b16 %v215
      %v277 = vunpack.c.l.b16 %v216
      %v278 = vunpack.c.h.b16 %v216
      %v279 = vunpack.c.l.b16 %v217
      %v280 = vunpack.c.h.b16 %v217
      %v281 = vunpack.c.l.b16 %v218
      %v282 = vunpack.c.h.b16 %v218
      %v283 = vunpack.c.l.b16 %v219
      %v284 = vunpack.c.h.b16 %v219
      %v285 = vunpack.c.l.b16 %v220
      %v286 = vunpack.c.h.b16 %v220
      %v287 = vpack.c.b16 %v257, %v255
      %v288 = vpack.c.b16 %v258, %v256
      %v289 = vpack.c.b16 %v261, %v259
      %v290 = vpack.c.b16 %v262, %v260
      %v291 = vpack.c.b16 %v265, %v263
      %v292 = vpack.c.b16 %v266, %v264
      %v293 = vpack.c.b16 %v269, %v267
      %v294 = vpack.c.b16 %v270, %v268
      %v295 = vpack.c.b16 %v273, %v271
      %v296 = vpack.c.b16 %v274, %v272
      %v297 = vpack.c.b16 %v277, %v275
      %v298 = vpack.c.b16 %v278, %v276
      %v299 = vpack.c.b16 %v281, %v279
      %v300 = vpack.c.b16 %v282, %v280
      %v301 = vpack.c.b16 %v285, %v283
      %v302 = vpack.c.b16 %v286, %v284
      %v329 = vunpack.c.l.b16 %v221
      %v330 = vunpack.c.l.b16 %v222
      %v331 = vunpack.c.l.b16 %v223
      %v332 = vunpack.c.l.b16 %v224
      %v333 = vunpack.c.l.b16 %v225
      %v334 = vunpack.c.l.b16 %v226
      %v335 = vunpack.c.l.b16 %v227
      %v336 = vunpack.c.l.b16 %v228
      %v337 = vunpack.c.l.b16 %v229
      %v338 = vunpack.c.l.b16 %v230
      %v339 = vunpack.c.l.b16 %v231
      %v340 = vunpack.c.l.b16 %v232
      %v341 = vunpack.c.l.b16 %v233
      %v342 = vunpack.c.l.b16 %v234
      %v343 = vunpack.c.l.b16 %v235
      %v344 = vunpack.c.l.b16 %v236
      %v345 = vunpack.c.l.b16 %v237
      %v346 = vunpack.c.l.b16 %v238
      %v347 = vpack.c.b16 %v330, %v329
      %v348 = vpack.c.b16 %v332, %v331
      %v349 = vpack.c.b16 %v334, %v333
      %v350 = vpack.c.b16 %v336, %v335
      %v351 = vpack.c.b16 %v338, %v337
      %v352 = vpack.c.b16 %v340, %v339
      %v353 = vpack.c.b16 %v342, %v341
      %v354 = vpack.c.b16 %v344, %v343
      %v355 = vpack.c.b16 %v346, %v345
      %vm365 = vcmask 130048
      %v367 = vsel %vm365, %v288, 0
      %v370 = vsel %vm365, %v290, 0
      %v373 = vsel %vm365, %v292, 0
      %v376 = vsel %vm365, %v294, 0
      %v379 = vsel %vm365, %v296, 0
      %v382 = vsel %vm365, %v298, 0
      %v385 = vsel %vm365, %v300, 0
      %v388 = vsel %vm365, %v302, 0
      %390 = vmatprep.subr.bf16.mxu0 0
      %391 = vmatpush1.bf16.msra.mxu0 %v347
      %392 = vmatprep.subr.bf16.mxu0 0
      %393 = vmatpush1.bf16.msra.mxu0 %v348
      %394 = vmatprep.subr.bf16.mxu0 0
      %395 = vmatpush1.bf16.msra.mxu0 %v349
      %396 = vmatprep.subr.bf16.mxu0 0
      %397 = vmatpush1.bf16.msra.mxu0 %v350
      %398 = vmatprep.subr.bf16.mxu0 0
      %399 = vmatpush1.bf16.msra.mxu0 %v351
      %400 = vmatprep.subr.bf16.mxu0 0
      %401 = vmatpush1.bf16.msra.mxu0 %v352
      %402 = vmatprep.subr.bf16.mxu0 0
      %403 = vmatpush1.bf16.msra.mxu0 %v353
      %404 = vmatprep.subr.bf16.mxu0 0
      %405 = vmatpush1.bf16.msra.mxu0 %v354
      %406 = vmatprep.subr.bf16.mxu0 0
      %407 = vmatpush1.bf16.msra.mxu0 %v355
      %408 = vmatprep.subr.bf16.mxu0 0
      %409 = vmatpush1.bf16.msra.mxu0 0
      %410 = vmatprep.subr.bf16.mxu0 0
      %411 = vmatpush1.bf16.msra.mxu0 0
      %412 = vmatprep.subr.bf16.mxu0 0
      %413 = vmatpush1.bf16.msra.mxu0 0
      %414 = vmatprep.subr.bf16.mxu0 0
      %415 = vmatpush1.bf16.msra.mxu0 0
      %416 = vmatprep.subr.bf16.mxu0 0
      %417 = vmatpush1.bf16.msra.mxu0 0
      %418 = vmatprep.subr.bf16.mxu0 0
      %419 = vmatpush1.bf16.msra.mxu0 0
      %420 = vmatprep.subr.bf16.mxu0 0
      %421 = vmatpush1.bf16.msra.mxu0 0
      %422 = vmatprep.mubr.bf16.mxu0 %v367
      %423 = vmatmul.mubr.bf16.gmra.mrb[0].mxu0 %v287
      %v424 = vpop.f32.mrb[0].mxu0
      %v425 = vadd.f32 0.0, %v424
      %v426 = vpop.f32.mrb[0].mxu0
      %v427 = vpop.f32.mrb[0].mxu0
      %v428 = vadd.f32 0.0, %v427
      %v429 = vpop.f32.mrb[0].mxu0
      %430 = vmatprep.mubr.bf16.mxu0 %v370
      %431 = vmatmul.mubr.bf16.gmra.mrb[0].mxu0 %v289
      %v432 = vpop.f32.mrb[0].mxu0
      %v433 = vadd.f32 0.0, %v432
      %v434 = vpop.f32.mrb[0].mxu0
      %v435 = vpop.f32.mrb[0].mxu0
      %v436 = vadd.f32 0.0, %v435
      %v437 = vpop.f32.mrb[0].mxu0
      %438 = vmatprep.mubr.bf16.mxu0 %v373
      %439 = vmatmul.mubr.bf16.gmra.mrb[0].mxu0 %v291
      %v440 = vpop.f32.mrb[0].mxu0
      %v441 = vadd.f32 0.0, %v440
      %v442 = vpop.f32.mrb[0].mxu0
      %v443 = vpop.f32.mrb[0].mxu0
      %v444 = vadd.f32 0.0, %v443
      %v445 = vpop.f32.mrb[0].mxu0
      %446 = vmatprep.mubr.bf16.mxu0 %v376
      %447 = vmatmul.mubr.bf16.gmra.mrb[0].mxu0 %v293
      %v448 = vpop.f32.mrb[0].mxu0
      %v449 = vadd.f32 0.0, %v448
      %v450 = vpop.f32.mrb[0].mxu0
      %v451 = vpop.f32.mrb[0].mxu0
      %v452 = vadd.f32 0.0, %v451
      %v453 = vpop.f32.mrb[0].mxu0
      %454 = vmatprep.mubr.bf16.mxu0 %v379
      %455 = vmatmul.mubr.bf16.gmra.mrb[0].mxu0 %v295
      %v456 = vpop.f32.mrb[0].mxu0
      %v457 = vadd.f32 0.0, %v456
      %v458 = vpop.f32.mrb[0].mxu0
      %v459 = vpop.f32.mrb[0].mxu0
      %v460 = vadd.f32 0.0, %v459
      %v461 = vpop.f32.mrb[0].mxu0
      %462 = vmatprep.mubr.bf16.mxu0 %v382
      %463 = vmatmul.mubr.bf16.gmra.mrb[0].mxu0 %v297
      %v464 = vpop.f32.mrb[0].mxu0
      %v465 = vadd.f32 0.0, %v464
      %v466 = vpop.f32.mrb[0].mxu0
      %v467 = vpop.f32.mrb[0].mxu0
      %v468 = vadd.f32 0.0, %v467
      %v469 = vpop.f32.mrb[0].mxu0
      %470 = vmatprep.mubr.bf16.mxu0 %v385
      %471 = vmatmul.mubr.bf16.gmra.mrb[0].mxu0 %v299
      %v472 = vpop.f32.mrb[0].mxu0
      %v473 = vadd.f32 0.0, %v472
      %v474 = vpop.f32.mrb[0].mxu0
      %v475 = vpop.f32.mrb[0].mxu0
      %v476 = vadd.f32 0.0, %v475
      %v477 = vpop.f32.mrb[0].mxu0
      %478 = vmatprep.mubr.bf16.mxu0 %v388
      %479 = vmatmul.mubr.bf16.gmra.mrb[0].mxu0 %v301
      %v480 = vpop.f32.mrb[0].mxu0
      %v481 = vadd.f32 0.0, %v480
      %v482 = vpop.f32.mrb[0].mxu0
      %v483 = vpop.f32.mrb[0].mxu0
      %v484 = vadd.f32 0.0, %v483
      %v485 = vpop.f32.mrb[0].mxu0
      %486 = vdwg.mxu0
      %v487 = vld [vmem:[%s2] sm:$0x1]
      %v489 = vlaneseq
      %v490 = vshrl.u32 %v489, 7
      %v491 = vsub.s32 0, %v490
      %v492 = vrot.slane %v487, %v491
      %v494 = vmul.f32 %v425, %v492
      %v495 = vmul.f32 %v428, %v492
      %v496 = vmul.f32 %v433, %v492
      %v497 = vmul.f32 %v436, %v492
      %v498 = vmul.f32 %v441, %v492
      %v499 = vmul.f32 %v444, %v492
      %v500 = vmul.f32 %v449, %v492
      %v501 = vmul.f32 %v452, %v492
      %v502 = vmul.f32 %v457, %v492
      %v503 = vmul.f32 %v460, %v492
      %v504 = vmul.f32 %v465, %v492
      %v505 = vmul.f32 %v468, %v492
      %v506 = vmul.f32 %v473, %v492
      %v507 = vmul.f32 %v476, %v492
      %v508 = vmul.f32 %v481, %v492
      %v509 = vmul.f32 %v484, %v492
      %v510 = vld [vmem:[%s3] sm:$0x1]
      %v512 = vlaneseq
      %v513 = vshrl.u32 %v512, 7
      %v514 = vsub.s32 0, %v513
      %v515 = vrot.slane %v510, %v514
      %v517 = vadd.f32 %v494, %v515
      %v518 = vadd.f32 %v495, %v515
      %v519 = vadd.f32 %v496, %v515
      %v520 = vadd.f32 %v497, %v515
      %v521 = vadd.f32 %v498, %v515
      %v522 = vadd.f32 %v499, %v515
      %v523 = vadd.f32 %v500, %v515
      %v524 = vadd.f32 %v501, %v515
      %v525 = vadd.f32 %v502, %v515
      %v526 = vadd.f32 %v503, %v515
      %v527 = vadd.f32 %v504, %v515
      %v528 = vadd.f32 %v505, %v515
      %v529 = vadd.f32 %v506, %v515
      %v530 = vadd.f32 %v507, %v515
      %v531 = vadd.f32 %v508, %v515
      %v532 = vadd.f32 %v509, %v515
      %v533 = vmax.f32 %v517, 0.0
      %v534 = vmax.f32 %v518, 0.0
      %v535 = vmax.f32 %v519, 0.0
      %v536 = vmax.f32 %v520, 0.0
      %v537 = vmax.f32 %v521, 0.0
      %v538 = vmax.f32 %v522, 0.0
      %v539 = vmax.f32 %v523, 0.0
      %v540 = vmax.f32 %v524, 0.0
      %v541 = vmax.f32 %v525, 0.0
      %v542 = vmax.f32 %v526, 0.0
      %v543 = vmax.f32 %v527, 0.0
      %v544 = vmax.f32 %v528, 0.0
      %v545 = vmax.f32 %v529, 0.0
      %v546 = vmax.f32 %v530, 0.0
      %v547 = vmax.f32 %v531, 0.0
      %v548 = vmax.f32 %v532, 0.0
      %v549 = vpack.c.bf16 %v534, %v533
      %v550 = vpack.c.bf16 %v536, %v535
      %v551 = vpack.c.bf16 %v538, %v537
      %v552 = vpack.c.bf16 %v540, %v539
      %v553 = vpack.c.bf16 %v542, %v541
      %v554 = vpack.c.bf16 %v544, %v543
      %v555 = vpack.c.bf16 %v546, %v545
      %v556 = vpack.c.bf16 %v548, %v547
      %v565 = vunpack.c.l.b16 %v549
      %v566 = vunpack.c.h.b16 %v549
      %v567 = vunpack.c.l.b16 %v550
      %v568 = vunpack.c.h.b16 %v550
      %v569 = vunpack.c.l.b16 %v551
      %v570 = vunpack.c.h.b16 %v551
      %v571 = vunpack.c.l.b16 %v552
      %v572 = vunpack.c.h.b16 %v552
      %v573 = vunpack.c.l.b16 %v553
      %v574 = vunpack.c.h.b16 %v553
      %v575 = vunpack.c.l.b16 %v554
      %v576 = vunpack.c.h.b16 %v554
      %v577 = vunpack.c.l.b16 %v555
      %v578 = vunpack.c.h.b16 %v555
      %v579 = vunpack.c.l.b16 %v556
      %v580 = vunpack.c.h.b16 %v556
      %v581 = vpack.c.b16 %v565, %v565
      %v582 = vpack.c.b16 %v566, %v566
      %v583 = vpack.c.b16 %v567, %v567
      %v584 = vpack.c.b16 %v568, %v568
      %v585 = vpack.c.b16 %v569, %v569
      %v586 = vpack.c.b16 %v570, %v570
      %v587 = vpack.c.b16 %v571, %v571
      %v588 = vpack.c.b16 %v572, %v572
      %v589 = vpack.c.b16 %v573, %v573
      %v590 = vpack.c.b16 %v574, %v574
      %v591 = vpack.c.b16 %v575, %v575
      %v592 = vpack.c.b16 %v576, %v576
      %v593 = vpack.c.b16 %v577, %v577
      %v594 = vpack.c.b16 %v578, %v578
      %v595 = vpack.c.b16 %v579, %v579
      %v596 = vpack.c.b16 %v580, %v580
      %613 = vst [vmem:[%s202] sm:$0xf] %v581
      %614 = vst [vmem:[%s202 + $0x4] sm:$0xf] %v582
      %615 = vst [vmem:[%s202 + $0x8] sm:$0xf] %v583
      %616 = vst [vmem:[%s202 + $0xc] sm:$0xf] %v584
      %617 = vst [vmem:[%s202 + $0x10] sm:$0xf] %v585
      %618 = vst [vmem:[%s202 + $0x14] sm:$0xf] %v586
      %619 = vst [vmem:[%s202 + $0x18] sm:$0xf] %v587
      %620 = vst [vmem:[%s202 + $0x1c] sm:$0xf] %v588
      %621 = vst [vmem:[%s202 + $0x20] sm:$0xf] %v589
      %622 = vst [vmem:[%s202 + $0x24] sm:$0xf] %v590
      %623 = vst [vmem:[%s202 + $0x28] sm:$0xf] %v591
      %624 = vst [vmem:[%s202 + $0x2c] sm:$0xf] %v592
      %625 = vst [vmem:[%s202 + $0x30] sm:$0xf] %v593
      %626 = vst [vmem:[%s202 + $0x34] sm:$0xf] %v594
      %627 = vst [vmem:[%s202 + $0x38] sm:$0xf] %v595
      %628 = vst [vmem:[%s202 + $0x3c] sm:$0xf] %v596
      %s629 = smul.u32 16, %s15
      %p630 = scmp.lt.s32.totalorder %s629, 63
      %s631 = scalar_select %p630, %s629, 63
      %s632 = smul.addr %s631, 4
      %s633 = scalar_lea.vmem %s4, %s632
      // Predicated region
      $region37: #{resnet_forward.9} parent=35 // pred_check
        %p634 = pneg %p122
      $region38: #{resnet_forward.9} parent=35 // pred_check_branch
        %636 = sbr.rel (%p634) target = $region40
      $region39: #{resnet_forward.9} parent=35 // pred_region
        %s637 = smul.u32 16, %s15
      $region40: #{resnet_forward.9} parent=35 // pred_fallthru
        _
    $region36: #{resnet_forward.9} parent=5 // pred_fallthru
      _
    %p638 = scmp.le.s32.totalorder 2, %s10
    // Predicated region
    $region41: #{resnet_forward.9} parent=5 // pred_check
      %p639 = pneg %p638
    $region42: #{resnet_forward.9} parent=5 // pred_check_branch
      %641 = sbr.rel (%p639) target = $region44
    $region43: #{resnet_forward.9} parent=5 // pred_region
      %s642 = ssub.s32 %s10, 2
      // Predicated region
      $region45: #{resnet_forward.9} parent=43 // pred_check
        %p643 = pneg %p128
      $region46: #{resnet_forward.9} parent=43 // pred_check_branch
        %645 = sbr.rel (%p643) target = $region48
      $region47: #{resnet_forward.9} parent=43 // pred_region
        %s646 = smul.u32 16, %s16
        %p647 = scmp.lt.s32.totalorder %s646, 63
        %s648 = scalar_select %p647, %s646, 63
        %s649 = smul.addr %s648, 4
        %s650 = scalar_lea.vmem %s4, %s649
      $region48: #{resnet_forward.9} parent=43 // pred_fallthru
        _
    $region44: #{resnet_forward.9} parent=5 // pred_fallthru
      _
  $region6: #{resnet_forward.9} parent=0 // loop_footer
    %s14 = sadd.s32 1, %s10
  $region7: #{resnet_forward.9} parent=0 // loop_footer_branch
    %9 = sbr.rel target = $region3
  $region8: #{resnet_forward.9} parent=0 // loop_exit
    _

// kernel: resnet_forward.10
$region0: #{resnet_forward.10}
  #allocation0 [shape = 'u32[]', space=smem, size = 0x4, offset = 0x4, fixed_abs, tag = 'smem constant byte address 0x4 - core index']
  #allocation1 [shape = 'u32[144,128]{1,0:T(1,128)}', space=vmem, size = 0x12000, scoped, tag = 'internal scratch']
  %s0 = inlined_call_operand.vmem [shape: bf16[512,144], index: 0, kind: input, shape index: {}]
  %s1 = inlined_call_operand.vmem [shape: bf16[144,128], index: 1, kind: input, shape index: {}]
  %s2 = inlined_call_operand.vmem [shape: f32[1,128], index: 2, kind: input, shape index: {}]
  %s3 = inlined_call_operand.vmem [shape: f32[1,128], index: 3, kind: input, shape index: {}, may-alias: {3,6}]
  %s4 = inlined_call_operand.vmem [shape: bf16[512,128], index: 4, kind: input, shape index: {}]
  %s5 = inlined_call_operand.vmem [shape: f32[1,128], index: 5, kind: input, shape index: {}]
  %s6 = inlined_call_operand.vmem [shape: f32[1,128], index: 6, kind: input, shape index: {}, may-alias: {3,6}]
  %s7 = inlined_call_operand.vmem [shape: bf16[512,128], index: 7, kind: output, shape index: {}]
  %s8 = sld [smem:[#allocation0]]
  $region61: #{resnet_forward.10} parent=0
    _
  %s10 = ssub.s32 1, %s8
  %s11 = scalar_select 0, %s10, %s8
  loop: start=0, step=1, limit=6
  $region2: #{resnet_forward.10} parent=0 // loop_pre_header
    _
  $region3: #{resnet_forward.10} parent=0 // loop_header
    %s13 = sphi 0, %s17
    %p14 = scmp.ge.s32.totalorder %s13, 6
    %s23 = sphi 0, %s25
    %s26 = sphi 0, %s23
    %s27 = sphi 0, %s26
    %s43 = sphi 0, %s27
    %s47 = sphi 0, %s47
    %s49 = sphi 0, %s47
    %s50 = sphi 0, %s49
    %s64 = sphi 0, %s50
    %s68 = sphi 0, %s68
    %s70 = sphi 0, %s68
    %s71 = sphi 0, %s70
    %s85 = sphi 0, %s71
    %s89 = sphi 0, %s89
    %s91 = sphi 0, %s89
    %s92 = sphi 0, %s91
    %s106 = sphi 0, %s92
    %s112 = sphi 0, %s114
    %s115 = sphi 0, %s112
    %s116 = sphi 0, %s115
    %s132 = sphi 0, %s116
    %s136 = sphi 0, %s136
    %s138 = sphi 0, %s136
    %s139 = sphi 0, %s138
    %s153 = sphi 0, %s139
    %s157 = sphi 0, %s157
    %s159 = sphi 0, %s157
    %s160 = sphi 0, %s159
    %s174 = sphi 0, %s160
    %s180 = sphi 0, %s182
    %s183 = sphi 0, %s180
    %s184 = sphi 0, %s183
    %s200 = sphi 0, %s184
  $region4: #{resnet_forward.10} parent=0 // loop_header_branch
    %16 = sbr.rel (%p14) target = $region8
  $region5: #{resnet_forward.10} parent=0 // loop_body
    %s18 = ssub.s32 %s13, 1
    %s19 = ssub.s32 %s13, 2
    %s20 = sadd.s32 %s13, 1
    %s21 = ssub.s32 %s13, %s20
    %p22 = scmp.eq.s32.totalorder %s21, 0
    %s24 = sadd.s32 %s23, 1
    %s25 = scalar_select %p22, %s23, %s24
    %p28 = pneg %p22
    %p29 = scmp.eq.s32.totalorder %s13, 3
    %p30 = por %p28, %p29
    %p31 = scmp.ne.s32.totalorder %s23, %s26
    %p32 = scmp.eq.s32.totalorder %s13, 0
    %p33 = por %p31, %p32
    %p34 = scmp.ne.s32.totalorder %s23, %s26
    %p35 = scmp.eq.s32.totalorder %s18, 3
    %p36 = por %p34, %p35
    %p37 = scmp.ne.s32.totalorder %s26, %s27
    %p38 = scmp.eq.s32.totalorder %s18, 0
    %p39 = por %p37, %p38
    %p40 = scmp.ne.s32.totalorder %s26, %s27
    %p41 = scmp.eq.s32.totalorder %s19, 3
    %p42 = por %p40, %p41
    %p44 = scmp.ne.s32.totalorder %s27, %s43
    %p45 = scmp.eq.s32.totalorder %s19, 0
    %p46 = por %p44, %p45
    %s48 = sadd.s32 %s47, 1
    %p51 = scmp.eq.s32.totalorder %s13, 3
    %p52 = scmp.ne.s32.totalorder %s47, %s49
    %p53 = scmp.eq.s32.totalorder %s13, 0
    %p54 = por %p52, %p53
    %p55 = scmp.ne.s32.totalorder %s47, %s49
    %p56 = scmp.eq.s32.totalorder %s18, 3
    %p57 = por %p55, %p56
    %p58 = scmp.ne.s32.totalorder %s49, %s50
    %p59 = scmp.eq.s32.totalorder %s18, 0
    %p60 = por %p58, %p59
    %p61 = scmp.ne.s32.totalorder %s49, %s50
    %p62 = scmp.eq.s32.totalorder %s19, 3
    %p63 = por %p61, %p62
    %p65 = scmp.ne.s32.totalorder %s50, %s64
    %p66 = scmp.eq.s32.totalorder %s19, 0
    %p67 = por %p65, %p66
    %s69 = sadd.s32 %s68, 1
    %p72 = scmp.eq.s32.totalorder %s13, 3
    %p73 = scmp.ne.s32.totalorder %s68, %s70
    %p74 = scmp.eq.s32.totalorder %s13, 0
    %p75 = por %p73, %p74
    %p76 = scmp.ne.s32.totalorder %s68, %s70
    %p77 = scmp.eq.s32.totalorder %s18, 3
    %p78 = por %p76, %p77
    %p79 = scmp.ne.s32.totalorder %s70, %s71
    %p80 = scmp.eq.s32.totalorder %s18, 0
    %p81 = por %p79, %p80
    %p82 = scmp.ne.s32.totalorder %s70, %s71
    %p83 = scmp.eq.s32.totalorder %s19, 3
    %p84 = por %p82, %p83
    %p86 = scmp.ne.s32.totalorder %s71, %s85
    %p87 = scmp.eq.s32.totalorder %s19, 0
    %p88 = por %p86, %p87
    %s90 = sadd.s32 %s89, 1
    %p93 = scmp.eq.s32.totalorder %s13, 3
    %p94 = scmp.ne.s32.totalorder %s89, %s91
    %p95 = scmp.eq.s32.totalorder %s13, 0
    %p96 = por %p94, %p95
    %p97 = scmp.ne.s32.totalorder %s89, %s91
    %p98 = scmp.eq.s32.totalorder %s18, 3
    %p99 = por %p97, %p98
    %p100 = scmp.ne.s32.totalorder %s91, %s92
    %p101 = scmp.eq.s32.totalorder %s18, 0
    %p102 = por %p100, %p101
    %p103 = scmp.ne.s32.totalorder %s91, %s92
    %p104 = scmp.eq.s32.totalorder %s19, 3
    %p105 = por %p103, %p104
    %p107 = scmp.ne.s32.totalorder %s92, %s106
    %p108 = scmp.eq.s32.totalorder %s19, 0
    %p109 = por %p107, %p108
    %s110 = ssub.s32 %s13, %s20
    %p111 = scmp.eq.s32.totalorder %s110, 0
    %s113 = sadd.s32 %s112, 1
    %s114 = scalar_select %p111, %s112, %s113
    %p117 = pneg %p111
    %p118 = scmp.eq.s32.totalorder %s13, 3
    %p119 = por %p117, %p118
    %p120 = scmp.ne.s32.totalorder %s112, %s115
    %p121 = scmp.eq.s32.totalorder %s13, 0
    %p122 = por %p120, %p121
    %p123 = scmp.ne.s32.totalorder %s112, %s115
    %p124 = scmp.eq.s32.totalorder %s18, 3
    %p125 = por %p123, %p124
    %p126 = scmp.ne.s32.totalorder %s115, %s116
    %p127 = scmp.eq.s32.totalorder %s18, 0
    %p128 = por %p126, %p127
    %p129 = scmp.ne.s32.totalorder %s115, %s116
    %p130 = scmp.eq.s32.totalorder %s19, 3
    %p131 = por %p129, %p130
    %p133 = scmp.ne.s32.totalorder %s116, %s132
    %p134 = scmp.eq.s32.totalorder %s19, 0
    %p135 = por %p133, %p134
    %s137 = sadd.s32 %s136, 1
    %p140 = scmp.eq.s32.totalorder %s13, 3
    %p141 = scmp.ne.s32.totalorder %s136, %s138
    %p142 = scmp.eq.s32.totalorder %s13, 0
    %p143 = por %p141, %p142
    %p144 = scmp.ne.s32.totalorder %s136, %s138
    %p145 = scmp.eq.s32.totalorder %s18, 3
    %p146 = por %p144, %p145
    %p147 = scmp.ne.s32.totalorder %s138, %s139
    %p148 = scmp.eq.s32.totalorder %s18, 0
    %p149 = por %p147, %p148
    %p150 = scmp.ne.s32.totalorder %s138, %s139
    %p151 = scmp.eq.s32.totalorder %s19, 3
    %p152 = por %p150, %p151
    %p154 = scmp.ne.s32.totalorder %s139, %s153
    %p155 = scmp.eq.s32.totalorder %s19, 0
    %p156 = por %p154, %p155
    %s158 = sadd.s32 %s157, 1
    %p161 = scmp.eq.s32.totalorder %s13, 3
    %p162 = scmp.ne.s32.totalorder %s157, %s159
    %p163 = scmp.eq.s32.totalorder %s13, 0
    %p164 = por %p162, %p163
    %p165 = scmp.ne.s32.totalorder %s157, %s159
    %p166 = scmp.eq.s32.totalorder %s18, 3
    %p167 = por %p165, %p166
    %p168 = scmp.ne.s32.totalorder %s159, %s160
    %p169 = scmp.eq.s32.totalorder %s18, 0
    %p170 = por %p168, %p169
    %p171 = scmp.ne.s32.totalorder %s159, %s160
    %p172 = scmp.eq.s32.totalorder %s19, 3
    %p173 = por %p171, %p172
    %p175 = scmp.ne.s32.totalorder %s160, %s174
    %p176 = scmp.eq.s32.totalorder %s19, 0
    %p177 = por %p175, %p176
    %s178 = ssub.s32 %s13, %s20
    %p179 = scmp.eq.s32.totalorder %s178, 0
    %s181 = sadd.s32 %s180, 1
    %s182 = scalar_select %p179, %s180, %s181
    %p185 = pneg %p179
    %p186 = scmp.eq.s32.totalorder %s13, 3
    %p187 = por %p185, %p186
    %p188 = scmp.ne.s32.totalorder %s180, %s183
    %p189 = scmp.eq.s32.totalorder %s13, 0
    %p190 = por %p188, %p189
    %p191 = scmp.ne.s32.totalorder %s180, %s183
    %p192 = scmp.eq.s32.totalorder %s18, 3
    %p193 = por %p191, %p192
    %p194 = scmp.ne.s32.totalorder %s183, %s184
    %p195 = scmp.eq.s32.totalorder %s18, 0
    %p196 = por %p194, %p195
    %p197 = scmp.ne.s32.totalorder %s183, %s184
    %p198 = scmp.eq.s32.totalorder %s19, 3
    %p199 = por %p197, %p198
    %p201 = scmp.ne.s32.totalorder %s184, %s200
    %p202 = scmp.eq.s32.totalorder %s19, 0
    %p203 = por %p201, %p202
    %p204 = scmp.le.s32.totalorder 1, %s13
    %p205 = scmp.lt.s32.totalorder %s13, 5
    %p206 = pnand %p204, %p205
    %p207 = pneg %p206
    // Predicated region
    $region9: #{resnet_forward.10} parent=5 // pred_check
      _
    $region10: #{resnet_forward.10} parent=5 // pred_check_branch
      %209 = sbr.rel (%p206) target = $region12
    $region11: #{resnet_forward.10} parent=5 // pred_region
      %s210 = ssub.s32 %s13, 1
      // Predicated region
      $region13: #{resnet_forward.10} parent=11 // pred_check
        %p211 = pneg %p60
      $region14: #{resnet_forward.10} parent=11 // pred_check_branch
        %213 = sbr.rel (%p211) target = $region16
      $region15: #{resnet_forward.10} parent=11 // pred_region
        _
      $region16: #{resnet_forward.10} parent=11 // pred_fallthru
        _
      // Predicated region
      $region17: #{resnet_forward.10} parent=11 // pred_check
        %p214 = pneg %p81
      $region18: #{resnet_forward.10} parent=11 // pred_check_branch
        %216 = sbr.rel (%p214) target = $region20
      $region19: #{resnet_forward.10} parent=11 // pred_region
        _
      $region20: #{resnet_forward.10} parent=11 // pred_fallthru
        _
      // Predicated region
      $region21: #{resnet_forward.10} parent=11 // pred_check
        %p217 = pneg %p102
      $region22: #{resnet_forward.10} parent=11 // pred_check_branch
        %219 = sbr.rel (%p217) target = $region24
      $region23: #{resnet_forward.10} parent=11 // pred_region
        _
      $region24: #{resnet_forward.10} parent=11 // pred_fallthru
        _
      // Predicated region
      $region25: #{resnet_forward.10} parent=11 // pred_check
        %p220 = pneg %p149
      $region26: #{resnet_forward.10} parent=11 // pred_check_branch
        %222 = sbr.rel (%p220) target = $region28
      $region27: #{resnet_forward.10} parent=11 // pred_region
        _
      $region28: #{resnet_forward.10} parent=11 // pred_fallthru
        _
      // Predicated region
      $region29: #{resnet_forward.10} parent=11 // pred_check
        %p223 = pneg %p170
      $region30: #{resnet_forward.10} parent=11 // pred_check_branch
        %225 = sbr.rel (%p223) target = $region32
      $region31: #{resnet_forward.10} parent=11 // pred_region
        _
      $region32: #{resnet_forward.10} parent=11 // pred_fallthru
        _
    $region12: #{resnet_forward.10} parent=5 // pred_fallthru
      _
    %p226 = scmp.lt.s32.totalorder %s13, 4
    // Predicated region
    $region33: #{resnet_forward.10} parent=5 // pred_check
      %p227 = pneg %p226
    $region34: #{resnet_forward.10} parent=5 // pred_check_branch
      %229 = sbr.rel (%p227) target = $region36
    $region35: #{resnet_forward.10} parent=5 // pred_region
      // Predicated region
      $region37: #{resnet_forward.10} parent=35 // pred_check
        %p230 = pneg %p33
      $region38: #{resnet_forward.10} parent=35 // pred_check_branch
        %232 = sbr.rel (%p230) target = $region40
      $region39: #{resnet_forward.10} parent=35 // pred_region
        %s233 = smul.u32 16, %s13
        %p234 = scmp.lt.s32.totalorder %s233, 63
        %s235 = scalar_select %p234, %s233, 63
        %s236 = smul.addr %s235, 2
        %s237 = smul.addr %s236, 4
        %s238 = scalar_lea.vmem %s0, %s237
        %s239 = smul.u32 16, %s13
      $region40: #{resnet_forward.10} parent=35 // pred_fallthru
        _
      // Predicated region
      $region41: #{resnet_forward.10} parent=35 // pred_check
        %p240 = pneg %p122
      $region42: #{resnet_forward.10} parent=35 // pred_check_branch
        %242 = sbr.rel (%p240) target = $region44
      $region43: #{resnet_forward.10} parent=35 // pred_region
        %s243 = smul.u32 16, %s13
        %p244 = scmp.lt.s32.totalorder %s243, 63
        %s245 = scalar_select %p244, %s243, 63
        %s246 = smul.addr %s245, 4
        %s247 = scalar_lea.vmem %s4, %s246
        %s248 = smul.u32 16, %s13
      $region44: #{resnet_forward.10} parent=35 // pred_fallthru
        _
    $region36: #{resnet_forward.10} parent=5 // pred_fallthru
      _
    %p249 = scmp.le.s32.totalorder 1, %s13
    %p250 = scmp.lt.s32.totalorder %s13, 5
    %p251 = pnand %p249, %p250
    %p252 = pneg %p251
    // Predicated region
    $region45: #{resnet_forward.10} parent=5 // pred_check
      _
    $region46: #{resnet_forward.10} parent=5 // pred_check_branch
      %254 = sbr.rel (%p251) target = $region48
    $region47: #{resnet_forward.10} parent=5 // pred_region
      %s255 = ssub.s32 %s13, 1
      %s256 = smul.u32 16, %s18
      %p257 = scmp.lt.s32.totalorder %s256, 63
      %s258 = scalar_select %p257, %s256, 63
      %s259 = smul.addr %s258, 2
      %s260 = smul.addr %s259, 4
      %s261 = scalar_lea.vmem %s0, %s260
      %p262 = pneg %p39
      %p263 = pneg %p36
      %p264 = pneg %p60
      %p265 = pneg %p57
      %p266 = pneg %p81
      %p267 = pneg %p78
      %p268 = pneg %p102
      %p269 = pneg %p99
      %s270 = smul.u32 16, %s18
      %p271 = scmp.lt.s32.totalorder %s270, 63
      %s272 = scalar_select %p271, %s270, 63
      %s273 = smul.addr %s272, 4
      %s274 = scalar_lea.vmem %s4, %s273
      %p275 = pneg %p128
      %p276 = pneg %p125
      %p277 = pneg %p149
      %p278 = pneg %p146
      %p279 = pneg %p170
      %p280 = pneg %p167
      %p281 = pneg %p196
      %p282 = pneg %p193
      %s283 = smul.u32 16, %s18
      %p284 = scmp.lt.s32.totalorder %s283, 63
      %s285 = scalar_select %p284, %s283, 63
      %s286 = smul.addr %s285, 4
      %s287 = scalar_lea.vmem %s7, %s286
      %s288 = smul.u32 16, %s18
      %p289 = scmp.lt.s32.totalorder %s288, 63
      %s290 = scalar_select %p289, %s288, 63
      %s291 = smul.addr %s290, 2
      %s292 = smul.addr %s291, 4
      %s293 = scalar_lea.vmem %s0, %s292
      %s294 = smul.u32 16, %s18
      %s295 = smul.u32 16, %s18
      %p296 = scmp.lt.s32.totalorder %s295, 63
      %s297 = scalar_select %p296, %s295, 63
      %s298 = smul.addr %s297, 4
      %s299 = scalar_lea.vmem %s4, %s298
      %s300 = smul.u32 16, %s18
      %s301 = smul.u32 16, %s18
      %p302 = scmp.lt.s32.totalorder %s301, 63
      %s303 = scalar_select %p302, %s301, 63
      %s304 = smul.addr %s303, 4
      %s305 = scalar_lea.vmem %s7, %s304
      %s306 = smul.u32 16, %s18
      %v308 = vld [vmem:[%s293] sm:$0xff]
      %v309 = vld [vmem:[%s293 + $0x8] sm:$0xff]
      %v310 = vld [vmem:[%s293 + $0x10] sm:$0xff]
      %v311 = vld [vmem:[%s293 + $0x18] sm:$0xff]
      %v312 = vld [vmem:[%s293 + $0x20] sm:$0xff]
      %v313 = vld [vmem:[%s293 + $0x28] sm:$0xff]
      %v314 = vld [vmem:[%s293 + $0x30] sm:$0xff]
      %v315 = vld [vmem:[%s293 + $0x38] sm:$0xff]
      %v316 = vld [vmem:[%s293 + $0x40] sm:$0xff]
      %v317 = vld [vmem:[%s293 + $0x48] sm:$0xff]
      %v318 = vld [vmem:[%s293 + $0x50] sm:$0xff]
      %v319 = vld [vmem:[%s293 + $0x58] sm:$0xff]
      %v320 = vld [vmem:[%s293 + $0x60] sm:$0xff]
      %v321 = vld [vmem:[%s293 + $0x68] sm:$0xff]
      %v322 = vld [vmem:[%s293 + $0x70] sm:$0xff]
      %v323 = vld [vmem:[%s293 + $0x78] sm:$0xff]
      %v324 = vld [vmem:[%s1] sm:$0xf]
      %v325 = vld [vmem:[%s1 + $0x4] sm:$0xf]
      %v326 = vld [vmem:[%s1 + $0x8] sm:$0xf]
      %v327 = vld [vmem:[%s1 + $0xc] sm:$0xf]
      %v328 = vld [vmem:[%s1 + $0x10] sm:$0xf]
      %v329 = vld [vmem:[%s1 + $0x14] sm:$0xf]
      %v330 = vld [vmem:[%s1 + $0x18] sm:$0xf]
      %v331 = vld [vmem:[%s1 + $0x1c] sm:$0xf]
      %v332 = vld [vmem:[%s1 + $0x20] sm:$0xf]
      %v333 = vld [vmem:[%s1 + $0x24] sm:$0xf]
      %v334 = vld [vmem:[%s1 + $0x28] sm:$0xf]
      %v335 = vld [vmem:[%s1 + $0x2c] sm:$0xf]
      %v336 = vld [vmem:[%s1 + $0x30] sm:$0xf]
      %v337 = vld [vmem:[%s1 + $0x34] sm:$0xf]
      %v338 = vld [vmem:[%s1 + $0x38] sm:$0xf]
      %v339 = vld [vmem:[%s1 + $0x3c] sm:$0xf]
      %v340 = vld [vmem:[%s1 + $0x40] sm:$0xf]
      %v341 = vld [vmem:[%s1 + $0x44] sm:$0xf]
      %v358 = vunpack.c.l.b16 %v308
      %v359 = vunpack.c.h.b16 %v308
      %v360 = vunpack.c.l.b16 %v309
      %v361 = vunpack.c.h.b16 %v309
      %v362 = vunpack.c.l.b16 %v310
      %v363 = vunpack.c.h.b16 %v310
      %v364 = vunpack.c.l.b16 %v311
      %v365 = vunpack.c.h.b16 %v311
      %v366 = vunpack.c.l.b16 %v312
      %v367 = vunpack.c.h.b16 %v312
      %v368 = vunpack.c.l.b16 %v313
      %v369 = vunpack.c.h.b16 %v313
      %v370 = vunpack.c.l.b16 %v314
      %v371 = vunpack.c.h.b16 %v314
      %v372 = vunpack.c.l.b16 %v315
      %v373 = vunpack.c.h.b16 %v315
      %v374 = vunpack.c.l.b16 %v316
      %v375 = vunpack.c.h.b16 %v316
      %v376 = vunpack.c.l.b16 %v317
      %v377 = vunpack.c.h.b16 %v317
      %v378 = vunpack.c.l.b16 %v318
      %v379 = vunpack.c.h.b16 %v318
      %v380 = vunpack.c.l.b16 %v319
      %v381 = vunpack.c.h.b16 %v319
      %v382 = vunpack.c.l.b16 %v320
      %v383 = vunpack.c.h.b16 %v320
      %v384 = vunpack.c.l.b16 %v321
      %v385 = vunpack.c.h.b16 %v321
      %v386 = vunpack.c.l.b16 %v322
      %v387 = vunpack.c.h.b16 %v322
      %v388 = vunpack.c.l.b16 %v323
      %v389 = vunpack.c.h.b16 %v323
      %v390 = vpack.c.b16 %v360, %v358
      %v391 = vpack.c.b16 %v361, %v359
      %v392 = vpack.c.b16 %v364, %v362
      %v393 = vpack.c.b16 %v365, %v363
      %v394 = vpack.c.b16 %v368, %v366
      %v395 = vpack.c.b16 %v369, %v367
      %v396 = vpack.c.b16 %v372, %v370
      %v397 = vpack.c.b16 %v373, %v371
      %v398 = vpack.c.b16 %v376, %v374
      %v399 = vpack.c.b16 %v377, %v375
      %v400 = vpack.c.b16 %v380, %v378
      %v401 = vpack.c.b16 %v381, %v379
      %v402 = vpack.c.b16 %v384, %v382
      %v403 = vpack.c.b16 %v385, %v383
      %v404 = vpack.c.b16 %v388, %v386
      %v405 = vpack.c.b16 %v389, %v387
      %v432 = vunpack.c.l.b16 %v324
      %v433 = vunpack.c.l.b16 %v325
      %v434 = vunpack.c.l.b16 %v326
      %v435 = vunpack.c.l.b16 %v327
      %v436 = vunpack.c.l.b16 %v328
      %v437 = vunpack.c.l.b16 %v329
      %v438 = vunpack.c.l.b16 %v330
      %v439 = vunpack.c.l.b16 %v331
      %v440 = vunpack.c.l.b16 %v332
      %v441 = vunpack.c.l.b16 %v333
      %v442 = vunpack.c.l.b16 %v334
      %v443 = vunpack.c.l.b16 %v335
      %v444 = vunpack.c.l.b16 %v336
      %v445 = vunpack.c.l.b16 %v337
      %v446 = vunpack.c.l.b16 %v338
      %v447 = vunpack.c.l.b16 %v339
      %v448 = vunpack.c.l.b16 %v340
      %v449 = vunpack.c.l.b16 %v341
      %v450 = vpack.c.b16 %v433, %v432
      %v451 = vpack.c.b16 %v435, %v434
      %v452 = vpack.c.b16 %v437, %v436
      %v453 = vpack.c.b16 %v439, %v438
      %v454 = vpack.c.b16 %v441, %v440
      %v455 = vpack.c.b16 %v443, %v442
      %v456 = vpack.c.b16 %v445, %v444
      %v457 = vpack.c.b16 %v447, %v446
      %v458 = vpack.c.b16 %v449, %v448
      %vm468 = vcmask 130048
      %v470 = vsel %vm468, %v391, 0
      %v473 = vsel %vm468, %v393, 0
      %v476 = vsel %vm468, %v395, 0
      %v479 = vsel %vm468, %v397, 0
      %v482 = vsel %vm468, %v399, 0
      %v485 = vsel %vm468, %v401, 0
      %v488 = vsel %vm468, %v403, 0
      %v491 = vsel %vm468, %v405, 0
      %493 = vmatprep.subr.bf16.mxu0 0
      %494 = vmatpush1.bf16.msra.mxu0 %v450
      %495 = vmatprep.subr.bf16.mxu0 0
      %496 = vmatpush1.bf16.msra.mxu0 %v451
      %497 = vmatprep.subr.bf16.mxu0 0
      %498 = vmatpush1.bf16.msra.mxu0 %v452
      %499 = vmatprep.subr.bf16.mxu0 0
      %500 = vmatpush1.bf16.msra.mxu0 %v453
      %501 = vmatprep.subr.bf16.mxu0 0
      %502 = vmatpush1.bf16.msra.mxu0 %v454
      %503 = vmatprep.subr.bf16.mxu0 0
      %504 = vmatpush1.bf16.msra.mxu0 %v455
      %505 = vmatprep.subr.bf16.mxu0 0
      %506 = vmatpush1.bf16.msra.mxu0 %v456
      %507 = vmatprep.subr.bf16.mxu0 0
      %508 = vmatpush1.bf16.msra.mxu0 %v457
      %509 = vmatprep.subr.bf16.mxu0 0
      %510 = vmatpush1.bf16.msra.mxu0 %v458
      %511 = vmatprep.subr.bf16.mxu0 0
      %512 = vmatpush1.bf16.msra.mxu0 0
      %513 = vmatprep.subr.bf16.mxu0 0
      %514 = vmatpush1.bf16.msra.mxu0 0
      %515 = vmatprep.subr.bf16.mxu0 0
      %516 = vmatpush1.bf16.msra.mxu0 0
      %517 = vmatprep.subr.bf16.mxu0 0
      %518 = vmatpush1.bf16.msra.mxu0 0
      %519 = vmatprep.subr.bf16.mxu0 0
      %520 = vmatpush1.bf16.msra.mxu0 0
      %521 = vmatprep.subr.bf16.mxu0 0
      %522 = vmatpush1.bf16.msra.mxu0 0
      %523 = vmatprep.subr.bf16.mxu0 0
      %524 = vmatpush1.bf16.msra.mxu0 0
      %525 = vmatprep.mubr.bf16.mxu0 %v470
      %526 = vmatmul.mubr.bf16.gmra.mrb[0].mxu0 %v390
      %v527 = vpop.f32.mrb[0].mxu0
      %v528 = vadd.f32 0.0, %v527
      %v529 = vpop.f32.mrb[0].mxu0
      %v530 = vpop.f32.mrb[0].mxu0
      %v531 = vadd.f32 0.0, %v530
      %v532 = vpop.f32.mrb[0].mxu0
      %533 = vmatprep.mubr.bf16.mxu0 %v473
      %534 = vmatmul.mubr.bf16.gmra.mrb[0].mxu0 %v392
      %v535 = vpop.f32.mrb[0].mxu0
      %v536 = vadd.f32 0.0, %v535
      %v537 = vpop.f32.mrb[0].mxu0
      %v538 = vpop.f32.mrb[0].mxu0
      %v539 = vadd.f32 0.0, %v538
      %v540 = vpop.f32.mrb[0].mxu0
      %541 = vmatprep.mubr.bf16.mxu0 %v476
      %542 = vmatmul.mubr.bf16.gmra.mrb[0].mxu0 %v394
      %v543 = vpop.f32.mrb[0].mxu0
      %v544 = vadd.f32 0.0, %v543
      %v545 = vpop.f32.mrb[0].mxu0
      %v546 = vpop.f32.mrb[0].mxu0
      %v547 = vadd.f32 0.0, %v546
      %v548 = vpop.f32.mrb[0].mxu0
      %549 = vmatprep.mubr.bf16.mxu0 %v479
      %550 = vmatmul.mubr.bf16.gmra.mrb[0].mxu0 %v396
      %v551 = vpop.f32.mrb[0].mxu0
      %v552 = vadd.f32 0.0, %v551
      %v553 = vpop.f32.mrb[0].mxu0
      %v554 = vpop.f32.mrb[0].mxu0
      %v555 = vadd.f32 0.0, %v554
      %v556 = vpop.f32.mrb[0].mxu0
      %557 = vmatprep.mubr.bf16.mxu0 %v482
      %558 = vmatmul.mubr.bf16.gmra.mrb[0].mxu0 %v398
      %v559 = vpop.f32.mrb[0].mxu0
      %v560 = vadd.f32 0.0, %v559
      %v561 = vpop.f32.mrb[0].mxu0
      %v562 = vpop.f32.mrb[0].mxu0
      %v563 = vadd.f32 0.0, %v562
      %v564 = vpop.f32.mrb[0].mxu0
      %565 = vmatprep.mubr.bf16.mxu0 %v485
      %566 = vmatmul.mubr.bf16.gmra.mrb[0].mxu0 %v400
      %v567 = vpop.f32.mrb[0].mxu0
      %v568 = vadd.f32 0.0, %v567
      %v569 = vpop.f32.mrb[0].mxu0
      %v570 = vpop.f32.mrb[0].mxu0
      %v571 = vadd.f32 0.0, %v570
      %v572 = vpop.f32.mrb[0].mxu0
      %573 = vmatprep.mubr.bf16.mxu0 %v488
      %574 = vmatmul.mubr.bf16.gmra.mrb[0].mxu0 %v402
      %v575 = vpop.f32.mrb[0].mxu0
      %v576 = vadd.f32 0.0, %v575
      %v577 = vpop.f32.mrb[0].mxu0
      %v578 = vpop.f32.mrb[0].mxu0
      %v579 = vadd.f32 0.0, %v578
      %v580 = vpop.f32.mrb[0].mxu0
      %581 = vmatprep.mubr.bf16.mxu0 %v491
      %582 = vmatmul.mubr.bf16.gmra.mrb[0].mxu0 %v404
      %v583 = vpop.f32.mrb[0].mxu0
      %v584 = vadd.f32 0.0, %v583
      %v585 = vpop.f32.mrb[0].mxu0
      %v586 = vpop.f32.mrb[0].mxu0
      %v587 = vadd.f32 0.0, %v586
      %v588 = vpop.f32.mrb[0].mxu0
      %589 = vdwg.mxu0
      %v590 = vld [vmem:[%s2] sm:$0x1]
      %v592 = vlaneseq
      %v593 = vshrl.u32 %v592, 7
      %v594 = vsub.s32 0, %v593
      %v595 = vrot.slane %v590, %v594
      %v597 = vmul.f32 %v528, %v595
      %v598 = vmul.f32 %v531, %v595
      %v599 = vmul.f32 %v536, %v595
      %v600 = vmul.f32 %v539, %v595
      %v601 = vmul.f32 %v544, %v595
      %v602 = vmul.f32 %v547, %v595
      %v603 = vmul.f32 %v552, %v595
      %v604 = vmul.f32 %v555, %v595
      %v605 = vmul.f32 %v560, %v595
      %v606 = vmul.f32 %v563, %v595
      %v607 = vmul.f32 %v568, %v595
      %v608 = vmul.f32 %v571, %v595
      %v609 = vmul.f32 %v576, %v595
      %v610 = vmul.f32 %v579, %v595
      %v611 = vmul.f32 %v584, %v595
      %v612 = vmul.f32 %v587, %v595
      %v613 = vld [vmem:[%s3] sm:$0x1]
      %v615 = vlaneseq
      %v616 = vshrl.u32 %v615, 7
      %v617 = vsub.s32 0, %v616
      %v618 = vrot.slane %v613, %v617
      %v620 = vadd.f32 %v597, %v618
      %v621 = vadd.f32 %v598, %v618
      %v622 = vadd.f32 %v599, %v618
      %v623 = vadd.f32 %v600, %v618
      %v624 = vadd.f32 %v601, %v618
      %v625 = vadd.f32 %v602, %v618
      %v626 = vadd.f32 %v603, %v618
      %v627 = vadd.f32 %v604, %v618
      %v628 = vadd.f32 %v605, %v618
      %v629 = vadd.f32 %v606, %v618
      %v630 = vadd.f32 %v607, %v618
      %v631 = vadd.f32 %v608, %v618
      %v632 = vadd.f32 %v609, %v618
      %v633 = vadd.f32 %v610, %v618
      %v634 = vadd.f32 %v611, %v618
      %v635 = vadd.f32 %v612, %v618
      %v636 = vld [vmem:[%s299] sm:$0xf]
      %v637 = vld [vmem:[%s299 + $0x4] sm:$0xf]
      %v638 = vld [vmem:[%s299 + $0x8] sm:$0xf]
      %v639 = vld [vmem:[%s299 + $0xc] sm:$0xf]
      %v640 = vld [vmem:[%s299 + $0x10] sm:$0xf]
      %v641 = vld [vmem:[%s299 + $0x14] sm:$0xf]
      %v642 = vld [vmem:[%s299 + $0x18] sm:$0xf]
      %v643 = vld [vmem:[%s299 + $0x1c] sm:$0xf]
      %v644 = vld [vmem:[%s299 + $0x20] sm:$0xf]
      %v645 = vld [vmem:[%s299 + $0x24] sm:$0xf]
      %v646 = vld [vmem:[%s299 + $0x28] sm:$0xf]
      %v647 = vld [vmem:[%s299 + $0x2c] sm:$0xf]
      %v648 = vld [vmem:[%s299 + $0x30] sm:$0xf]
      %v649 = vld [vmem:[%s299 + $0x34] sm:$0xf]
      %v650 = vld [vmem:[%s299 + $0x38] sm:$0xf]
      %v651 = vld [vmem:[%s299 + $0x3c] sm:$0xf]
      %v652 = vunpack.c.l.bf16 %v636
      %v653 = vunpack.c.l.bf16 %v637
      %v654 = vunpack.c.l.bf16 %v638
      %v655 = vunpack.c.l.bf16 %v639
      %v656 = vunpack.c.l.bf16 %v640
      %v657 = vunpack.c.l.bf16 %v641
      %v658 = vunpack.c.l.bf16 %v642
      %v659 = vunpack.c.l.bf16 %v643
      %v660 = vunpack.c.l.bf16 %v644
      %v661 = vunpack.c.l.bf16 %v645
      %v662 = vunpack.c.l.bf16 %v646
      %v663 = vunpack.c.l.bf16 %v647
      %v664 = vunpack.c.l.bf16 %v648
      %v665 = vunpack.c.l.bf16 %v649
      %v666 = vunpack.c.l.bf16 %v650
      %v667 = vunpack.c.l.bf16 %v651
      %v668 = vld [vmem:[%s5] sm:$0x1]
      %v670 = vlaneseq
      %v671 = vshrl.u32 %v670, 7
      %v672 = vsub.s32 0, %v671
      %v673 = vrot.slane %v668, %v672
      %v675 = vmul.f32 %v652, %v673
      %v676 = vmul.f32 %v653, %v673
      %v677 = vmul.f32 %v654, %v673
      %v678 = vmul.f32 %v655, %v673
      %v679 = vmul.f32 %v656, %v673
      %v680 = vmul.f32 %v657, %v673
      %v681 = vmul.f32 %v658, %v673
      %v682 = vmul.f32 %v659, %v673
      %v683 = vmul.f32 %v660, %v673
      %v684 = vmul.f32 %v661, %v673
      %v685 = vmul.f32 %v662, %v673
      %v686 = vmul.f32 %v663, %v673
      %v687 = vmul.f32 %v664, %v673
      %v688 = vmul.f32 %v665, %v673
      %v689 = vmul.f32 %v666, %v673
      %v690 = vmul.f32 %v667, %v673
      %v691 = vadd.f32 %v620, %v675
      %v692 = vadd.f32 %v621, %v676
      %v693 = vadd.f32 %v622, %v677
      %v694 = vadd.f32 %v623, %v678
      %v695 = vadd.f32 %v624, %v679
      %v696 = vadd.f32 %v625, %v680
      %v697 = vadd.f32 %v626, %v681
      %v698 = vadd.f32 %v627, %v682
      %v699 = vadd.f32 %v628, %v683
      %v700 = vadd.f32 %v629, %v684
      %v701 = vadd.f32 %v630, %v685
      %v702 = vadd.f32 %v631, %v686
      %v703 = vadd.f32 %v632, %v687
      %v704 = vadd.f32 %v633, %v688
      %v705 = vadd.f32 %v634, %v689
      %v706 = vadd.f32 %v635, %v690
      %v707 = vld [vmem:[%s6] sm:$0x1]
      %v709 = vlaneseq
      %v710 = vshrl.u32 %v709, 7
      %v711 = vsub.s32 0, %v710
      %v712 = vrot.slane %v707, %v711
      %v714 = vadd.f32 %v691, %v712
      %v715 = vadd.f32 %v692, %v712
      %v716 = vadd.f32 %v693, %v712
      %v717 = vadd.f32 %v694, %v712
      %v718 = vadd.f32 %v695, %v712
      %v719 = vadd.f32 %v696, %v712
      %v720 = vadd.f32 %v697, %v712
      %v721 = vadd.f32 %v698, %v712
      %v722 = vadd.f32 %v699, %v712
      %v723 = vadd.f32 %v700, %v712
      %v724 = vadd.f32 %v701, %v712
      %v725 = vadd.f32 %v702, %v712
      %v726 = vadd.f32 %v703, %v712
      %v727 = vadd.f32 %v704, %v712
      %v728 = vadd.f32 %v705, %v712
      %v729 = vadd.f32 %v706, %v712
      %v730 = vmax.f32 %v714, 0.0
      %v731 = vmax.f32 %v715, 0.0
      %v732 = vmax.f32 %v716, 0.0
      %v733 = vmax.f32 %v717, 0.0
      %v734 = vmax.f32 %v718, 0.0
      %v735 = vmax.f32 %v719, 0.0
      %v736 = vmax.f32 %v720, 0.0
      %v737 = vmax.f32 %v721, 0.0
      %v738 = vmax.f32 %v722, 0.0
      %v739 = vmax.f32 %v723, 0.0
      %v740 = vmax.f32 %v724, 0.0
      %v741 = vmax.f32 %v725, 0.0
      %v742 = vmax.f32 %v726, 0.0
      %v743 = vmax.f32 %v727, 0.0
      %v744 = vmax.f32 %v728, 0.0
      %v745 = vmax.f32 %v729, 0.0
      %v746 = vpack.c.bf16 %v731, %v730
      %v747 = vpack.c.bf16 %v733, %v732
      %v748 = vpack.c.bf16 %v735, %v734
      %v749 = vpack.c.bf16 %v737, %v736
      %v750 = vpack.c.bf16 %v739, %v738
      %v751 = vpack.c.bf16 %v741, %v740
      %v752 = vpack.c.bf16 %v743, %v742
      %v753 = vpack.c.bf16 %v745, %v744
      %v762 = vunpack.c.l.b16 %v746
      %v763 = vunpack.c.h.b16 %v746
      %v764 = vunpack.c.l.b16 %v747
      %v765 = vunpack.c.h.b16 %v747
      %v766 = vunpack.c.l.b16 %v748
      %v767 = vunpack.c.h.b16 %v748
      %v768 = vunpack.c.l.b16 %v749
      %v769 = vunpack.c.h.b16 %v749
      %v770 = vunpack.c.l.b16 %v750
      %v771 = vunpack.c.h.b16 %v750
      %v772 = vunpack.c.l.b16 %v751
      %v773 = vunpack.c.h.b16 %v751
      %v774 = vunpack.c.l.b16 %v752
      %v775 = vunpack.c.h.b16 %v752
      %v776 = vunpack.c.l.b16 %v753
      %v777 = vunpack.c.h.b16 %v753
      %v778 = vpack.c.b16 %v762, %v762
      %v779 = vpack.c.b16 %v763, %v763
      %v780 = vpack.c.b16 %v764, %v764
      %v781 = vpack.c.b16 %v765, %v765
      %v782 = vpack.c.b16 %v766, %v766
      %v783 = vpack.c.b16 %v767, %v767
      %v784 = vpack.c.b16 %v768, %v768
      %v785 = vpack.c.b16 %v769, %v769
      %v786 = vpack.c.b16 %v770, %v770
      %v787 = vpack.c.b16 %v771, %v771
      %v788 = vpack.c.b16 %v772, %v772
      %v789 = vpack.c.b16 %v773, %v773
      %v790 = vpack.c.b16 %v774, %v774
      %v791 = vpack.c.b16 %v775, %v775
      %v792 = vpack.c.b16 %v776, %v776
      %v793 = vpack.c.b16 %v777, %v777
      %810 = vst [vmem:[%s305] sm:$0xf] %v778
      %811 = vst [vmem:[%s305 + $0x4] sm:$0xf] %v779
      %812 = vst [vmem:[%s305 + $0x8] sm:$0xf] %v780
      %813 = vst [vmem:[%s305 + $0xc] sm:$0xf] %v781
      %814 = vst [vmem:[%s305 + $0x10] sm:$0xf] %v782
      %815 = vst [vmem:[%s305 + $0x14] sm:$0xf] %v783
      %816 = vst [vmem:[%s305 + $0x18] sm:$0xf] %v784
      %817 = vst [vmem:[%s305 + $0x1c] sm:$0xf] %v785
      %818 = vst [vmem:[%s305 + $0x20] sm:$0xf] %v786
      %819 = vst [vmem:[%s305 + $0x24] sm:$0xf] %v787
      %820 = vst [vmem:[%s305 + $0x28] sm:$0xf] %v788
      %821 = vst [vmem:[%s305 + $0x2c] sm:$0xf] %v789
      %822 = vst [vmem:[%s305 + $0x30] sm:$0xf] %v790
      %823 = vst [vmem:[%s305 + $0x34] sm:$0xf] %v791
      %824 = vst [vmem:[%s305 + $0x38] sm:$0xf] %v792
      %825 = vst [vmem:[%s305 + $0x3c] sm:$0xf] %v793
      %s826 = smul.u32 16, %s18
      %p827 = scmp.lt.s32.totalorder %s826, 63
      %s828 = scalar_select %p827, %s826, 63
      %s829 = smul.addr %s828, 4
      %s830 = scalar_lea.vmem %s7, %s829
      // Predicated region
      $region49: #{resnet_forward.10} parent=47 // pred_check
        %p831 = pneg %p193
      $region50: #{resnet_forward.10} parent=47 // pred_check_branch
        %833 = sbr.rel (%p831) target = $region52
      $region51: #{resnet_forward.10} parent=47 // pred_region
        %s834 = smul.u32 16, %s18
      $region52: #{resnet_forward.10} parent=47 // pred_fallthru
        _
    $region48: #{resnet_forward.10} parent=5 // pred_fallthru
      _
    %p835 = scmp.le.s32.totalorder 2, %s13
    // Predicated region
    $region53: #{resnet_forward.10} parent=5 // pred_check
      %p836 = pneg %p835
    $region54: #{resnet_forward.10} parent=5 // pred_check_branch
      %838 = sbr.rel (%p836) target = $region56
    $region55: #{resnet_forward.10} parent=5 // pred_region
      %s839 = ssub.s32 %s13, 2
      // Predicated region
      $region57: #{resnet_forward.10} parent=55 // pred_check
        %p840 = pneg %p199
      $region58: #{resnet_forward.10} parent=55 // pred_check_branch
        %842 = sbr.rel (%p840) target = $region60
      $region59: #{resnet_forward.10} parent=55 // pred_region
        %s843 = smul.u32 16, %s19
        %p844 = scmp.lt.s32.totalorder %s843, 63
        %s845 = scalar_select %p844, %s843, 63
        %s846 = smul.addr %s845, 4
        %s847 = scalar_lea.vmem %s7, %s846
      $region60: #{resnet_forward.10} parent=55 // pred_fallthru
        _
    $region56: #{resnet_forward.10} parent=5 // pred_fallthru
      _
  $region6: #{resnet_forward.10} parent=0 // loop_footer
    %s17 = sadd.s32 1, %s13
  $region7: #{resnet_forward.10} parent=0 // loop_footer_branch
    %12 = sbr.rel target = $region3
  $region8: #{resnet_forward.10} parent=0 // loop_exit
    _

// kernel: resnet_forward.11
$region0: #{resnet_forward.11}
  #allocation0 [shape = 'u32[]', space=smem, size = 0x4, offset = 0x4, fixed_abs, tag = 'smem constant byte address 0x4 - core index']
  #allocation1 [shape = 'u32[144,128]{1,0:T(1,128)}', space=vmem, size = 0x12000, scoped, tag = 'internal scratch']
  %s0 = inlined_call_operand.vmem [shape: bf16[128,144], index: 0, kind: input, shape index: {}]
  %s1 = inlined_call_operand.vmem [shape: bf16[144,128], index: 1, kind: input, shape index: {}]
  %s2 = inlined_call_operand.vmem [shape: f32[1,128], index: 2, kind: input, shape index: {}]
  %s3 = inlined_call_operand.vmem [shape: f32[1,128], index: 3, kind: input, shape index: {}]
  %s4 = inlined_call_operand.vmem [shape: bf16[128,128], index: 4, kind: output, shape index: {}]
  %s5 = sld [smem:[#allocation0]]
  $region26: #{resnet_forward.11} parent=0
    _
  %s7 = ssub.s32 1, %s5
  %s8 = scalar_select 0, %s7, %s5
  // Predicated region
  $region2: #{resnet_forward.11} parent=0 // pred_check
    _
  $region3: #{resnet_forward.11} parent=0 // pred_check_branch
    %10 = sbr.rel (0) target = $region5
  $region4: #{resnet_forward.11} parent=0 // pred_region
    _
  $region5: #{resnet_forward.11} parent=0 // pred_fallthru
    _
  // Predicated region
  $region6: #{resnet_forward.11} parent=0 // pred_check
    _
  $region7: #{resnet_forward.11} parent=0 // pred_check_branch
    %12 = sbr.rel (0) target = $region9
  $region8: #{resnet_forward.11} parent=0 // pred_region
    _
  $region9: #{resnet_forward.11} parent=0 // pred_fallthru
    _
  // Predicated region
  $region10: #{resnet_forward.11} parent=0 // pred_check
    _
  $region11: #{resnet_forward.11} parent=0 // pred_check_branch
    %14 = sbr.rel (0) target = $region13
  $region12: #{resnet_forward.11} parent=0 // pred_region
    _
  $region13: #{resnet_forward.11} parent=0 // pred_fallthru
    _
  // Predicated region
  $region14: #{resnet_forward.11} parent=0 // pred_check
    _
  $region15: #{resnet_forward.11} parent=0 // pred_check_branch
    %16 = sbr.rel (0) target = $region17
  $region16: #{resnet_forward.11} parent=0 // pred_region
    _
  $region17: #{resnet_forward.11} parent=0 // pred_fallthru
    _
  %v18 = vld [vmem:[%s0] sm:$0xff]
  %v19 = vld [vmem:[%s0 + $0x8] sm:$0xff]
  %v20 = vld [vmem:[%s0 + $0x10] sm:$0xff]
  %v21 = vld [vmem:[%s0 + $0x18] sm:$0xff]
  %v22 = vld [vmem:[%s0 + $0x20] sm:$0xff]
  %v23 = vld [vmem:[%s0 + $0x28] sm:$0xff]
  %v24 = vld [vmem:[%s0 + $0x30] sm:$0xff]
  %v25 = vld [vmem:[%s0 + $0x38] sm:$0xff]
  %v26 = vld [vmem:[%s0 + $0x40] sm:$0xff]
  %v27 = vld [vmem:[%s0 + $0x48] sm:$0xff]
  %v28 = vld [vmem:[%s0 + $0x50] sm:$0xff]
  %v29 = vld [vmem:[%s0 + $0x58] sm:$0xff]
  %v30 = vld [vmem:[%s0 + $0x60] sm:$0xff]
  %v31 = vld [vmem:[%s0 + $0x68] sm:$0xff]
  %v32 = vld [vmem:[%s0 + $0x70] sm:$0xff]
  %v33 = vld [vmem:[%s0 + $0x78] sm:$0xff]
  %v34 = vld [vmem:[%s1] sm:$0xf]
  %v35 = vld [vmem:[%s1 + $0x4] sm:$0xf]
  %v36 = vld [vmem:[%s1 + $0x8] sm:$0xf]
  %v37 = vld [vmem:[%s1 + $0xc] sm:$0xf]
  %v38 = vld [vmem:[%s1 + $0x10] sm:$0xf]
  %v39 = vld [vmem:[%s1 + $0x14] sm:$0xf]
  %v40 = vld [vmem:[%s1 + $0x18] sm:$0xf]
  %v41 = vld [vmem:[%s1 + $0x1c] sm:$0xf]
  %v42 = vld [vmem:[%s1 + $0x20] sm:$0xf]
  %v43 = vld [vmem:[%s1 + $0x24] sm:$0xf]
  %v44 = vld [vmem:[%s1 + $0x28] sm:$0xf]
  %v45 = vld [vmem:[%s1 + $0x2c] sm:$0xf]
  %v46 = vld [vmem:[%s1 + $0x30] sm:$0xf]
  %v47 = vld [vmem:[%s1 + $0x34] sm:$0xf]
  %v48 = vld [vmem:[%s1 + $0x38] sm:$0xf]
  %v49 = vld [vmem:[%s1 + $0x3c] sm:$0xf]
  %v50 = vld [vmem:[%s1 + $0x40] sm:$0xf]
  %v51 = vld [vmem:[%s1 + $0x44] sm:$0xf]
  %v68 = vunpack.c.l.b16 %v18
  %v69 = vunpack.c.h.b16 %v18
  %v70 = vunpack.c.l.b16 %v19
  %v71 = vunpack.c.h.b16 %v19
  %v72 = vunpack.c.l.b16 %v20
  %v73 = vunpack.c.h.b16 %v20
  %v74 = vunpack.c.l.b16 %v21
  %v75 = vunpack.c.h.b16 %v21
  %v76 = vunpack.c.l.b16 %v22
  %v77 = vunpack.c.h.b16 %v22
  %v78 = vunpack.c.l.b16 %v23
  %v79 = vunpack.c.h.b16 %v23
  %v80 = vunpack.c.l.b16 %v24
  %v81 = vunpack.c.h.b16 %v24
  %v82 = vunpack.c.l.b16 %v25
  %v83 = vunpack.c.h.b16 %v25
  %v84 = vunpack.c.l.b16 %v26
  %v85 = vunpack.c.h.b16 %v26
  %v86 = vunpack.c.l.b16 %v27
  %v87 = vunpack.c.h.b16 %v27
  %v88 = vunpack.c.l.b16 %v28
  %v89 = vunpack.c.h.b16 %v28
  %v90 = vunpack.c.l.b16 %v29
  %v91 = vunpack.c.h.b16 %v29
  %v92 = vunpack.c.l.b16 %v30
  %v93 = vunpack.c.h.b16 %v30
  %v94 = vunpack.c.l.b16 %v31
  %v95 = vunpack.c.h.b16 %v31
  %v96 = vunpack.c.l.b16 %v32
  %v97 = vunpack.c.h.b16 %v32
  %v98 = vunpack.c.l.b16 %v33
  %v99 = vunpack.c.h.b16 %v33
  %v100 = vpack.c.b16 %v70, %v68
  %v101 = vpack.c.b16 %v71, %v69
  %v102 = vpack.c.b16 %v74, %v72
  %v103 = vpack.c.b16 %v75, %v73
  %v104 = vpack.c.b16 %v78, %v76
  %v105 = vpack.c.b16 %v79, %v77
  %v106 = vpack.c.b16 %v82, %v80
  %v107 = vpack.c.b16 %v83, %v81
  %v108 = vpack.c.b16 %v86, %v84
  %v109 = vpack.c.b16 %v87, %v85
  %v110 = vpack.c.b16 %v90, %v88
  %v111 = vpack.c.b16 %v91, %v89
  %v112 = vpack.c.b16 %v94, %v92
  %v113 = vpack.c.b16 %v95, %v93
  %v114 = vpack.c.b16 %v98, %v96
  %v115 = vpack.c.b16 %v99, %v97
  %v142 = vunpack.c.l.b16 %v34
  %v143 = vunpack.c.l.b16 %v35
  %v144 = vunpack.c.l.b16 %v36
  %v145 = vunpack.c.l.b16 %v37
  %v146 = vunpack.c.l.b16 %v38
  %v147 = vunpack.c.l.b16 %v39
  %v148 = vunpack.c.l.b16 %v40
  %v149 = vunpack.c.l.b16 %v41
  %v150 = vunpack.c.l.b16 %v42
  %v151 = vunpack.c.l.b16 %v43
  %v152 = vunpack.c.l.b16 %v44
  %v153 = vunpack.c.l.b16 %v45
  %v154 = vunpack.c.l.b16 %v46
  %v155 = vunpack.c.l.b16 %v47
  %v156 = vunpack.c.l.b16 %v48
  %v157 = vunpack.c.l.b16 %v49
  %v158 = vunpack.c.l.b16 %v50
  %v159 = vunpack.c.l.b16 %v51
  %v160 = vpack.c.b16 %v143, %v142
  %v161 = vpack.c.b16 %v145, %v144
  %v162 = vpack.c.b16 %v147, %v146
  %v163 = vpack.c.b16 %v149, %v148
  %v164 = vpack.c.b16 %v151, %v150
  %v165 = vpack.c.b16 %v153, %v152
  %v166 = vpack.c.b16 %v155, %v154
  %v167 = vpack.c.b16 %v157, %v156
  %v168 = vpack.c.b16 %v159, %v158
  %vm178 = vcmask 130048
  %v180 = vsel %vm178, %v101, 0
  %v183 = vsel %vm178, %v103, 0
  %v186 = vsel %vm178, %v105, 0
  %v189 = vsel %vm178, %v107, 0
  %v192 = vsel %vm178, %v109, 0
  %v195 = vsel %vm178, %v111, 0
  %v198 = vsel %vm178, %v113, 0
  %v201 = vsel %vm178, %v115, 0
  %203 = vmatprep.subr.bf16.mxu0 0
  %204 = vmatpush1.bf16.msra.mxu0 %v160
  %205 = vmatprep.subr.bf16.mxu0 0
  %206 = vmatpush1.bf16.msra.mxu0 %v161
  %207 = vmatprep.subr.bf16.mxu0 0
  %208 = vmatpush1.bf16.msra.mxu0 %v162
  %209 = vmatprep.subr.bf16.mxu0 0
  %210 = vmatpush1.bf16.msra.mxu0 %v163
  %211 = vmatprep.subr.bf16.mxu0 0
  %212 = vmatpush1.bf16.msra.mxu0 %v164
  %213 = vmatprep.subr.bf16.mxu0 0
  %214 = vmatpush1.bf16.msra.mxu0 %v165
  %215 = vmatprep.subr.bf16.mxu0 0
  %216 = vmatpush1.bf16.msra.mxu0 %v166
  %217 = vmatprep.subr.bf16.mxu0 0
  %218 = vmatpush1.bf16.msra.mxu0 %v167
  %219 = vmatprep.subr.bf16.mxu0 0
  %220 = vmatpush1.bf16.msra.mxu0 %v168
  %221 = vmatprep.subr.bf16.mxu0 0
  %222 = vmatpush1.bf16.msra.mxu0 0
  %223 = vmatprep.subr.bf16.mxu0 0
  %224 = vmatpush1.bf16.msra.mxu0 0
  %225 = vmatprep.subr.bf16.mxu0 0
  %226 = vmatpush1.bf16.msra.mxu0 0
  %227 = vmatprep.subr.bf16.mxu0 0
  %228 = vmatpush1.bf16.msra.mxu0 0
  %229 = vmatprep.subr.bf16.mxu0 0
  %230 = vmatpush1.bf16.msra.mxu0 0
  %231 = vmatprep.subr.bf16.mxu0 0
  %232 = vmatpush1.bf16.msra.mxu0 0
  %233 = vmatprep.subr.bf16.mxu0 0
  %234 = vmatpush1.bf16.msra.mxu0 0
  %235 = vmatprep.mubr.bf16.mxu0 %v180
  %236 = vmatmul.mubr.bf16.gmra.mrb[0].mxu0 %v100
  %v237 = vpop.f32.mrb[0].mxu0
  %v238 = vadd.f32 0.0, %v237
  %v239 = vpop.f32.mrb[0].mxu0
  %v240 = vpop.f32.mrb[0].mxu0
  %v241 = vadd.f32 0.0, %v240
  %v242 = vpop.f32.mrb[0].mxu0
  %243 = vmatprep.mubr.bf16.mxu0 %v183
  %244 = vmatmul.mubr.bf16.gmra.mrb[0].mxu0 %v102
  %v245 = vpop.f32.mrb[0].mxu0
  %v246 = vadd.f32 0.0, %v245
  %v247 = vpop.f32.mrb[0].mxu0
  %v248 = vpop.f32.mrb[0].mxu0
  %v249 = vadd.f32 0.0, %v248
  %v250 = vpop.f32.mrb[0].mxu0
  %251 = vmatprep.mubr.bf16.mxu0 %v186
  %252 = vmatmul.mubr.bf16.gmra.mrb[0].mxu0 %v104
  %v253 = vpop.f32.mrb[0].mxu0
  %v254 = vadd.f32 0.0, %v253
  %v255 = vpop.f32.mrb[0].mxu0
  %v256 = vpop.f32.mrb[0].mxu0
  %v257 = vadd.f32 0.0, %v256
  %v258 = vpop.f32.mrb[0].mxu0
  %259 = vmatprep.mubr.bf16.mxu0 %v189
  %260 = vmatmul.mubr.bf16.gmra.mrb[0].mxu0 %v106
  %v261 = vpop.f32.mrb[0].mxu0
  %v262 = vadd.f32 0.0, %v261
  %v263 = vpop.f32.mrb[0].mxu0
  %v264 = vpop.f32.mrb[0].mxu0
  %v265 = vadd.f32 0.0, %v264
  %v266 = vpop.f32.mrb[0].mxu0
  %267 = vmatprep.mubr.bf16.mxu0 %v192
  %268 = vmatmul.mubr.bf16.gmra.mrb[0].mxu0 %v108
  %v269 = vpop.f32.mrb[0].mxu0
  %v270 = vadd.f32 0.0, %v269
  %v271 = vpop.f32.mrb[0].mxu0
  %v272 = vpop.f32.mrb[0].mxu0
  %v273 = vadd.f32 0.0, %v272
  %v274 = vpop.f32.mrb[0].mxu0
  %275 = vmatprep.mubr.bf16.mxu0 %v195
  %276 = vmatmul.mubr.bf16.gmra.mrb[0].mxu0 %v110
  %v277 = vpop.f32.mrb[0].mxu0
  %v278 = vadd.f32 0.0, %v277
  %v279 = vpop.f32.mrb[0].mxu0
  %v280 = vpop.f32.mrb[0].mxu0
  %v281 = vadd.f32 0.0, %v280
  %v282 = vpop.f32.mrb[0].mxu0
  %283 = vmatprep.mubr.bf16.mxu0 %v198
  %284 = vmatmul.mubr.bf16.gmra.mrb[0].mxu0 %v112
  %v285 = vpop.f32.mrb[0].mxu0
  %v286 = vadd.f32 0.0, %v285
  %v287 = vpop.f32.mrb[0].mxu0
  %v288 = vpop.f32.mrb[0].mxu0
  %v289 = vadd.f32 0.0, %v288
  %v290 = vpop.f32.mrb[0].mxu0
  %291 = vmatprep.mubr.bf16.mxu0 %v201
  %292 = vmatmul.mubr.bf16.gmra.mrb[0].mxu0 %v114
  %v293 = vpop.f32.mrb[0].mxu0
  %v294 = vadd.f32 0.0, %v293
  %v295 = vpop.f32.mrb[0].mxu0
  %v296 = vpop.f32.mrb[0].mxu0
  %v297 = vadd.f32 0.0, %v296
  %v298 = vpop.f32.mrb[0].mxu0
  %299 = vdwg.mxu0
  %v300 = vld [vmem:[%s2] sm:$0x1]
  %v302 = vlaneseq
  %v303 = vshrl.u32 %v302, 7
  %v304 = vsub.s32 0, %v303
  %v305 = vrot.slane %v300, %v304
  %v307 = vmul.f32 %v238, %v305
  %v308 = vmul.f32 %v241, %v305
  %v309 = vmul.f32 %v246, %v305
  %v310 = vmul.f32 %v249, %v305
  %v311 = vmul.f32 %v254, %v305
  %v312 = vmul.f32 %v257, %v305
  %v313 = vmul.f32 %v262, %v305
  %v314 = vmul.f32 %v265, %v305
  %v315 = vmul.f32 %v270, %v305
  %v316 = vmul.f32 %v273, %v305
  %v317 = vmul.f32 %v278, %v305
  %v318 = vmul.f32 %v281, %v305
  %v319 = vmul.f32 %v286, %v305
  %v320 = vmul.f32 %v289, %v305
  %v321 = vmul.f32 %v294, %v305
  %v322 = vmul.f32 %v297, %v305
  %v323 = vld [vmem:[%s3] sm:$0x1]
  %v325 = vlaneseq
  %v326 = vshrl.u32 %v325, 7
  %v327 = vsub.s32 0, %v326
  %v328 = vrot.slane %v323, %v327
  %v330 = vadd.f32 %v307, %v328
  %v331 = vadd.f32 %v308, %v328
  %v332 = vadd.f32 %v309, %v328
  %v333 = vadd.f32 %v310, %v328
  %v334 = vadd.f32 %v311, %v328
  %v335 = vadd.f32 %v312, %v328
  %v336 = vadd.f32 %v313, %v328
  %v337 = vadd.f32 %v314, %v328
  %v338 = vadd.f32 %v315, %v328
  %v339 = vadd.f32 %v316, %v328
  %v340 = vadd.f32 %v317, %v328
  %v341 = vadd.f32 %v318, %v328
  %v342 = vadd.f32 %v319, %v328
  %v343 = vadd.f32 %v320, %v328
  %v344 = vadd.f32 %v321, %v328
  %v345 = vadd.f32 %v322, %v328
  %v346 = vmax.f32 %v330, 0.0
  %v347 = vmax.f32 %v331, 0.0
  %v348 = vmax.f32 %v332, 0.0
  %v349 = vmax.f32 %v333, 0.0
  %v350 = vmax.f32 %v334, 0.0
  %v351 = vmax.f32 %v335, 0.0
  %v352 = vmax.f32 %v336, 0.0
  %v353 = vmax.f32 %v337, 0.0
  %v354 = vmax.f32 %v338, 0.0
  %v355 = vmax.f32 %v339, 0.0
  %v356 = vmax.f32 %v340, 0.0
  %v357 = vmax.f32 %v341, 0.0
  %v358 = vmax.f32 %v342, 0.0
  %v359 = vmax.f32 %v343, 0.0
  %v360 = vmax.f32 %v344, 0.0
  %v361 = vmax.f32 %v345, 0.0
  %v362 = vpack.c.bf16 %v347, %v346
  %v363 = vpack.c.bf16 %v349, %v348
  %v364 = vpack.c.bf16 %v351, %v350
  %v365 = vpack.c.bf16 %v353, %v352
  %v366 = vpack.c.bf16 %v355, %v354
  %v367 = vpack.c.bf16 %v357, %v356
  %v368 = vpack.c.bf16 %v359, %v358
  %v369 = vpack.c.bf16 %v361, %v360
  %v378 = vunpack.c.l.b16 %v362
  %v379 = vunpack.c.h.b16 %v362
  %v380 = vunpack.c.l.b16 %v363
  %v381 = vunpack.c.h.b16 %v363
  %v382 = vunpack.c.l.b16 %v364
  %v383 = vunpack.c.h.b16 %v364
  %v384 = vunpack.c.l.b16 %v365
  %v385 = vunpack.c.h.b16 %v365
  %v386 = vunpack.c.l.b16 %v366
  %v387 = vunpack.c.h.b16 %v366
  %v388 = vunpack.c.l.b16 %v367
  %v389 = vunpack.c.h.b16 %v367
  %v390 = vunpack.c.l.b16 %v368
  %v391 = vunpack.c.h.b16 %v368
  %v392 = vunpack.c.l.b16 %v369
  %v393 = vunpack.c.h.b16 %v369
  %v394 = vpack.c.b16 %v378, %v378
  %v395 = vpack.c.b16 %v379, %v379
  %v396 = vpack.c.b16 %v380, %v380
  %v397 = vpack.c.b16 %v381, %v381
  %v398 = vpack.c.b16 %v382, %v382
  %v399 = vpack.c.b16 %v383, %v383
  %v400 = vpack.c.b16 %v384, %v384
  %v401 = vpack.c.b16 %v385, %v385
  %v402 = vpack.c.b16 %v386, %v386
  %v403 = vpack.c.b16 %v387, %v387
  %v404 = vpack.c.b16 %v388, %v388
  %v405 = vpack.c.b16 %v389, %v389
  %v406 = vpack.c.b16 %v390, %v390
  %v407 = vpack.c.b16 %v391, %v391
  %v408 = vpack.c.b16 %v392, %v392
  %v409 = vpack.c.b16 %v393, %v393
  %426 = vst [vmem:[%s4] sm:$0xf] %v394
  %427 = vst [vmem:[%s4 + $0x4] sm:$0xf] %v395
  %428 = vst [vmem:[%s4 + $0x8] sm:$0xf] %v396
  %429 = vst [vmem:[%s4 + $0xc] sm:$0xf] %v397
  %430 = vst [vmem:[%s4 + $0x10] sm:$0xf] %v398
  %431 = vst [vmem:[%s4 + $0x14] sm:$0xf] %v399
  %432 = vst [vmem:[%s4 + $0x18] sm:$0xf] %v400
  %433 = vst [vmem:[%s4 + $0x1c] sm:$0xf] %v401
  %434 = vst [vmem:[%s4 + $0x20] sm:$0xf] %v402
  %435 = vst [vmem:[%s4 + $0x24] sm:$0xf] %v403
  %436 = vst [vmem:[%s4 + $0x28] sm:$0xf] %v404
  %437 = vst [vmem:[%s4 + $0x2c] sm:$0xf] %v405
  %438 = vst [vmem:[%s4 + $0x30] sm:$0xf] %v406
  %439 = vst [vmem:[%s4 + $0x34] sm:$0xf] %v407
  %440 = vst [vmem:[%s4 + $0x38] sm:$0xf] %v408
  %441 = vst [vmem:[%s4 + $0x3c] sm:$0xf] %v409
  // Predicated region
  $region18: #{resnet_forward.11} parent=0 // pred_check
    _
  $region19: #{resnet_forward.11} parent=0 // pred_check_branch
    %443 = sbr.rel (0) target = $region21
  $region20: #{resnet_forward.11} parent=0 // pred_region
    _
  $region21: #{resnet_forward.11} parent=0 // pred_fallthru
    _
  // Predicated region
  $region22: #{resnet_forward.11} parent=0 // pred_check
    _
  $region23: #{resnet_forward.11} parent=0 // pred_check_branch
    %445 = sbr.rel (0) target = $region25
  $region24: #{resnet_forward.11} parent=0 // pred_region
    _
  $region25: #{resnet_forward.11} parent=0 // pred_fallthru
    _

// kernel: resnet_forward.12
$region0: #{resnet_forward.12}
  #allocation0 [shape = 'u32[]', space=smem, size = 0x4, offset = 0x4, fixed_abs, tag = 'smem constant byte address 0x4 - core index']
  #allocation1 [shape = 'u32[144,128]{1,0:T(1,128)}', space=vmem, size = 0x12000, scoped, tag = 'internal scratch']
  %s0 = inlined_call_operand.vmem [shape: bf16[128,288], index: 0, kind: input, shape index: {}]
  %s1 = inlined_call_operand.vmem [shape: bf16[288,128], index: 1, kind: input, shape index: {}]
  %s2 = inlined_call_operand.vmem [shape: f32[1,128], index: 2, kind: input, shape index: {}]
  %s3 = inlined_call_operand.vmem [shape: f32[1,128], index: 3, kind: input, shape index: {}]
  %s4 = inlined_call_operand.vmem [shape: bf16[128,128], index: 4, kind: input, shape index: {}]
  %s5 = inlined_call_operand.vmem [shape: f32[1,128], index: 5, kind: input, shape index: {}]
  %s6 = inlined_call_operand.vmem [shape: f32[1,128], index: 6, kind: input, shape index: {}]
  %s7 = inlined_call_operand.vmem [shape: bf16[128,128], index: 7, kind: output, shape index: {}]
  %s8 = sld [smem:[#allocation0]]
  $region38: #{resnet_forward.12} parent=0
    _
  %s10 = ssub.s32 1, %s8
  %s11 = scalar_select 0, %s10, %s8
  // Predicated region
  $region2: #{resnet_forward.12} parent=0 // pred_check
    _
  $region3: #{resnet_forward.12} parent=0 // pred_check_branch
    %13 = sbr.rel (0) target = $region5
  $region4: #{resnet_forward.12} parent=0 // pred_region
    _
  $region5: #{resnet_forward.12} parent=0 // pred_fallthru
    _
  // Predicated region
  $region6: #{resnet_forward.12} parent=0 // pred_check
    _
  $region7: #{resnet_forward.12} parent=0 // pred_check_branch
    %15 = sbr.rel (0) target = $region9
  $region8: #{resnet_forward.12} parent=0 // pred_region
    _
  $region9: #{resnet_forward.12} parent=0 // pred_fallthru
    _
  // Predicated region
  $region10: #{resnet_forward.12} parent=0 // pred_check
    _
  $region11: #{resnet_forward.12} parent=0 // pred_check_branch
    %17 = sbr.rel (0) target = $region13
  $region12: #{resnet_forward.12} parent=0 // pred_region
    _
  $region13: #{resnet_forward.12} parent=0 // pred_fallthru
    _
  // Predicated region
  $region14: #{resnet_forward.12} parent=0 // pred_check
    _
  $region15: #{resnet_forward.12} parent=0 // pred_check_branch
    %19 = sbr.rel (0) target = $region17
  $region16: #{resnet_forward.12} parent=0 // pred_region
    _
  $region17: #{resnet_forward.12} parent=0 // pred_fallthru
    _
  // Predicated region
  $region18: #{resnet_forward.12} parent=0 // pred_check
    _
  $region19: #{resnet_forward.12} parent=0 // pred_check_branch
    %21 = sbr.rel (0) target = $region21
  $region20: #{resnet_forward.12} parent=0 // pred_region
    _
  $region21: #{resnet_forward.12} parent=0 // pred_fallthru
    _
  // Predicated region
  $region22: #{resnet_forward.12} parent=0 // pred_check
    _
  $region23: #{resnet_forward.12} parent=0 // pred_check_branch
    %23 = sbr.rel (0) target = $region25
  $region24: #{resnet_forward.12} parent=0 // pred_region
    _
  $region25: #{resnet_forward.12} parent=0 // pred_fallthru
    _
  // Predicated region
  $region26: #{resnet_forward.12} parent=0 // pred_check
    _
  $region27: #{resnet_forward.12} parent=0 // pred_check_branch
    %25 = sbr.rel (0) target = $region29
  $region28: #{resnet_forward.12} parent=0 // pred_region
    _
  $region29: #{resnet_forward.12} parent=0 // pred_fallthru
    _
  %v27 = vld [vmem:[%s0] sm:$0xff]
  %v28 = vld [vmem:[%s0 + $0x8] sm:$0xf]
  %v29 = vld [vmem:[%s0 + $0xc] sm:$0xff]
  %v30 = vld [vmem:[%s0 + $0x14] sm:$0xf]
  %v31 = vld [vmem:[%s0 + $0x18] sm:$0xff]
  %v32 = vld [vmem:[%s0 + $0x20] sm:$0xf]
  %v33 = vld [vmem:[%s0 + $0x24] sm:$0xff]
  %v34 = vld [vmem:[%s0 + $0x2c] sm:$0xf]
  %v35 = vld [vmem:[%s0 + $0x30] sm:$0xff]
  %v36 = vld [vmem:[%s0 + $0x38] sm:$0xf]
  %v37 = vld [vmem:[%s0 + $0x3c] sm:$0xff]
  %v38 = vld [vmem:[%s0 + $0x44] sm:$0xf]
  %v39 = vld [vmem:[%s0 + $0x48] sm:$0xff]
  %v40 = vld [vmem:[%s0 + $0x50] sm:$0xf]
  %v41 = vld [vmem:[%s0 + $0x54] sm:$0xff]
  %v42 = vld [vmem:[%s0 + $0x5c] sm:$0xf]
  %v43 = vld [vmem:[%s0 + $0x60] sm:$0xff]
  %v44 = vld [vmem:[%s0 + $0x68] sm:$0xf]
  %v45 = vld [vmem:[%s0 + $0x6c] sm:$0xff]
  %v46 = vld [vmem:[%s0 + $0x74] sm:$0xf]
  %v47 = vld [vmem:[%s0 + $0x78] sm:$0xff]
  %v48 = vld [vmem:[%s0 + $0x80] sm:$0xf]
  %v49 = vld [vmem:[%s0 + $0x84] sm:$0xff]
  %v50 = vld [vmem:[%s0 + $0x8c] sm:$0xf]
  %v51 = vld [vmem:[%s0 + $0x90] sm:$0xff]
  %v52 = vld [vmem:[%s0 + $0x98] sm:$0xf]
  %v53 = vld [vmem:[%s0 + $0x9c] sm:$0xff]
  %v54 = vld [vmem:[%s0 + $0xa4] sm:$0xf]
  %v55 = vld [vmem:[%s0 + $0xa8] sm:$0xff]
  %v56 = vld [vmem:[%s0 + $0xb0] sm:$0xf]
  %v57 = vld [vmem:[%s0 + $0xb4] sm:$0xff]
  %v58 = vld [vmem:[%s0 + $0xbc] sm:$0xf]
  %v59 = vld [vmem:[%s1] sm:$0xf]
  %v60 = vld [vmem:[%s1 + $0x4] sm:$0xf]
  %v61 = vld [vmem:[%s1 + $0x8] sm:$0xf]
  %v62 = vld [vmem:[%s1 + $0xc] sm:$0xf]
  %v63 = vld [vmem:[%s1 + $0x10] sm:$0xf]
  %v64 = vld [vmem:[%s1 + $0x14] sm:$0xf]
  %v65 = vld [vmem:[%s1 + $0x18] sm:$0xf]
  %v66 = vld [vmem:[%s1 + $0x1c] sm:$0xf]
  %v67 = vld [vmem:[%s1 + $0x20] sm:$0xf]
  %v68 = vld [vmem:[%s1 + $0x24] sm:$0xf]
  %v69 = vld [vmem:[%s1 + $0x28] sm:$0xf]
  %v70 = vld [vmem:[%s1 + $0x2c] sm:$0xf]
  %v71 = vld [vmem:[%s1 + $0x30] sm:$0xf]
  %v72 = vld [vmem:[%s1 + $0x34] sm:$0xf]
  %v73 = vld [vmem:[%s1 + $0x38] sm:$0xf]
  %v74 = vld [vmem:[%s1 + $0x3c] sm:$0xf]
  %v75 = vld [vmem:[%s1 + $0x40] sm:$0xf]
  %v76 = vld [vmem:[%s1 + $0x44] sm:$0xf]
  %v77 = vld [vmem:[%s1 + $0x48] sm:$0xf]
  %v78 = vld [vmem:[%s1 + $0x4c] sm:$0xf]
  %v79 = vld [vmem:[%s1 + $0x50] sm:$0xf]
  %v80 = vld [vmem:[%s1 + $0x54] sm:$0xf]
  %v81 = vld [vmem:[%s1 + $0x58] sm:$0xf]
  %v82 = vld [vmem:[%s1 + $0x5c] sm:$0xf]
  %v83 = vld [vmem:[%s1 + $0x60] sm:$0xf]
  %v84 = vld [vmem:[%s1 + $0x64] sm:$0xf]
  %v85 = vld [vmem:[%s1 + $0x68] sm:$0xf]
  %v86 = vld [vmem:[%s1 + $0x6c] sm:$0xf]
  %v87 = vld [vmem:[%s1 + $0x70] sm:$0xf]
  %v88 = vld [vmem:[%s1 + $0x74] sm:$0xf]
  %v89 = vld [vmem:[%s1 + $0x78] sm:$0xf]
  %v90 = vld [vmem:[%s1 + $0x7c] sm:$0xf]
  %v91 = vld [vmem:[%s1 + $0x80] sm:$0xf]
  %v92 = vld [vmem:[%s1 + $0x84] sm:$0xf]
  %v93 = vld [vmem:[%s1 + $0x88] sm:$0xf]
  %v94 = vld [vmem:[%s1 + $0x8c] sm:$0xf]
  %v127 = vunpack.c.l.b16 %v27
  %v128 = vunpack.c.h.b16 %v27
  %v129 = vunpack.c.l.b16 %v28
  %v130 = vunpack.c.l.b16 %v29
  %v131 = vunpack.c.h.b16 %v29
  %v132 = vunpack.c.l.b16 %v30
  %v133 = vunpack.c.l.b16 %v31
  %v134 = vunpack.c.h.b16 %v31
  %v135 = vunpack.c.l.b16 %v32
  %v136 = vunpack.c.l.b16 %v33
  %v137 = vunpack.c.h.b16 %v33
  %v138 = vunpack.c.l.b16 %v34
  %v139 = vunpack.c.l.b16 %v35
  %v140 = vunpack.c.h.b16 %v35
  %v141 = vunpack.c.l.b16 %v36
  %v142 = vunpack.c.l.b16 %v37
  %v143 = vunpack.c.h.b16 %v37
  %v144 = vunpack.c.l.b16 %v38
  %v145 = vunpack.c.l.b16 %v39
  %v146 = vunpack.c.h.b16 %v39
  %v147 = vunpack.c.l.b16 %v40
  %v148 = vunpack.c.l.b16 %v41
  %v149 = vunpack.c.h.b16 %v41
  %v150 = vunpack.c.l.b16 %v42
  %v151 = vunpack.c.l.b16 %v43
  %v152 = vunpack.c.h.b16 %v43
  %v153 = vunpack.c.l.b16 %v44
  %v154 = vunpack.c.l.b16 %v45
  %v155 = vunpack.c.h.b16 %v45
  %v156 = vunpack.c.l.b16 %v46
  %v157 = vunpack.c.l.b16 %v47
  %v158 = vunpack.c.h.b16 %v47
  %v159 = vunpack.c.l.b16 %v48
  %v160 = vunpack.c.l.b16 %v49
  %v161 = vunpack.c.h.b16 %v49
  %v162 = vunpack.c.l.b16 %v50
  %v163 = vunpack.c.l.b16 %v51
  %v164 = vunpack.c.h.b16 %v51
  %v165 = vunpack.c.l.b16 %v52
  %v166 = vunpack.c.l.b16 %v53
  %v167 = vunpack.c.h.b16 %v53
  %v168 = vunpack.c.l.b16 %v54
  %v169 = vunpack.c.l.b16 %v55
  %v170 = vunpack.c.h.b16 %v55
  %v171 = vunpack.c.l.b16 %v56
  %v172 = vunpack.c.l.b16 %v57
  %v173 = vunpack.c.h.b16 %v57
  %v174 = vunpack.c.l.b16 %v58
  %v175 = vpack.c.b16 %v130, %v127
  %v176 = vpack.c.b16 %v131, %v128
  %v177 = vpack.c.b16 %v132, %v129
  %v178 = vpack.c.b16 %v136, %v133
  %v179 = vpack.c.b16 %v137, %v134
  %v180 = vpack.c.b16 %v138, %v135
  %v181 = vpack.c.b16 %v142, %v139
  %v182 = vpack.c.b16 %v143, %v140
  %v183 = vpack.c.b16 %v144, %v141
  %v184 = vpack.c.b16 %v148, %v145
  %v185 = vpack.c.b16 %v149, %v146
  %v186 = vpack.c.b16 %v150, %v147
  %v187 = vpack.c.b16 %v154, %v151
  %v188 = vpack.c.b16 %v155, %v152
  %v189 = vpack.c.b16 %v156, %v153
  %v190 = vpack.c.b16 %v160, %v157
  %v191 = vpack.c.b16 %v161, %v158
  %v192 = vpack.c.b16 %v162, %v159
  %v193 = vpack.c.b16 %v166, %v163
  %v194 = vpack.c.b16 %v167, %v164
  %v195 = vpack.c.b16 %v168, %v165
  %v196 = vpack.c.b16 %v172, %v169
  %v197 = vpack.c.b16 %v173, %v170
  %v198 = vpack.c.b16 %v174, %v171
  %v251 = vunpack.c.l.b16 %v59
  %v252 = vunpack.c.l.b16 %v60
  %v253 = vunpack.c.l.b16 %v61
  %v254 = vunpack.c.l.b16 %v62
  %v255 = vunpack.c.l.b16 %v63
  %v256 = vunpack.c.l.b16 %v64
  %v257 = vunpack.c.l.b16 %v65
  %v258 = vunpack.c.l.b16 %v66
  %v259 = vunpack.c.l.b16 %v67
  %v260 = vunpack.c.l.b16 %v68
  %v261 = vunpack.c.l.b16 %v69
  %v262 = vunpack.c.l.b16 %v70
  %v263 = vunpack.c.l.b16 %v71
  %v264 = vunpack.c.l.b16 %v72
  %v265 = vunpack.c.l.b16 %v73
  %v266 = vunpack.c.l.b16 %v74
  %v267 = vunpack.c.l.b16 %v75
  %v268 = vunpack.c.l.b16 %v76
  %v269 = vunpack.c.l.b16 %v77
  %v270 = vunpack.c.l.b16 %v78
  %v271 = vunpack.c.l.b16 %v79
  %v272 = vunpack.c.l.b16 %v80
  %v273 = vunpack.c.l.b16 %v81
  %v274 = vunpack.c.l.b16 %v82
  %v275 = vunpack.c.l.b16 %v83
  %v276 = vunpack.c.l.b16 %v84
  %v277 = vunpack.c.l.b16 %v85
  %v278 = vunpack.c.l.b16 %v86
  %v279 = vunpack.c.l.b16 %v87
  %v280 = vunpack.c.l.b16 %v88
  %v281 = vunpack.c.l.b16 %v89
  %v282 = vunpack.c.l.b16 %v90
  %v283 = vunpack.c.l.b16 %v91
  %v284 = vunpack.c.l.b16 %v92
  %v285 = vunpack.c.l.b16 %v93
  %v286 = vunpack.c.l.b16 %v94
  %v287 = vpack.c.b16 %v252, %v251
  %v288 = vpack.c.b16 %v254, %v253
  %v289 = vpack.c.b16 %v256, %v255
  %v290 = vpack.c.b16 %v258, %v257
  %v291 = vpack.c.b16 %v260, %v259
  %v292 = vpack.c.b16 %v262, %v261
  %v293 = vpack.c.b16 %v264, %v263
  %v294 = vpack.c.b16 %v266, %v265
  %v295 = vpack.c.b16 %v268, %v267
  %v296 = vpack.c.b16 %v270, %v269
  %v297 = vpack.c.b16 %v272, %v271
  %v298 = vpack.c.b16 %v274, %v273
  %v299 = vpack.c.b16 %v276, %v275
  %v300 = vpack.c.b16 %v278, %v277
  %v301 = vpack.c.b16 %v280, %v279
  %v302 = vpack.c.b16 %v282, %v281
  %v303 = vpack.c.b16 %v284, %v283
  %v304 = vpack.c.b16 %v286, %v285
  %vm323 = vcmask 261120
  %v325 = vsel %vm323, %v177, 0
  %v328 = vsel %vm323, %v180, 0
  %v331 = vsel %vm323, %v183, 0
  %v334 = vsel %vm323, %v186, 0
  %v337 = vsel %vm323, %v189, 0
  %v340 = vsel %vm323, %v192, 0
  %v343 = vsel %vm323, %v195, 0
  %v346 = vsel %vm323, %v198, 0
  %348 = vmatprep.subr.bf16.mxu0 0
  %349 = vmatpush1.bf16.msra.mxu0 %v287
  %350 = vmatprep.subr.bf16.mxu0 0
  %351 = vmatpush1.bf16.msra.mxu0 %v288
  %352 = vmatprep.subr.bf16.mxu0 0
  %353 = vmatpush1.bf16.msra.mxu0 %v289
  %354 = vmatprep.subr.bf16.mxu0 0
  %355 = vmatpush1.bf16.msra.mxu0 %v290
  %356 = vmatprep.subr.bf16.mxu0 0
  %357 = vmatpush1.bf16.msra.mxu0 %v291
  %358 = vmatprep.subr.bf16.mxu0 0
  %359 = vmatpush1.bf16.msra.mxu0 %v292
  %360 = vmatprep.subr.bf16.mxu0 0
  %361 = vmatpush1.bf16.msra.mxu0 %v293
  %362 = vmatprep.subr.bf16.mxu0 0
  %363 = vmatpush1.bf16.msra.mxu0 %v294
  %364 = vmatprep.subr.bf16.mxu0 0
  %365 = vmatpush1.bf16.msra.mxu0 %v295
  %366 = vmatprep.subr.bf16.mxu0 0
  %367 = vmatpush1.bf16.msra.mxu0 %v296
  %368 = vmatprep.subr.bf16.mxu0 0
  %369 = vmatpush1.bf16.msra.mxu0 %v297
  %370 = vmatprep.subr.bf16.mxu0 0
  %371 = vmatpush1.bf16.msra.mxu0 %v298
  %372 = vmatprep.subr.bf16.mxu0 0
  %373 = vmatpush1.bf16.msra.mxu0 %v299
  %374 = vmatprep.subr.bf16.mxu0 0
  %375 = vmatpush1.bf16.msra.mxu0 %v300
  %376 = vmatprep.subr.bf16.mxu0 0
  %377 = vmatpush1.bf16.msra.mxu0 %v301
  %378 = vmatprep.subr.bf16.mxu0 0
  %379 = vmatpush1.bf16.msra.mxu0 %v302
  %380 = vmatprep.mubr.bf16.mxu0 %v176
  %381 = vmatmul.mubr.bf16.gmra.mrb[0].mxu0 %v175
  %v382 = vpop.f32.mrb[0].mxu0
  %v383 = vadd.f32 0.0, %v382
  %v384 = vpop.f32.mrb[0].mxu0
  %v385 = vpop.f32.mrb[0].mxu0
  %v386 = vadd.f32 0.0, %v385
  %v387 = vpop.f32.mrb[0].mxu0
  %388 = vmatprep.mubr.bf16.mxu0 %v179
  %389 = vmatmul.mubr.bf16.gmra.mrb[0].mxu0 %v178
  %v390 = vpop.f32.mrb[0].mxu0
  %v391 = vadd.f32 0.0, %v390
  %v392 = vpop.f32.mrb[0].mxu0
  %v393 = vpop.f32.mrb[0].mxu0
  %v394 = vadd.f32 0.0, %v393
  %v395 = vpop.f32.mrb[0].mxu0
  %396 = vmatprep.mubr.bf16.mxu0 %v182
  %397 = vmatmul.mubr.bf16.gmra.mrb[0].mxu0 %v181
  %v398 = vpop.f32.mrb[0].mxu0
  %v399 = vadd.f32 0.0, %v398
  %v400 = vpop.f32.mrb[0].mxu0
  %v401 = vpop.f32.mrb[0].mxu0
  %v402 = vadd.f32 0.0, %v401
  %v403 = vpop.f32.mrb[0].mxu0
  %404 = vmatprep.mubr.bf16.mxu0 %v185
  %405 = vmatmul.mubr.bf16.gmra.mrb[0].mxu0 %v184
  %v406 = vpop.f32.mrb[0].mxu0
  %v407 = vadd.f32 0.0, %v406
  %v408 = vpop.f32.mrb[0].mxu0
  %v409 = vpop.f32.mrb[0].mxu0
  %v410 = vadd.f32 0.0, %v409
  %v411 = vpop.f32.mrb[0].mxu0
  %412 = vmatprep.mubr.bf16.mxu0 %v188
  %413 = vmatmul.mubr.bf16.gmra.mrb[0].mxu0 %v187
  %v414 = vpop.f32.mrb[0].mxu0
  %v415 = vadd.f32 0.0, %v414
  %v416 = vpop.f32.mrb[0].mxu0
  %v417 = vpop.f32.mrb[0].mxu0
  %v418 = vadd.f32 0.0, %v417
  %v419 = vpop.f32.mrb[0].mxu0
  %420 = vmatprep.mubr.bf16.mxu0 %v191
  %421 = vmatmul.mubr.bf16.gmra.mrb[0].mxu0 %v190
  %v422 = vpop.f32.mrb[0].mxu0
  %v423 = vadd.f32 0.0, %v422
  %v424 = vpop.f32.mrb[0].mxu0
  %v425 = vpop.f32.mrb[0].mxu0
  %v426 = vadd.f32 0.0, %v425
  %v427 = vpop.f32.mrb[0].mxu0
  %428 = vmatprep.mubr.bf16.mxu0 %v194
  %429 = vmatmul.mubr.bf16.gmra.mrb[0].mxu0 %v193
  %v430 = vpop.f32.mrb[0].mxu0
  %v431 = vadd.f32 0.0, %v430
  %v432 = vpop.f32.mrb[0].mxu0
  %v433 = vpop.f32.mrb[0].mxu0
  %v434 = vadd.f32 0.0, %v433
  %v435 = vpop.f32.mrb[0].mxu0
  %436 = vmatprep.mubr.bf16.mxu0 %v197
  %437 = vmatmul.mubr.bf16.gmra.mrb[0].mxu0 %v196
  %v438 = vpop.f32.mrb[0].mxu0
  %v439 = vadd.f32 0.0, %v438
  %v440 = vpop.f32.mrb[0].mxu0
  %v441 = vpop.f32.mrb[0].mxu0
  %v442 = vadd.f32 0.0, %v441
  %v443 = vpop.f32.mrb[0].mxu0
  %444 = vdwg.mxu0
  %445 = vmatprep.subr.bf16.mxu0 0
  %446 = vmatpush1.bf16.msra.mxu0 %v303
  %447 = vmatprep.subr.bf16.mxu0 0
  %448 = vmatpush1.bf16.msra.mxu0 %v304
  %449 = vmatprep.subr.bf16.mxu0 0
  %450 = vmatpush1.bf16.msra.mxu0 0
  %451 = vmatprep.subr.bf16.mxu0 0
  %452 = vmatpush1.bf16.msra.mxu0 0
  %453 = vmatprep.subr.bf16.mxu0 0
  %454 = vmatpush1.bf16.msra.mxu0 0
  %455 = vmatprep.subr.bf16.mxu0 0
  %456 = vmatpush1.bf16.msra.mxu0 0
  %457 = vmatprep.subr.bf16.mxu0 0
  %458 = vmatpush1.bf16.msra.mxu0 0
  %459 = vmatprep.subr.bf16.mxu0 0
  %460 = vmatpush1.bf16.msra.mxu0 0
  %461 = vmatprep.subr.bf16.mxu0 0
  %462 = vmatpush1.bf16.msra.mxu0 0
  %463 = vmatprep.subr.bf16.mxu0 0
  %464 = vmatpush1.bf16.msra.mxu0 0
  %465 = vmatprep.subr.bf16.mxu0 0
  %466 = vmatpush1.bf16.msra.mxu0 0
  %467 = vmatprep.subr.bf16.mxu0 0
  %468 = vmatpush1.bf16.msra.mxu0 0
  %469 = vmatprep.subr.bf16.mxu0 0
  %470 = vmatpush1.bf16.msra.mxu0 0
  %471 = vmatprep.subr.bf16.mxu0 0
  %472 = vmatpush1.bf16.msra.mxu0 0
  %473 = vmatprep.subr.bf16.mxu0 0
  %474 = vmatpush1.bf16.msra.mxu0 0
  %475 = vmatprep.subr.bf16.mxu0 0
  %476 = vmatpush1.bf16.msra.mxu0 0
  %477 = vmatprep.mubr.bf16.mxu0 0
  %478 = vmatmul.mubr.bf16.gmra.mrb[0].mxu0 %v325
  %v479 = vpop.f32.mrb[0].mxu0
  %v480 = vadd.f32 %v383, %v479
  %v481 = vpop.f32.mrb[0].mxu0
  %v482 = vpop.f32.mrb[0].mxu0
  %v483 = vadd.f32 %v386, %v482
  %v484 = vpop.f32.mrb[0].mxu0
  %485 = vmatprep.mubr.bf16.mxu0 0
  %486 = vmatmul.mubr.bf16.gmra.mrb[0].mxu0 %v328
  %v487 = vpop.f32.mrb[0].mxu0
  %v488 = vadd.f32 %v391, %v487
  %v489 = vpop.f32.mrb[0].mxu0
  %v490 = vpop.f32.mrb[0].mxu0
  %v491 = vadd.f32 %v394, %v490
  %v492 = vpop.f32.mrb[0].mxu0
  %493 = vmatprep.mubr.bf16.mxu0 0
  %494 = vmatmul.mubr.bf16.gmra.mrb[0].mxu0 %v331
  %v495 = vpop.f32.mrb[0].mxu0
  %v496 = vadd.f32 %v399, %v495
  %v497 = vpop.f32.mrb[0].mxu0
  %v498 = vpop.f32.mrb[0].mxu0
  %v499 = vadd.f32 %v402, %v498
  %v500 = vpop.f32.mrb[0].mxu0
  %501 = vmatprep.mubr.bf16.mxu0 0
  %502 = vmatmul.mubr.bf16.gmra.mrb[0].mxu0 %v334
  %v503 = vpop.f32.mrb[0].mxu0
  %v504 = vadd.f32 %v407, %v503
  %v505 = vpop.f32.mrb[0].mxu0
  %v506 = vpop.f32.mrb[0].mxu0
  %v507 = vadd.f32 %v410, %v506
  %v508 = vpop.f32.mrb[0].mxu0
  %509 = vmatprep.mubr.bf16.mxu0 0
  %510 = vmatmul.mubr.bf16.gmra.mrb[0].mxu0 %v337
  %v511 = vpop.f32.mrb[0].mxu0
  %v512 = vadd.f32 %v415, %v511
  %v513 = vpop.f32.mrb[0].mxu0
  %v514 = vpop.f32.mrb[0].mxu0
  %v515 = vadd.f32 %v418, %v514
  %v516 = vpop.f32.mrb[0].mxu0
  %517 = vmatprep.mubr.bf16.mxu0 0
  %518 = vmatmul.mubr.bf16.gmra.mrb[0].mxu0 %v340
  %v519 = vpop.f32.mrb[0].mxu0
  %v520 = vadd.f32 %v423, %v519
  %v521 = vpop.f32.mrb[0].mxu0
  %v522 = vpop.f32.mrb[0].mxu0
  %v523 = vadd.f32 %v426, %v522
  %v524 = vpop.f32.mrb[0].mxu0
  %525 = vmatprep.mubr.bf16.mxu0 0
  %526 = vmatmul.mubr.bf16.gmra.mrb[0].mxu0 %v343
  %v527 = vpop.f32.mrb[0].mxu0
  %v528 = vadd.f32 %v431, %v527
  %v529 = vpop.f32.mrb[0].mxu0
  %v530 = vpop.f32.mrb[0].mxu0
  %v531 = vadd.f32 %v434, %v530
  %v532 = vpop.f32.mrb[0].mxu0
  %533 = vmatprep.mubr.bf16.mxu0 0
  %534 = vmatmul.mubr.bf16.gmra.mrb[0].mxu0 %v346
  %v535 = vpop.f32.mrb[0].mxu0
  %v536 = vadd.f32 %v439, %v535
  %v537 = vpop.f32.mrb[0].mxu0
  %v538 = vpop.f32.mrb[0].mxu0
  %v539 = vadd.f32 %v442, %v538
  %v540 = vpop.f32.mrb[0].mxu0
  %541 = vdwg.mxu0
  %v542 = vld [vmem:[%s2] sm:$0x1]
  %v544 = vlaneseq
  %v545 = vshrl.u32 %v544, 7
  %v546 = vsub.s32 0, %v545
  %v547 = vrot.slane %v542, %v546
  %v549 = vmul.f32 %v480, %v547
  %v550 = vmul.f32 %v483, %v547
  %v551 = vmul.f32 %v488, %v547
  %v552 = vmul.f32 %v491, %v547
  %v553 = vmul.f32 %v496, %v547
  %v554 = vmul.f32 %v499, %v547
  %v555 = vmul.f32 %v504, %v547
  %v556 = vmul.f32 %v507, %v547
  %v557 = vmul.f32 %v512, %v547
  %v558 = vmul.f32 %v515, %v547
  %v559 = vmul.f32 %v520, %v547
  %v560 = vmul.f32 %v523, %v547
  %v561 = vmul.f32 %v528, %v547
  %v562 = vmul.f32 %v531, %v547
  %v563 = vmul.f32 %v536, %v547
  %v564 = vmul.f32 %v539, %v547
  %v565 = vld [vmem:[%s3] sm:$0x1]
  %v567 = vlaneseq
  %v568 = vshrl.u32 %v567, 7
  %v569 = vsub.s32 0, %v568
  %v570 = vrot.slane %v565, %v569
  %v572 = vadd.f32 %v549, %v570
  %v573 = vadd.f32 %v550, %v570
  %v574 = vadd.f32 %v551, %v570
  %v575 = vadd.f32 %v552, %v570
  %v576 = vadd.f32 %v553, %v570
  %v577 = vadd.f32 %v554, %v570
  %v578 = vadd.f32 %v555, %v570
  %v579 = vadd.f32 %v556, %v570
  %v580 = vadd.f32 %v557, %v570
  %v581 = vadd.f32 %v558, %v570
  %v582 = vadd.f32 %v559, %v570
  %v583 = vadd.f32 %v560, %v570
  %v584 = vadd.f32 %v561, %v570
  %v585 = vadd.f32 %v562, %v570
  %v586 = vadd.f32 %v563, %v570
  %v587 = vadd.f32 %v564, %v570
  %v588 = vld [vmem:[%s4] sm:$0xf]
  %v589 = vld [vmem:[%s4 + $0x4] sm:$0xf]
  %v590 = vld [vmem:[%s4 + $0x8] sm:$0xf]
  %v591 = vld [vmem:[%s4 + $0xc] sm:$0xf]
  %v592 = vld [vmem:[%s4 + $0x10] sm:$0xf]
  %v593 = vld [vmem:[%s4 + $0x14] sm:$0xf]
  %v594 = vld [vmem:[%s4 + $0x18] sm:$0xf]
  %v595 = vld [vmem:[%s4 + $0x1c] sm:$0xf]
  %v596 = vld [vmem:[%s4 + $0x20] sm:$0xf]
  %v597 = vld [vmem:[%s4 + $0x24] sm:$0xf]
  %v598 = vld [vmem:[%s4 + $0x28] sm:$0xf]
  %v599 = vld [vmem:[%s4 + $0x2c] sm:$0xf]
  %v600 = vld [vmem:[%s4 + $0x30] sm:$0xf]
  %v601 = vld [vmem:[%s4 + $0x34] sm:$0xf]
  %v602 = vld [vmem:[%s4 + $0x38] sm:$0xf]
  %v603 = vld [vmem:[%s4 + $0x3c] sm:$0xf]
  %v604 = vunpack.c.l.bf16 %v588
  %v605 = vunpack.c.l.bf16 %v589
  %v606 = vunpack.c.l.bf16 %v590
  %v607 = vunpack.c.l.bf16 %v591
  %v608 = vunpack.c.l.bf16 %v592
  %v609 = vunpack.c.l.bf16 %v593
  %v610 = vunpack.c.l.bf16 %v594
  %v611 = vunpack.c.l.bf16 %v595
  %v612 = vunpack.c.l.bf16 %v596
  %v613 = vunpack.c.l.bf16 %v597
  %v614 = vunpack.c.l.bf16 %v598
  %v615 = vunpack.c.l.bf16 %v599
  %v616 = vunpack.c.l.bf16 %v600
  %v617 = vunpack.c.l.bf16 %v601
  %v618 = vunpack.c.l.bf16 %v602
  %v619 = vunpack.c.l.bf16 %v603
  %v620 = vld [vmem:[%s5] sm:$0x1]
  %v622 = vlaneseq
  %v623 = vshrl.u32 %v622, 7
  %v624 = vsub.s32 0, %v623
  %v625 = vrot.slane %v620, %v624
  %v627 = vmul.f32 %v604, %v625
  %v628 = vmul.f32 %v605, %v625
  %v629 = vmul.f32 %v606, %v625
  %v630 = vmul.f32 %v607, %v625
  %v631 = vmul.f32 %v608, %v625
  %v632 = vmul.f32 %v609, %v625
  %v633 = vmul.f32 %v610, %v625
  %v634 = vmul.f32 %v611, %v625
  %v635 = vmul.f32 %v612, %v625
  %v636 = vmul.f32 %v613, %v625
  %v637 = vmul.f32 %v614, %v625
  %v638 = vmul.f32 %v615, %v625
  %v639 = vmul.f32 %v616, %v625
  %v640 = vmul.f32 %v617, %v625
  %v641 = vmul.f32 %v618, %v625
  %v642 = vmul.f32 %v619, %v625
  %v643 = vadd.f32 %v572, %v627
  %v644 = vadd.f32 %v573, %v628
  %v645 = vadd.f32 %v574, %v629
  %v646 = vadd.f32 %v575, %v630
  %v647 = vadd.f32 %v576, %v631
  %v648 = vadd.f32 %v577, %v632
  %v649 = vadd.f32 %v578, %v633
  %v650 = vadd.f32 %v579, %v634
  %v651 = vadd.f32 %v580, %v635
  %v652 = vadd.f32 %v581, %v636
  %v653 = vadd.f32 %v582, %v637
  %v654 = vadd.f32 %v583, %v638
  %v655 = vadd.f32 %v584, %v639
  %v656 = vadd.f32 %v585, %v640
  %v657 = vadd.f32 %v586, %v641
  %v658 = vadd.f32 %v587, %v642
  %v659 = vld [vmem:[%s6] sm:$0x1]
  %v661 = vlaneseq
  %v662 = vshrl.u32 %v661, 7
  %v663 = vsub.s32 0, %v662
  %v664 = vrot.slane %v659, %v663
  %v666 = vadd.f32 %v643, %v664
  %v667 = vadd.f32 %v644, %v664
  %v668 = vadd.f32 %v645, %v664
  %v669 = vadd.f32 %v646, %v664
  %v670 = vadd.f32 %v647, %v664
  %v671 = vadd.f32 %v648, %v664
  %v672 = vadd.f32 %v649, %v664
  %v673 = vadd.f32 %v650, %v664
  %v674 = vadd.f32 %v651, %v664
  %v675 = vadd.f32 %v652, %v664
  %v676 = vadd.f32 %v653, %v664
  %v677 = vadd.f32 %v654, %v664
  %v678 = vadd.f32 %v655, %v664
  %v679 = vadd.f32 %v656, %v664
  %v680 = vadd.f32 %v657, %v664
  %v681 = vadd.f32 %v658, %v664
  %v682 = vmax.f32 %v666, 0.0
  %v683 = vmax.f32 %v667, 0.0
  %v684 = vmax.f32 %v668, 0.0
  %v685 = vmax.f32 %v669, 0.0
  %v686 = vmax.f32 %v670, 0.0
  %v687 = vmax.f32 %v671, 0.0
  %v688 = vmax.f32 %v672, 0.0
  %v689 = vmax.f32 %v673, 0.0
  %v690 = vmax.f32 %v674, 0.0
  %v691 = vmax.f32 %v675, 0.0
  %v692 = vmax.f32 %v676, 0.0
  %v693 = vmax.f32 %v677, 0.0
  %v694 = vmax.f32 %v678, 0.0
  %v695 = vmax.f32 %v679, 0.0
  %v696 = vmax.f32 %v680, 0.0
  %v697 = vmax.f32 %v681, 0.0
  %v698 = vpack.c.bf16 %v683, %v682
  %v699 = vpack.c.bf16 %v685, %v684
  %v700 = vpack.c.bf16 %v687, %v686
  %v701 = vpack.c.bf16 %v689, %v688
  %v702 = vpack.c.bf16 %v691, %v690
  %v703 = vpack.c.bf16 %v693, %v692
  %v704 = vpack.c.bf16 %v695, %v694
  %v705 = vpack.c.bf16 %v697, %v696
  %v714 = vunpack.c.l.b16 %v698
  %v715 = vunpack.c.h.b16 %v698
  %v716 = vunpack.c.l.b16 %v699
  %v717 = vunpack.c.h.b16 %v699
  %v718 = vunpack.c.l.b16 %v700
  %v719 = vunpack.c.h.b16 %v700
  %v720 = vunpack.c.l.b16 %v701
  %v721 = vunpack.c.h.b16 %v701
  %v722 = vunpack.c.l.b16 %v702
  %v723 = vunpack.c.h.b16 %v702
  %v724 = vunpack.c.l.b16 %v703
  %v725 = vunpack.c.h.b16 %v703
  %v726 = vunpack.c.l.b16 %v704
  %v727 = vunpack.c.h.b16 %v704
  %v728 = vunpack.c.l.b16 %v705
  %v729 = vunpack.c.h.b16 %v705
  %v730 = vpack.c.b16 %v714, %v714
  %v731 = vpack.c.b16 %v715, %v715
  %v732 = vpack.c.b16 %v716, %v716
  %v733 = vpack.c.b16 %v717, %v717
  %v734 = vpack.c.b16 %v718, %v718
  %v735 = vpack.c.b16 %v719, %v719
  %v736 = vpack.c.b16 %v720, %v720
  %v737 = vpack.c.b16 %v721, %v721
  %v738 = vpack.c.b16 %v722, %v722
  %v739 = vpack.c.b16 %v723, %v723
  %v740 = vpack.c.b16 %v724, %v724
  %v741 = vpack.c.b16 %v725, %v725
  %v742 = vpack.c.b16 %v726, %v726
  %v743 = vpack.c.b16 %v727, %v727
  %v744 = vpack.c.b16 %v728, %v728
  %v745 = vpack.c.b16 %v729, %v729
  %762 = vst [vmem:[%s7] sm:$0xf] %v730
  %763 = vst [vmem:[%s7 + $0x4] sm:$0xf] %v731
  %764 = vst [vmem:[%s7 + $0x8] sm:$0xf] %v732
  %765 = vst [vmem:[%s7 + $0xc] sm:$0xf] %v733
  %766 = vst [vmem:[%s7 + $0x10] sm:$0xf] %v734
  %767 = vst [vmem:[%s7 + $0x14] sm:$0xf] %v735
  %768 = vst [vmem:[%s7 + $0x18] sm:$0xf] %v736
  %769 = vst [vmem:[%s7 + $0x1c] sm:$0xf] %v737
  %770 = vst [vmem:[%s7 + $0x20] sm:$0xf] %v738
  %771 = vst [vmem:[%s7 + $0x24] sm:$0xf] %v739
  %772 = vst [vmem:[%s7 + $0x28] sm:$0xf] %v740
  %773 = vst [vmem:[%s7 + $0x2c] sm:$0xf] %v741
  %774 = vst [vmem:[%s7 + $0x30] sm:$0xf] %v742
  %775 = vst [vmem:[%s7 + $0x34] sm:$0xf] %v743
  %776 = vst [vmem:[%s7 + $0x38] sm:$0xf] %v744
  %777 = vst [vmem:[%s7 + $0x3c] sm:$0xf] %v745
  // Predicated region
  $region30: #{resnet_forward.12} parent=0 // pred_check
    _
  $region31: #{resnet_forward.12} parent=0 // pred_check_branch
    %779 = sbr.rel (0) target = $region33
  $region32: #{resnet_forward.12} parent=0 // pred_region
    _
  $region33: #{resnet_forward.12} parent=0 // pred_fallthru
    _
  // Predicated region
  $region34: #{resnet_forward.12} parent=0 // pred_check
    _
  $region35: #{resnet_forward.12} parent=0 // pred_check_branch
    %781 = sbr.rel (0) target = $region37
  $region36: #{resnet_forward.12} parent=0 // pred_region
    _
  $region37: #{resnet_forward.12} parent=0 // pred_fallthru
    _

// kernel: resnet_forward.15
$region0: #{resnet_forward.15}
  #allocation0 [shape = 'u32[]', space=smem, size = 0x4, offset = 0x4, fixed_abs, tag = 'smem constant byte address 0x4 - core index']
  #allocation1 [shape = 'u32[144,128]{1,0:T(1,128)}', space=vmem, size = 0x12000, scoped, tag = 'internal scratch']
  %s0 = inlined_call_operand.vmem [shape: bf16[2,16,64], index: 0, kind: input, shape index: {}]
  %s1 = inlined_call_operand.vmem [shape: f32[64,128], index: 1, kind: input, shape index: {}]
  %s2 = inlined_call_operand.vmem [shape: f32[1,128], index: 2, kind: input, shape index: {}]
  %s3 = inlined_call_operand.hbm [shape: f32[2,128], index: 3, kind: output, shape index: {}]
  %s4 = sld [smem:[#allocation0]]
  $region22: #{resnet_forward.15} parent=0
    _
  %s6 = ssub.s32 1, %s4
  %s7 = scalar_select 0, %s6, %s4
  $region1: #{resnet_forward.15} parent=0
    #allocation2 [shape = 'u8[1024]{0}', space=vmem, size = 0x400, scoped, tag = 'output window, operand 0, single buffered']
    #allocation3 [shape = 's32[1]{0}', space=sflag, size = 0x4, scoped, tag = 'scoped memory for resnet_forward.15']
    %8 = vsyncpa [#allocation3], 0
    // Predicated region
    $region2: #{resnet_forward.15} parent=1 // pred_check
      _
    $region3: #{resnet_forward.15} parent=1 // pred_check_branch
      %10 = sbr.rel (0) target = $region5
    $region4: #{resnet_forward.15} parent=1 // pred_region
      _
    $region5: #{resnet_forward.15} parent=1 // pred_fallthru
      _
    // Predicated region
    $region6: #{resnet_forward.15} parent=1 // pred_check
      _
    $region7: #{resnet_forward.15} parent=1 // pred_check_branch
      %12 = sbr.rel (0) target = $region9
    $region8: #{resnet_forward.15} parent=1 // pred_region
      _
    $region9: #{resnet_forward.15} parent=1 // pred_fallthru
      _
    // Predicated region
    $region10: #{resnet_forward.15} parent=1 // pred_check
      _
    $region11: #{resnet_forward.15} parent=1 // pred_check_branch
      %14 = sbr.rel (0) target = $region13
    $region12: #{resnet_forward.15} parent=1 // pred_region
      _
    $region13: #{resnet_forward.15} parent=1 // pred_fallthru
      _
    %v15 = vld [vmem:[%s0] sm:$0xf]
    %v16 = vld [vmem:[%s0 + $0x4] sm:$0xf]
    %v17 = vld [vmem:[%s0 + $0x8] sm:$0xf]
    %v18 = vld [vmem:[%s0 + $0xc] sm:$0xf]
    %v19 = vunpack.c.l.bf16 %v15
    %v20 = vunpack.c.l.bf16 %v16
    %v21 = vunpack.c.l.bf16 %v17
    %v22 = vunpack.c.l.bf16 %v18
    %vm23 = vcmask 523264
    %v24 = vsel %vm23, %v19, 0.0
    %v25 = vsel %vm23, %v20, 0.0
    %v26 = vadd.f32 %v24, %v25
    %v27 = vrot.slane %v26, 4
    %v28 = vadd.f32 %v26, %v27
    %v29 = vrot.slane %v28, 2
    %v30 = vadd.f32 %v28, %v29
    %v31 = vrot.slane %v30, 1
    %v32 = vadd.f32 %v30, %v31
    %v33 = vsel %vm23, %v21, 0.0
    %v34 = vsel %vm23, %v22, 0.0
    %v35 = vadd.f32 %v33, %v34
    %v36 = vrot.slane %v35, 4
    %v37 = vadd.f32 %v35, %v36
    %v38 = vrot.slane %v37, 2
    %v39 = vadd.f32 %v37, %v38
    %v40 = vrot.slane %v39, 1
    %v41 = vadd.f32 %v39, %v40
    %v42 = vrcp.pop 16.0
    %v43 = vmul.f32 %v32, %v42
    %v44 = vmul.f32 %v41, %v42
    %v45 = vld [vmem:[%s1] sm:$0xff]
    %v46 = vld [vmem:[%s1 + $0x8] sm:$0xff]
    %v47 = vld [vmem:[%s1 + $0x10] sm:$0xff]
    %v48 = vld [vmem:[%s1 + $0x18] sm:$0xff]
    %v49 = vld [vmem:[%s1 + $0x20] sm:$0xff]
    %v50 = vld [vmem:[%s1 + $0x28] sm:$0xff]
    %v51 = vld [vmem:[%s1 + $0x30] sm:$0xff]
    %v52 = vld [vmem:[%s1 + $0x38] sm:$0xff]
    %v53 = vld [vmem:[%s2] sm:$0x1]
    %v55 = vlaneseq
    %v56 = vshrl.u32 %v55, 7
    %v57 = vsub.s32 0, %v56
    %v58 = vrot.slane %v53, %v57
    %vm62 = vcmask 1041409
    %v63 = vsel %vm62, %v44, %v43
    %v64 = vsel %vm23, %v63, 0
    %66 = vmatprep.subr.mxu0 0.0
    %67 = vmatpush1.msra.mxu0 %v45
    %68 = vmatprep.subr.mxu0 0.0
    %69 = vmatpush1.msra.mxu0 %v46
    %70 = vmatprep.subr.mxu0 0.0
    %71 = vmatpush1.msra.mxu0 %v47
    %72 = vmatprep.subr.mxu0 0.0
    %73 = vmatpush1.msra.mxu0 %v48
    %74 = vmatprep.subr.mxu0 0.0
    %75 = vmatpush1.msra.mxu0 %v49
    %76 = vmatprep.subr.mxu0 0.0
    %77 = vmatpush1.msra.mxu0 %v50
    %78 = vmatprep.subr.mxu0 0.0
    %79 = vmatpush1.msra.mxu0 %v51
    %80 = vmatprep.subr.mxu0 0.0
    %81 = vmatpush1.msra.mxu0 %v52
    %82 = vmatprep.subr.mxu0 0.0
    %83 = vmatpush1.msra.mxu0 0.0
    %84 = vmatprep.subr.mxu0 0.0
    %85 = vmatpush1.msra.mxu0 0.0
    %86 = vmatprep.subr.mxu0 0.0
    %87 = vmatpush1.msra.mxu0 0.0
    %88 = vmatprep.subr.mxu0 0.0
    %89 = vmatpush1.msra.mxu0 0.0
    %90 = vmatprep.subr.mxu0 0.0
    %91 = vmatpush1.msra.mxu0 0.0
    %92 = vmatprep.subr.mxu0 0.0
    %93 = vmatpush1.msra.mxu0 0.0
    %94 = vmatprep.subr.mxu0 0.0
    %95 = vmatpush1.msra.mxu0 0.0
    %96 = vmatprep.subr.mxu0 0.0
    %97 = vmatpush1.msra.mxu0 0.0
    %98 = vmatprep.subr.mxu0 0.0
    %99 = vmatpush1.msra.mxu0 0.0
    %100 = vmatprep.subr.mxu0 0.0
    %101 = vmatpush1.msra.mxu0 0.0
    %102 = vmatprep.subr.mxu0 0.0
    %103 = vmatpush1.msra.mxu0 0.0
    %104 = vmatprep.subr.mxu0 0.0
    %105 = vmatpush1.msra.mxu0 0.0
    %106 = vmatprep.subr.mxu0 0.0
    %107 = vmatpush1.msra.mxu0 0.0
    %108 = vmatprep.subr.mxu0 0.0
    %109 = vmatpush1.msra.mxu0 0.0
    %110 = vmatprep.subr.mxu0 0.0
    %111 = vmatpush1.msra.mxu0 0.0
    %112 = vmatprep.subr.mxu0 0.0
    %113 = vmatpush1.msra.mxu0 0.0
    %114 = vmatprep.subr.mxu0 0.0
    %115 = vmatpush1.msra.mxu0 0.0
    %116 = vmatprep.subr.mxu0 0.0
    %117 = vmatpush1.msra.mxu0 0.0
    %118 = vmatprep.subr.mxu0 0.0
    %119 = vmatpush1.msra.mxu0 0.0
    %120 = vmatprep.subr.mxu0 0.0
    %121 = vmatpush1.msra.mxu0 0.0
    %122 = vmatprep.subr.mxu0 0.0
    %123 = vmatpush1.msra.mxu0 0.0
    %124 = vmatprep.subr.mxu0 0.0
    %125 = vmatpush1.msra.mxu0 0.0
    %126 = vmatprep.subr.mxu0 0.0
    %127 = vmatpush1.msra.mxu0 0.0
    %128 = vmatprep.subr.mxu0 0.0
    %129 = vmatpush1.msra.mxu0 0.0
    %130 = vmatprep.mubr.f32.mxu0 0.0
    %131 = vmatmul.mubr.f32.gmra.mrb[0].mxu0 %v64
    %v132 = vpop.f32.mrb[0].mxu0
    %v133 = vadd.f32 %v58, %v132
    %v134 = vpop.f32.mrb[0].mxu0
    %135 = vdwg.mxu0
    %136 = vst [vmem:[#allocation2] sm:$0x3] %v133
    // Predicated region
    $region14: #{resnet_forward.15} parent=1 // pred_check
      _
    $region15: #{resnet_forward.15} parent=1 // pred_check_branch
      %138 = sbr.rel (0) target = $region17
    $region16: #{resnet_forward.15} parent=1 // pred_region
      %s140 = ssub.s32 32, 32
      %141 = vsyncadd [#allocation3], %s140
      %s143 = sshll.u32 [#allocation2], 4
      %s144 = int_to_ptr.vmem [resolvable:$true] %s143
      %146 = dma.vmem_to_hbm [thread:$0]  %s144, 32, %s3, [#allocation3]
    $region17: #{resnet_forward.15} parent=1 // pred_fallthru
      _
    // Predicated region
    $region18: #{resnet_forward.15} parent=1 // pred_check
      _
    $region19: #{resnet_forward.15} parent=1 // pred_check_branch
      %148 = sbr.rel (0) target = $region21
    $region20: #{resnet_forward.15} parent=1 // pred_region
      %149 = dma.done [#allocation3], 32
    $region21: #{resnet_forward.15} parent=1 // pred_fallthru
      _
    %150 = vsyncpa [#allocation3], 1

// kernel: resnet_forward.13
$region0: #{resnet_forward.13}
  #allocation0 [shape = 'u32[]', space=smem, size = 0x4, offset = 0x4, fixed_abs, tag = 'smem constant byte address 0x4 - core index']
  #allocation1 [shape = 'u32[144,128]{1,0:T(1,128)}', space=vmem, size = 0x12000, scoped, tag = 'internal scratch']
  %s0 = inlined_call_operand.vmem [shape: bf16[32,288], index: 0, kind: input, shape index: {}]
  %s1 = inlined_call_operand.vmem [shape: bf16[288,128], index: 1, kind: input, shape index: {}]
  %s2 = inlined_call_operand.vmem [shape: f32[1,128], index: 2, kind: input, shape index: {}]
  %s3 = inlined_call_operand.vmem [shape: f32[1,128], index: 3, kind: input, shape index: {}]
  %s4 = inlined_call_operand.vmem [shape: bf16[32,128], index: 4, kind: output, shape index: {}]
  %s5 = sld [smem:[#allocation0]]
  $region26: #{resnet_forward.13} parent=0
    _
  %s7 = ssub.s32 1, %s5
  %s8 = scalar_select 0, %s7, %s5
  // Predicated region
  $region2: #{resnet_forward.13} parent=0 // pred_check
    _
  $region3: #{resnet_forward.13} parent=0 // pred_check_branch
    %10 = sbr.rel (0) target = $region5
  $region4: #{resnet_forward.13} parent=0 // pred_region
    _
  $region5: #{resnet_forward.13} parent=0 // pred_fallthru
    _
  // Predicated region
  $region6: #{resnet_forward.13} parent=0 // pred_check
    _
  $region7: #{resnet_forward.13} parent=0 // pred_check_branch
    %12 = sbr.rel (0) target = $region9
  $region8: #{resnet_forward.13} parent=0 // pred_region
    _
  $region9: #{resnet_forward.13} parent=0 // pred_fallthru
    _
  // Predicated region
  $region10: #{resnet_forward.13} parent=0 // pred_check
    _
  $region11: #{resnet_forward.13} parent=0 // pred_check_branch
    %14 = sbr.rel (0) target = $region13
  $region12: #{resnet_forward.13} parent=0 // pred_region
    _
  $region13: #{resnet_forward.13} parent=0 // pred_fallthru
    _
  // Predicated region
  $region14: #{resnet_forward.13} parent=0 // pred_check
    _
  $region15: #{resnet_forward.13} parent=0 // pred_check_branch
    %16 = sbr.rel (0) target = $region17
  $region16: #{resnet_forward.13} parent=0 // pred_region
    _
  $region17: #{resnet_forward.13} parent=0 // pred_fallthru
    _
  %v18 = vld [vmem:[%s0] sm:$0xff]
  %v19 = vld [vmem:[%s0 + $0x8] sm:$0xf]
  %v20 = vld [vmem:[%s0 + $0xc] sm:$0xff]
  %v21 = vld [vmem:[%s0 + $0x14] sm:$0xf]
  %v22 = vld [vmem:[%s0 + $0x18] sm:$0xff]
  %v23 = vld [vmem:[%s0 + $0x20] sm:$0xf]
  %v24 = vld [vmem:[%s0 + $0x24] sm:$0xff]
  %v25 = vld [vmem:[%s0 + $0x2c] sm:$0xf]
  %v26 = vld [vmem:[%s1] sm:$0xf]
  %v27 = vld [vmem:[%s1 + $0x4] sm:$0xf]
  %v28 = vld [vmem:[%s1 + $0x8] sm:$0xf]
  %v29 = vld [vmem:[%s1 + $0xc] sm:$0xf]
  %v30 = vld [vmem:[%s1 + $0x10] sm:$0xf]
  %v31 = vld [vmem:[%s1 + $0x14] sm:$0xf]
  %v32 = vld [vmem:[%s1 + $0x18] sm:$0xf]
  %v33 = vld [vmem:[%s1 + $0x1c] sm:$0xf]
  %v34 = vld [vmem:[%s1 + $0x20] sm:$0xf]
  %v35 = vld [vmem:[%s1 + $0x24] sm:$0xf]
  %v36 = vld [vmem:[%s1 + $0x28] sm:$0xf]
  %v37 = vld [vmem:[%s1 + $0x2c] sm:$0xf]
  %v38 = vld [vmem:[%s1 + $0x30] sm:$0xf]
  %v39 = vld [vmem:[%s1 + $0x34] sm:$0xf]
  %v40 = vld [vmem:[%s1 + $0x38] sm:$0xf]
  %v41 = vld [vmem:[%s1 + $0x3c] sm:$0xf]
  %v42 = vld [vmem:[%s1 + $0x40] sm:$0xf]
  %v43 = vld [vmem:[%s1 + $0x44] sm:$0xf]
  %v44 = vld [vmem:[%s1 + $0x48] sm:$0xf]
  %v45 = vld [vmem:[%s1 + $0x4c] sm:$0xf]
  %v46 = vld [vmem:[%s1 + $0x50] sm:$0xf]
  %v47 = vld [vmem:[%s1 + $0x54] sm:$0xf]
  %v48 = vld [vmem:[%s1 + $0x58] sm:$0xf]
  %v49 = vld [vmem:[%s1 + $0x5c] sm:$0xf]
  %v50 = vld [vmem:[%s1 + $0x60] sm:$0xf]
  %v51 = vld [vmem:[%s1 + $0x64] sm:$0xf]
  %v52 = vld [vmem:[%s1 + $0x68] sm:$0xf]
  %v53 = vld [vmem:[%s1 + $0x6c] sm:$0xf]
  %v54 = vld [vmem:[%s1 + $0x70] sm:$0xf]
  %v55 = vld [vmem:[%s1 + $0x74] sm:$0xf]
  %v56 = vld [vmem:[%s1 + $0x78] sm:$0xf]
  %v57 = vld [vmem:[%s1 + $0x7c] sm:$0xf]
  %v58 = vld [vmem:[%s1 + $0x80] sm:$0xf]
  %v59 = vld [vmem:[%s1 + $0x84] sm:$0xf]
  %v60 = vld [vmem:[%s1 + $0x88] sm:$0xf]
  %v61 = vld [vmem:[%s1 + $0x8c] sm:$0xf]
  %v70 = vunpack.c.l.b16 %v18
  %v71 = vunpack.c.h.b16 %v18
  %v72 = vunpack.c.l.b16 %v19
  %v73 = vunpack.c.l.b16 %v20
  %v74 = vunpack.c.h.b16 %v20
  %v75 = vunpack.c.l.b16 %v21
  %v76 = vunpack.c.l.b16 %v22
  %v77 = vunpack.c.h.b16 %v22
  %v78 = vunpack.c.l.b16 %v23
  %v79 = vunpack.c.l.b16 %v24
  %v80 = vunpack.c.h.b16 %v24
  %v81 = vunpack.c.l.b16 %v25
  %v82 = vpack.c.b16 %v73, %v70
  %v83 = vpack.c.b16 %v74, %v71
  %v84 = vpack.c.b16 %v75, %v72
  %v85 = vpack.c.b16 %v79, %v76
  %v86 = vpack.c.b16 %v80, %v77
  %v87 = vpack.c.b16 %v81, %v78
  %v128 = vunpack.c.l.b16 %v26
  %v129 = vunpack.c.l.b16 %v27
  %v130 = vunpack.c.l.b16 %v28
  %v131 = vunpack.c.l.b16 %v29
  %v132 = vunpack.c.l.b16 %v30
  %v133 = vunpack.c.l.b16 %v31
  %v134 = vunpack.c.l.b16 %v32
  %v135 = vunpack.c.l.b16 %v33
  %v136 = vunpack.c.l.b16 %v34
  %v137 = vunpack.c.l.b16 %v35
  %v138 = vunpack.c.l.b16 %v36
  %v139 = vunpack.c.l.b16 %v37
  %v140 = vunpack.c.l.b16 %v38
  %v141 = vunpack.c.l.b16 %v39
  %v142 = vunpack.c.l.b16 %v40
  %v143 = vunpack.c.l.b16 %v41
  %v144 = vunpack.c.l.b16 %v42
  %v145 = vunpack.c.l.b16 %v43
  %v146 = vunpack.c.l.b16 %v44
  %v147 = vunpack.c.l.b16 %v45
  %v148 = vunpack.c.l.b16 %v46
  %v149 = vunpack.c.l.b16 %v47
  %v150 = vunpack.c.l.b16 %v48
  %v151 = vunpack.c.l.b16 %v49
  %v152 = vunpack.c.l.b16 %v50
  %v153 = vunpack.c.l.b16 %v51
  %v154 = vunpack.c.l.b16 %v52
  %v155 = vunpack.c.l.b16 %v53
  %v156 = vunpack.c.l.b16 %v54
  %v157 = vunpack.c.l.b16 %v55
  %v158 = vunpack.c.l.b16 %v56
  %v159 = vunpack.c.l.b16 %v57
  %v160 = vunpack.c.l.b16 %v58
  %v161 = vunpack.c.l.b16 %v59
  %v162 = vunpack.c.l.b16 %v60
  %v163 = vunpack.c.l.b16 %v61
  %v164 = vpack.c.b16 %v129, %v128
  %v165 = vpack.c.b16 %v131, %v130
  %v166 = vpack.c.b16 %v133, %v132
  %v167 = vpack.c.b16 %v135, %v134
  %v168 = vpack.c.b16 %v137, %v136
  %v169 = vpack.c.b16 %v139, %v138
  %v170 = vpack.c.b16 %v141, %v140
  %v171 = vpack.c.b16 %v143, %v142
  %v172 = vpack.c.b16 %v145, %v144
  %v173 = vpack.c.b16 %v147, %v146
  %v174 = vpack.c.b16 %v149, %v148
  %v175 = vpack.c.b16 %v151, %v150
  %v176 = vpack.c.b16 %v153, %v152
  %v177 = vpack.c.b16 %v155, %v154
  %v178 = vpack.c.b16 %v157, %v156
  %v179 = vpack.c.b16 %v159, %v158
  %v180 = vpack.c.b16 %v161, %v160
  %v181 = vpack.c.b16 %v163, %v162
  %vm200 = vcmask 261120
  %v202 = vsel %vm200, %v84, 0
  %v205 = vsel %vm200, %v87, 0
  %207 = vmatprep.subr.bf16.mxu0 0
  %208 = vmatpush1.bf16.msra.mxu0 %v164
  %209 = vmatprep.subr.bf16.mxu0 0
  %210 = vmatpush1.bf16.msra.mxu0 %v165
  %211 = vmatprep.subr.bf16.mxu0 0
  %212 = vmatpush1.bf16.msra.mxu0 %v166
  %213 = vmatprep.subr.bf16.mxu0 0
  %214 = vmatpush1.bf16.msra.mxu0 %v167
  %215 = vmatprep.subr.bf16.mxu0 0
  %216 = vmatpush1.bf16.msra.mxu0 %v168
  %217 = vmatprep.subr.bf16.mxu0 0
  %218 = vmatpush1.bf16.msra.mxu0 %v169
  %219 = vmatprep.subr.bf16.mxu0 0
  %220 = vmatpush1.bf16.msra.mxu0 %v170
  %221 = vmatprep.subr.bf16.mxu0 0
  %222 = vmatpush1.bf16.msra.mxu0 %v171
  %223 = vmatprep.subr.bf16.mxu0 0
  %224 = vmatpush1.bf16.msra.mxu0 %v172
  %225 = vmatprep.subr.bf16.mxu0 0
  %226 = vmatpush1.bf16.msra.mxu0 %v173
  %227 = vmatprep.subr.bf16.mxu0 0
  %228 = vmatpush1.bf16.msra.mxu0 %v174
  %229 = vmatprep.subr.bf16.mxu0 0
  %230 = vmatpush1.bf16.msra.mxu0 %v175
  %231 = vmatprep.subr.bf16.mxu0 0
  %232 = vmatpush1.bf16.msra.mxu0 %v176
  %233 = vmatprep.subr.bf16.mxu0 0
  %234 = vmatpush1.bf16.msra.mxu0 %v177
  %235 = vmatprep.subr.bf16.mxu0 0
  %236 = vmatpush1.bf16.msra.mxu0 %v178
  %237 = vmatprep.subr.bf16.mxu0 0
  %238 = vmatpush1.bf16.msra.mxu0 %v179
  %239 = vmatprep.mubr.bf16.mxu0 %v83
  %240 = vmatmul.mubr.bf16.gmra.mrb[0].mxu0 %v82
  %v241 = vpop.f32.mrb[0].mxu0
  %v242 = vadd.f32 0.0, %v241
  %v243 = vpop.f32.mrb[0].mxu0
  %v244 = vpop.f32.mrb[0].mxu0
  %v245 = vadd.f32 0.0, %v244
  %v246 = vpop.f32.mrb[0].mxu0
  %247 = vmatprep.mubr.bf16.mxu0 %v86
  %248 = vmatmul.mubr.bf16.gmra.mrb[0].mxu0 %v85
  %v249 = vpop.f32.mrb[0].mxu0
  %v250 = vadd.f32 0.0, %v249
  %v251 = vpop.f32.mrb[0].mxu0
  %v252 = vpop.f32.mrb[0].mxu0
  %v253 = vadd.f32 0.0, %v252
  %v254 = vpop.f32.mrb[0].mxu0
  %255 = vdwg.mxu0
  %256 = vmatprep.subr.bf16.mxu0 0
  %257 = vmatpush1.bf16.msra.mxu0 %v180
  %258 = vmatprep.subr.bf16.mxu0 0
  %259 = vmatpush1.bf16.msra.mxu0 %v181
  %260 = vmatprep.subr.bf16.mxu0 0
  %261 = vmatpush1.bf16.msra.mxu0 0
  %262 = vmatprep.subr.bf16.mxu0 0
  %263 = vmatpush1.bf16.msra.mxu0 0
  %264 = vmatprep.subr.bf16.mxu0 0
  %265 = vmatpush1.bf16.msra.mxu0 0
  %266 = vmatprep.subr.bf16.mxu0 0
  %267 = vmatpush1.bf16.msra.mxu0 0
  %268 = vmatprep.subr.bf16.mxu0 0
  %269 = vmatpush1.bf16.msra.mxu0 0
  %270 = vmatprep.subr.bf16.mxu0 0
  %271 = vmatpush1.bf16.msra.mxu0 0
  %272 = vmatprep.subr.bf16.mxu0 0
  %273 = vmatpush1.bf16.msra.mxu0 0
  %274 = vmatprep.subr.bf16.mxu0 0
  %275 = vmatpush1.bf16.msra.mxu0 0
  %276 = vmatprep.subr.bf16.mxu0 0
  %277 = vmatpush1.bf16.msra.mxu0 0
  %278 = vmatprep.subr.bf16.mxu0 0
  %279 = vmatpush1.bf16.msra.mxu0 0
  %280 = vmatprep.subr.bf16.mxu0 0
  %281 = vmatpush1.bf16.msra.mxu0 0
  %282 = vmatprep.subr.bf16.mxu0 0
  %283 = vmatpush1.bf16.msra.mxu0 0
  %284 = vmatprep.subr.bf16.mxu0 0
  %285 = vmatpush1.bf16.msra.mxu0 0
  %286 = vmatprep.subr.bf16.mxu0 0
  %287 = vmatpush1.bf16.msra.mxu0 0
  %288 = vmatprep.mubr.bf16.mxu0 0
  %289 = vmatmul.mubr.bf16.gmra.mrb[0].mxu0 %v202
  %v290 = vpop.f32.mrb[0].mxu0
  %v291 = vadd.f32 %v242, %v290
  %v292 = vpop.f32.mrb[0].mxu0
  %v293 = vpop.f32.mrb[0].mxu0
  %v294 = vadd.f32 %v245, %v293
  %v295 = vpop.f32.mrb[0].mxu0
  %296 = vmatprep.mubr.bf16.mxu0 0
  %297 = vmatmul.mubr.bf16.gmra.mrb[0].mxu0 %v205
  %v298 = vpop.f32.mrb[0].mxu0
  %v299 = vadd.f32 %v250, %v298
  %v300 = vpop.f32.mrb[0].mxu0
  %v301 = vpop.f32.mrb[0].mxu0
  %v302 = vadd.f32 %v253, %v301
  %v303 = vpop.f32.mrb[0].mxu0
  %304 = vdwg.mxu0
  %v305 = vld [vmem:[%s2] sm:$0x1]
  %v307 = vlaneseq
  %v308 = vshrl.u32 %v307, 7
  %v309 = vsub.s32 0, %v308
  %v310 = vrot.slane %v305, %v309
  %v312 = vmul.f32 %v291, %v310
  %v313 = vmul.f32 %v294, %v310
  %v314 = vmul.f32 %v299, %v310
  %v315 = vmul.f32 %v302, %v310
  %v316 = vld [vmem:[%s3] sm:$0x1]
  %v318 = vlaneseq
  %v319 = vshrl.u32 %v318, 7
  %v320 = vsub.s32 0, %v319
  %v321 = vrot.slane %v316, %v320
  %v323 = vadd.f32 %v312, %v321
  %v324 = vadd.f32 %v313, %v321
  %v325 = vadd.f32 %v314, %v321
  %v326 = vadd.f32 %v315, %v321
  %v327 = vmax.f32 %v323, 0.0
  %v328 = vmax.f32 %v324, 0.0
  %v329 = vmax.f32 %v325, 0.0
  %v330 = vmax.f32 %v326, 0.0
  %v331 = vpack.c.bf16 %v328, %v327
  %v332 = vpack.c.bf16 %v330, %v329
  %v335 = vunpack.c.l.b16 %v331
  %v336 = vunpack.c.h.b16 %v331
  %v337 = vunpack.c.l.b16 %v332
  %v338 = vunpack.c.h.b16 %v332
  %v339 = vpack.c.b16 %v335, %v335
  %v340 = vpack.c.b16 %v336, %v336
  %v341 = vpack.c.b16 %v337, %v337
  %v342 = vpack.c.b16 %v338, %v338
  %347 = vst [vmem:[%s4] sm:$0xf] %v339
  %348 = vst [vmem:[%s4 + $0x4] sm:$0xf] %v340
  %349 = vst [vmem:[%s4 + $0x8] sm:$0xf] %v341
  %350 = vst [vmem:[%s4 + $0xc] sm:$0xf] %v342
  // Predicated region
  $region18: #{resnet_forward.13} parent=0 // pred_check
    _
  $region19: #{resnet_forward.13} parent=0 // pred_check_branch
    %352 = sbr.rel (0) target = $region21
  $region20: #{resnet_forward.13} parent=0 // pred_region
    _
  $region21: #{resnet_forward.13} parent=0 // pred_fallthru
    _
  // Predicated region
  $region22: #{resnet_forward.13} parent=0 // pred_check
    _
  $region23: #{resnet_forward.13} parent=0 // pred_check_branch
    %354 = sbr.rel (0) target = $region25
  $region24: #{resnet_forward.13} parent=0 // pred_region
    _
  $region25: #{resnet_forward.13} parent=0 // pred_fallthru
    _

// kernel: resnet_forward.14
$region0: #{resnet_forward.14}
  #allocation0 [shape = 'u32[]', space=smem, size = 0x4, offset = 0x4, fixed_abs, tag = 'smem constant byte address 0x4 - core index']
  #allocation1 [shape = 'u32[144,128]{1,0:T(1,128)}', space=vmem, size = 0x12000, scoped, tag = 'internal scratch']
  %s0 = inlined_call_operand.vmem [shape: bf16[32,576], index: 0, kind: input, shape index: {}]
  %s1 = inlined_call_operand.vmem [shape: bf16[576,128], index: 1, kind: input, shape index: {}]
  %s2 = inlined_call_operand.vmem [shape: f32[1,128], index: 2, kind: input, shape index: {}]
  %s3 = inlined_call_operand.vmem [shape: f32[1,128], index: 3, kind: input, shape index: {}]
  %s4 = inlined_call_operand.vmem [shape: bf16[32,128], index: 4, kind: input, shape index: {}]
  %s5 = inlined_call_operand.vmem [shape: f32[1,128], index: 5, kind: input, shape index: {}]
  %s6 = inlined_call_operand.vmem [shape: f32[1,128], index: 6, kind: input, shape index: {}]
  %s7 = inlined_call_operand.vmem [shape: bf16[32,128], index: 7, kind: output, shape index: {}]
  %s8 = sld [smem:[#allocation0]]
  $region38: #{resnet_forward.14} parent=0
    _
  %s10 = ssub.s32 1, %s8
  %s11 = scalar_select 0, %s10, %s8
  // Predicated region
  $region2: #{resnet_forward.14} parent=0 // pred_check
    _
  $region3: #{resnet_forward.14} parent=0 // pred_check_branch
    %13 = sbr.rel (0) target = $region5
  $region4: #{resnet_forward.14} parent=0 // pred_region
    _
  $region5: #{resnet_forward.14} parent=0 // pred_fallthru
    _
  // Predicated region
  $region6: #{resnet_forward.14} parent=0 // pred_check
    _
  $region7: #{resnet_forward.14} parent=0 // pred_check_branch
    %15 = sbr.rel (0) target = $region9
  $region8: #{resnet_forward.14} parent=0 // pred_region
    _
  $region9: #{resnet_forward.14} parent=0 // pred_fallthru
    _
  // Predicated region
  $region10: #{resnet_forward.14} parent=0 // pred_check
    _
  $region11: #{resnet_forward.14} parent=0 // pred_check_branch
    %17 = sbr.rel (0) target = $region13
  $region12: #{resnet_forward.14} parent=0 // pred_region
    _
  $region13: #{resnet_forward.14} parent=0 // pred_fallthru
    _
  // Predicated region
  $region14: #{resnet_forward.14} parent=0 // pred_check
    _
  $region15: #{resnet_forward.14} parent=0 // pred_check_branch
    %19 = sbr.rel (0) target = $region17
  $region16: #{resnet_forward.14} parent=0 // pred_region
    _
  $region17: #{resnet_forward.14} parent=0 // pred_fallthru
    _
  // Predicated region
  $region18: #{resnet_forward.14} parent=0 // pred_check
    _
  $region19: #{resnet_forward.14} parent=0 // pred_check_branch
    %21 = sbr.rel (0) target = $region21
  $region20: #{resnet_forward.14} parent=0 // pred_region
    _
  $region21: #{resnet_forward.14} parent=0 // pred_fallthru
    _
  // Predicated region
  $region22: #{resnet_forward.14} parent=0 // pred_check
    _
  $region23: #{resnet_forward.14} parent=0 // pred_check_branch
    %23 = sbr.rel (0) target = $region25
  $region24: #{resnet_forward.14} parent=0 // pred_region
    _
  $region25: #{resnet_forward.14} parent=0 // pred_fallthru
    _
  // Predicated region
  $region26: #{resnet_forward.14} parent=0 // pred_check
    _
  $region27: #{resnet_forward.14} parent=0 // pred_check_branch
    %25 = sbr.rel (0) target = $region29
  $region28: #{resnet_forward.14} parent=0 // pred_region
    _
  $region29: #{resnet_forward.14} parent=0 // pred_fallthru
    _
  %v27 = vld [vmem:[%s0] sm:$0xff]
  %v28 = vld [vmem:[%s0 + $0x8] sm:$0xff]
  %v29 = vld [vmem:[%s0 + $0x10] sm:$0xf]
  %v30 = vld [vmem:[%s0 + $0x14] sm:$0xff]
  %v31 = vld [vmem:[%s0 + $0x1c] sm:$0xff]
  %v32 = vld [vmem:[%s0 + $0x24] sm:$0xf]
  %v33 = vld [vmem:[%s0 + $0x28] sm:$0xff]
  %v34 = vld [vmem:[%s0 + $0x30] sm:$0xff]
  %v35 = vld [vmem:[%s0 + $0x38] sm:$0xf]
  %v36 = vld [vmem:[%s0 + $0x3c] sm:$0xff]
  %v37 = vld [vmem:[%s0 + $0x44] sm:$0xff]
  %v38 = vld [vmem:[%s0 + $0x4c] sm:$0xf]
  %v39 = vld [vmem:[%s1] sm:$0xf]
  %v40 = vld [vmem:[%s1 + $0x4] sm:$0xf]
  %v41 = vld [vmem:[%s1 + $0x8] sm:$0xf]
  %v42 = vld [vmem:[%s1 + $0xc] sm:$0xf]
  %v43 = vld [vmem:[%s1 + $0x10] sm:$0xf]
  %v44 = vld [vmem:[%s1 + $0x14] sm:$0xf]
  %v45 = vld [vmem:[%s1 + $0x18] sm:$0xf]
  %v46 = vld [vmem:[%s1 + $0x1c] sm:$0xf]
  %v47 = vld [vmem:[%s1 + $0x20] sm:$0xf]
  %v48 = vld [vmem:[%s1 + $0x24] sm:$0xf]
  %v49 = vld [vmem:[%s1 + $0x28] sm:$0xf]
  %v50 = vld [vmem:[%s1 + $0x2c] sm:$0xf]
  %v51 = vld [vmem:[%s1 + $0x30] sm:$0xf]
  %v52 = vld [vmem:[%s1 + $0x34] sm:$0xf]
  %v53 = vld [vmem:[%s1 + $0x38] sm:$0xf]
  %v54 = vld [vmem:[%s1 + $0x3c] sm:$0xf]
  %v55 = vld [vmem:[%s1 + $0x40] sm:$0xf]
  %v56 = vld [vmem:[%s1 + $0x44] sm:$0xf]
  %v57 = vld [vmem:[%s1 + $0x48] sm:$0xf]
  %v58 = vld [vmem:[%s1 + $0x4c] sm:$0xf]
  %v59 = vld [vmem:[%s1 + $0x50] sm:$0xf]
  %v60 = vld [vmem:[%s1 + $0x54] sm:$0xf]
  %v61 = vld [vmem:[%s1 + $0x58] sm:$0xf]
  %v62 = vld [vmem:[%s1 + $0x5c] sm:$0xf]
  %v63 = vld [vmem:[%s1 + $0x60] sm:$0xf]
  %v64 = vld [vmem:[%s1 + $0x64] sm:$0xf]
  %v65 = vld [vmem:[%s1 + $0x68] sm:$0xf]
  %v66 = vld [vmem:[%s1 + $0x6c] sm:$0xf]
  %v67 = vld [vmem:[%s1 + $0x70] sm:$0xf]
  %v68 = vld [vmem:[%s1 + $0x74] sm:$0xf]
  %v69 = vld [vmem:[%s1 + $0x78] sm:$0xf]
  %v70 = vld [vmem:[%s1 + $0x7c] sm:$0xf]
  %v71 = vld [vmem:[%s1 + $0x80] sm:$0xf]
  %v72 = vld [vmem:[%s1 + $0x84] sm:$0xf]
  %v73 = vld [vmem:[%s1 + $0x88] sm:$0xf]
  %v74 = vld [vmem:[%s1 + $0x8c] sm:$0xf]
  %v75 = vld [vmem:[%s1 + $0x90] sm:$0xf]
  %v76 = vld [vmem:[%s1 + $0x94] sm:$0xf]
  %v77 = vld [vmem:[%s1 + $0x98] sm:$0xf]
  %v78 = vld [vmem:[%s1 + $0x9c] sm:$0xf]
  %v79 = vld [vmem:[%s1 + $0xa0] sm:$0xf]
  %v80 = vld [vmem:[%s1 + $0xa4] sm:$0xf]
  %v81 = vld [vmem:[%s1 + $0xa8] sm:$0xf]
  %v82 = vld [vmem:[%s1 + $0xac] sm:$0xf]
  %v83 = vld [vmem:[%s1 + $0xb0] sm:$0xf]
  %v84 = vld [vmem:[%s1 + $0xb4] sm:$0xf]
  %v85 = vld [vmem:[%s1 + $0xb8] sm:$0xf]
  %v86 = vld [vmem:[%s1 + $0xbc] sm:$0xf]
  %v87 = vld [vmem:[%s1 + $0xc0] sm:$0xf]
  %v88 = vld [vmem:[%s1 + $0xc4] sm:$0xf]
  %v89 = vld [vmem:[%s1 + $0xc8] sm:$0xf]
  %v90 = vld [vmem:[%s1 + $0xcc] sm:$0xf]
  %v91 = vld [vmem:[%s1 + $0xd0] sm:$0xf]
  %v92 = vld [vmem:[%s1 + $0xd4] sm:$0xf]
  %v93 = vld [vmem:[%s1 + $0xd8] sm:$0xf]
  %v94 = vld [vmem:[%s1 + $0xdc] sm:$0xf]
  %v95 = vld [vmem:[%s1 + $0xe0] sm:$0xf]
  %v96 = vld [vmem:[%s1 + $0xe4] sm:$0xf]
  %v97 = vld [vmem:[%s1 + $0xe8] sm:$0xf]
  %v98 = vld [vmem:[%s1 + $0xec] sm:$0xf]
  %v99 = vld [vmem:[%s1 + $0xf0] sm:$0xf]
  %v100 = vld [vmem:[%s1 + $0xf4] sm:$0xf]
  %v101 = vld [vmem:[%s1 + $0xf8] sm:$0xf]
  %v102 = vld [vmem:[%s1 + $0xfc] sm:$0xf]
  %v103 = vld [vmem:[%s1 + $0x100] sm:$0xf]
  %v104 = vld [vmem:[%s1 + $0x104] sm:$0xf]
  %v105 = vld [vmem:[%s1 + $0x108] sm:$0xf]
  %v106 = vld [vmem:[%s1 + $0x10c] sm:$0xf]
  %v107 = vld [vmem:[%s1 + $0x110] sm:$0xf]
  %v108 = vld [vmem:[%s1 + $0x114] sm:$0xf]
  %v109 = vld [vmem:[%s1 + $0x118] sm:$0xf]
  %v110 = vld [vmem:[%s1 + $0x11c] sm:$0xf]
  %v123 = vunpack.c.l.b16 %v27
  %v124 = vunpack.c.h.b16 %v27
  %v125 = vunpack.c.l.b16 %v28
  %v126 = vunpack.c.h.b16 %v28
  %v127 = vunpack.c.l.b16 %v29
  %v128 = vunpack.c.l.b16 %v30
  %v129 = vunpack.c.h.b16 %v30
  %v130 = vunpack.c.l.b16 %v31
  %v131 = vunpack.c.h.b16 %v31
  %v132 = vunpack.c.l.b16 %v32
  %v133 = vunpack.c.l.b16 %v33
  %v134 = vunpack.c.h.b16 %v33
  %v135 = vunpack.c.l.b16 %v34
  %v136 = vunpack.c.h.b16 %v34
  %v137 = vunpack.c.l.b16 %v35
  %v138 = vunpack.c.l.b16 %v36
  %v139 = vunpack.c.h.b16 %v36
  %v140 = vunpack.c.l.b16 %v37
  %v141 = vunpack.c.h.b16 %v37
  %v142 = vunpack.c.l.b16 %v38
  %v143 = vpack.c.b16 %v128, %v123
  %v144 = vpack.c.b16 %v129, %v124
  %v145 = vpack.c.b16 %v130, %v125
  %v146 = vpack.c.b16 %v131, %v126
  %v147 = vpack.c.b16 %v132, %v127
  %v148 = vpack.c.b16 %v138, %v133
  %v149 = vpack.c.b16 %v139, %v134
  %v150 = vpack.c.b16 %v140, %v135
  %v151 = vpack.c.b16 %v141, %v136
  %v152 = vpack.c.b16 %v142, %v137
  %v233 = vunpack.c.l.b16 %v39
  %v234 = vunpack.c.l.b16 %v40
  %v235 = vunpack.c.l.b16 %v41
  %v236 = vunpack.c.l.b16 %v42
  %v237 = vunpack.c.l.b16 %v43
  %v238 = vunpack.c.l.b16 %v44
  %v239 = vunpack.c.l.b16 %v45
  %v240 = vunpack.c.l.b16 %v46
  %v241 = vunpack.c.l.b16 %v47
  %v242 = vunpack.c.l.b16 %v48
  %v243 = vunpack.c.l.b16 %v49
  %v244 = vunpack.c.l.b16 %v50
  %v245 = vunpack.c.l.b16 %v51
  %v246 = vunpack.c.l.b16 %v52
  %v247 = vunpack.c.l.b16 %v53
  %v248 = vunpack.c.l.b16 %v54
  %v249 = vunpack.c.l.b16 %v55
  %v250 = vunpack.c.l.b16 %v56
  %v251 = vunpack.c.l.b16 %v57
  %v252 = vunpack.c.l.b16 %v58
  %v253 = vunpack.c.l.b16 %v59
  %v254 = vunpack.c.l.b16 %v60
  %v255 = vunpack.c.l.b16 %v61
  %v256 = vunpack.c.l.b16 %v62
  %v257 = vunpack.c.l.b16 %v63
  %v258 = vunpack.c.l.b16 %v64
  %v259 = vunpack.c.l.b16 %v65
  %v260 = vunpack.c.l.b16 %v66
  %v261 = vunpack.c.l.b16 %v67
  %v262 = vunpack.c.l.b16 %v68
  %v263 = vunpack.c.l.b16 %v69
  %v264 = vunpack.c.l.b16 %v70
  %v265 = vunpack.c.l.b16 %v71
  %v266 = vunpack.c.l.b16 %v72
  %v267 = vunpack.c.l.b16 %v73
  %v268 = vunpack.c.l.b16 %v74
  %v269 = vunpack.c.l.b16 %v75
  %v270 = vunpack.c.l.b16 %v76
  %v271 = vunpack.c.l.b16 %v77
  %v272 = vunpack.c.l.b16 %v78
  %v273 = vunpack.c.l.b16 %v79
  %v274 = vunpack.c.l.b16 %v80
  %v275 = vunpack.c.l.b16 %v81
  %v276 = vunpack.c.l.b16 %v82
  %v277 = vunpack.c.l.b16 %v83
  %v278 = vunpack.c.l.b16 %v84
  %v279 = vunpack.c.l.b16 %v85
  %v280 = vunpack.c.l.b16 %v86
  %v281 = vunpack.c.l.b16 %v87
  %v282 = vunpack.c.l.b16 %v88
  %v283 = vunpack.c.l.b16 %v89
  %v284 = vunpack.c.l.b16 %v90
  %v285 = vunpack.c.l.b16 %v91
  %v286 = vunpack.c.l.b16 %v92
  %v287 = vunpack.c.l.b16 %v93
  %v288 = vunpack.c.l.b16 %v94
  %v289 = vunpack.c.l.b16 %v95
  %v290 = vunpack.c.l.b16 %v96
  %v291 = vunpack.c.l.b16 %v97
  %v292 = vunpack.c.l.b16 %v98
  %v293 = vunpack.c.l.b16 %v99
  %v294 = vunpack.c.l.b16 %v100
  %v295 = vunpack.c.l.b16 %v101
  %v296 = vunpack.c.l.b16 %v102
  %v297 = vunpack.c.l.b16 %v103
  %v298 = vunpack.c.l.b16 %v104
  %v299 = vunpack.c.l.b16 %v105
  %v300 = vunpack.c.l.b16 %v106
  %v301 = vunpack.c.l.b16 %v107
  %v302 = vunpack.c.l.b16 %v108
  %v303 = vunpack.c.l.b16 %v109
  %v304 = vunpack.c.l.b16 %v110
  %v305 = vpack.c.b16 %v234, %v233
  %v306 = vpack.c.b16 %v236, %v235
  %v307 = vpack.c.b16 %v238, %v237
  %v308 = vpack.c.b16 %v240, %v239
  %v309 = vpack.c.b16 %v242, %v241
  %v310 = vpack.c.b16 %v244, %v243
  %v311 = vpack.c.b16 %v246, %v245
  %v312 = vpack.c.b16 %v248, %v247
  %v313 = vpack.c.b16 %v250, %v249
  %v314 = vpack.c.b16 %v252, %v251
  %v315 = vpack.c.b16 %v254, %v253
  %v316 = vpack.c.b16 %v256, %v255
  %v317 = vpack.c.b16 %v258, %v257
  %v318 = vpack.c.b16 %v260, %v259
  %v319 = vpack.c.b16 %v262, %v261
  %v320 = vpack.c.b16 %v264, %v263
  %v321 = vpack.c.b16 %v266, %v265
  %v322 = vpack.c.b16 %v268, %v267
  %v323 = vpack.c.b16 %v270, %v269
  %v324 = vpack.c.b16 %v272, %v271
  %v325 = vpack.c.b16 %v274, %v273
  %v326 = vpack.c.b16 %v276, %v275
  %v327 = vpack.c.b16 %v278, %v277
  %v328 = vpack.c.b16 %v280, %v279
  %v329 = vpack.c.b16 %v282, %v281
  %v330 = vpack.c.b16 %v284, %v283
  %v331 = vpack.c.b16 %v286, %v285
  %v332 = vpack.c.b16 %v288, %v287
  %v333 = vpack.c.b16 %v290, %v289
  %v334 = vpack.c.b16 %v292, %v291
  %v335 = vpack.c.b16 %v294, %v293
  %v336 = vpack.c.b16 %v296, %v295
  %v337 = vpack.c.b16 %v298, %v297
  %v338 = vpack.c.b16 %v300, %v299
  %v339 = vpack.c.b16 %v302, %v301
  %v340 = vpack.c.b16 %v304, %v303
  %vm377 = vcmask 523264
  %v379 = vsel %vm377, %v147, 0
  %v382 = vsel %vm377, %v152, 0
  %384 = vmatprep.subr.bf16.mxu0 0
  %385 = vmatpush1.bf16.msra.mxu0 %v305
  %386 = vmatprep.subr.bf16.mxu0 0
  %387 = vmatpush1.bf16.msra.mxu0 %v306
  %388 = vmatprep.subr.bf16.mxu0 0
  %389 = vmatpush1.bf16.msra.mxu0 %v307
  %390 = vmatprep.subr.bf16.mxu0 0
  %391 = vmatpush1.bf16.msra.mxu0 %v308
  %392 = vmatprep.subr.bf16.mxu0 0
  %393 = vmatpush1.bf16.msra.mxu0 %v309
  %394 = vmatprep.subr.bf16.mxu0 0
  %395 = vmatpush1.bf16.msra.mxu0 %v310
  %396 = vmatprep.subr.bf16.mxu0 0
  %397 = vmatpush1.bf16.msra.mxu0 %v311
  %398 = vmatprep.subr.bf16.mxu0 0
  %399 = vmatpush1.bf16.msra.mxu0 %v312
  %400 = vmatprep.subr.bf16.mxu0 0
  %401 = vmatpush1.bf16.msra.mxu0 %v313
  %402 = vmatprep.subr.bf16.mxu0 0
  %403 = vmatpush1.bf16.msra.mxu0 %v314
  %404 = vmatprep.subr.bf16.mxu0 0
  %405 = vmatpush1.bf16.msra.mxu0 %v315
  %406 = vmatprep.subr.bf16.mxu0 0
  %407 = vmatpush1.bf16.msra.mxu0 %v316
  %408 = vmatprep.subr.bf16.mxu0 0
  %409 = vmatpush1.bf16.msra.mxu0 %v317
  %410 = vmatprep.subr.bf16.mxu0 0
  %411 = vmatpush1.bf16.msra.mxu0 %v318
  %412 = vmatprep.subr.bf16.mxu0 0
  %413 = vmatpush1.bf16.msra.mxu0 %v319
  %414 = vmatprep.subr.bf16.mxu0 0
  %415 = vmatpush1.bf16.msra.mxu0 %v320
  %416 = vmatprep.mubr.bf16.mxu0 %v144
  %417 = vmatmul.mubr.bf16.gmra.mrb[0].mxu0 %v143
  %v418 = vpop.f32.mrb[0].mxu0
  %v419 = vadd.f32 0.0, %v418
  %v420 = vpop.f32.mrb[0].mxu0
  %v421 = vpop.f32.mrb[0].mxu0
  %v422 = vadd.f32 0.0, %v421
  %v423 = vpop.f32.mrb[0].mxu0
  %424 = vmatprep.mubr.bf16.mxu0 %v149
  %425 = vmatmul.mubr.bf16.gmra.mrb[0].mxu0 %v148
  %v426 = vpop.f32.mrb[0].mxu0
  %v427 = vadd.f32 0.0, %v426
  %v428 = vpop.f32.mrb[0].mxu0
  %v429 = vpop.f32.mrb[0].mxu0
  %v430 = vadd.f32 0.0, %v429
  %v431 = vpop.f32.mrb[0].mxu0
  %432 = vdwg.mxu0
  %433 = vmatprep.subr.bf16.mxu0 0
  %434 = vmatpush1.bf16.msra.mxu0 %v321
  %435 = vmatprep.subr.bf16.mxu0 0
  %436 = vmatpush1.bf16.msra.mxu0 %v322
  %437 = vmatprep.subr.bf16.mxu0 0
  %438 = vmatpush1.bf16.msra.mxu0 %v323
  %439 = vmatprep.subr.bf16.mxu0 0
  %440 = vmatpush1.bf16.msra.mxu0 %v324
  %441 = vmatprep.subr.bf16.mxu0 0
  %442 = vmatpush1.bf16.msra.mxu0 %v325
  %443 = vmatprep.subr.bf16.mxu0 0
  %444 = vmatpush1.bf16.msra.mxu0 %v326
  %445 = vmatprep.subr.bf16.mxu0 0
  %446 = vmatpush1.bf16.msra.mxu0 %v327
  %447 = vmatprep.subr.bf16.mxu0 0
  %448 = vmatpush1.bf16.msra.mxu0 %v328
  %449 = vmatprep.subr.bf16.mxu0 0
  %450 = vmatpush1.bf16.msra.mxu0 %v329
  %451 = vmatprep.subr.bf16.mxu0 0
  %452 = vmatpush1.bf16.msra.mxu0 %v330
  %453 = vmatprep.subr.bf16.mxu0 0
  %454 = vmatpush1.bf16.msra.mxu0 %v331
  %455 = vmatprep.subr.bf16.mxu0 0
  %456 = vmatpush1.bf16.msra.mxu0 %v332
  %457 = vmatprep.subr.bf16.mxu0 0
  %458 = vmatpush1.bf16.msra.mxu0 %v333
  %459 = vmatprep.subr.bf16.mxu0 0
  %460 = vmatpush1.bf16.msra.mxu0 %v334
  %461 = vmatprep.subr.bf16.mxu0 0
  %462 = vmatpush1.bf16.msra.mxu0 %v335
  %463 = vmatprep.subr.bf16.mxu0 0
  %464 = vmatpush1.bf16.msra.mxu0 %v336
  %465 = vmatprep.mubr.bf16.mxu0 %v146
  %466 = vmatmul.mubr.bf16.gmra.mrb[0].mxu0 %v145
  %v467 = vpop.f32.mrb[0].mxu0
  %v468 = vadd.f32 %v419, %v467
  %v469 = vpop.f32.mrb[0].mxu0
  %v470 = vpop.f32.mrb[0].mxu0
  %v471 = vadd.f32 %v422, %v470
  %v472 = vpop.f32.mrb[0].mxu0
  %473 = vmatprep.mubr.bf16.mxu0 %v151
  %474 = vmatmul.mubr.bf16.gmra.mrb[0].mxu0 %v150
  %v475 = vpop.f32.mrb[0].mxu0
  %v476 = vadd.f32 %v427, %v475
  %v477 = vpop.f32.mrb[0].mxu0
  %v478 = vpop.f32.mrb[0].mxu0
  %v479 = vadd.f32 %v430, %v478
  %v480 = vpop.f32.mrb[0].mxu0
  %481 = vdwg.mxu0
  %482 = vmatprep.subr.bf16.mxu0 0
  %483 = vmatpush1.bf16.msra.mxu0 %v337
  %484 = vmatprep.subr.bf16.mxu0 0
  %485 = vmatpush1.bf16.msra.mxu0 %v338
  %486 = vmatprep.subr.bf16.mxu0 0
  %487 = vmatpush1.bf16.msra.mxu0 %v339
  %488 = vmatprep.subr.bf16.mxu0 0
  %489 = vmatpush1.bf16.msra.mxu0 %v340
  %490 = vmatprep.subr.bf16.mxu0 0
  %491 = vmatpush1.bf16.msra.mxu0 0
  %492 = vmatprep.subr.bf16.mxu0 0
  %493 = vmatpush1.bf16.msra.mxu0 0
  %494 = vmatprep.subr.bf16.mxu0 0
  %495 = vmatpush1.bf16.msra.mxu0 0
  %496 = vmatprep.subr.bf16.mxu0 0
  %497 = vmatpush1.bf16.msra.mxu0 0
  %498 = vmatprep.subr.bf16.mxu0 0
  %499 = vmatpush1.bf16.msra.mxu0 0
  %500 = vmatprep.subr.bf16.mxu0 0
  %501 = vmatpush1.bf16.msra.mxu0 0
  %502 = vmatprep.subr.bf16.mxu0 0
  %503 = vmatpush1.bf16.msra.mxu0 0
  %504 = vmatprep.subr.bf16.mxu0 0
  %505 = vmatpush1.bf16.msra.mxu0 0
  %506 = vmatprep.subr.bf16.mxu0 0
  %507 = vmatpush1.bf16.msra.mxu0 0
  %508 = vmatprep.subr.bf16.mxu0 0
  %509 = vmatpush1.bf16.msra.mxu0 0
  %510 = vmatprep.subr.bf16.mxu0 0
  %511 = vmatpush1.bf16.msra.mxu0 0
  %512 = vmatprep.subr.bf16.mxu0 0
  %513 = vmatpush1.bf16.msra.mxu0 0
  %514 = vmatprep.mubr.bf16.mxu0 0
  %515 = vmatmul.mubr.bf16.gmra.mrb[0].mxu0 %v379
  %v516 = vpop.f32.mrb[0].mxu0
  %v517 = vadd.f32 %v468, %v516
  %v518 = vpop.f32.mrb[0].mxu0
  %v519 = vpop.f32.mrb[0].mxu0
  %v520 = vadd.f32 %v471, %v519
  %v521 = vpop.f32.mrb[0].mxu0
  %522 = vmatprep.mubr.bf16.mxu0 0
  %523 = vmatmul.mubr.bf16.gmra.mrb[0].mxu0 %v382
  %v524 = vpop.f32.mrb[0].mxu0
  %v525 = vadd.f32 %v476, %v524
  %v526 = vpop.f32.mrb[0].mxu0
  %v527 = vpop.f32.mrb[0].mxu0
  %v528 = vadd.f32 %v479, %v527
  %v529 = vpop.f32.mrb[0].mxu0
  %530 = vdwg.mxu0
  %v531 = vld [vmem:[%s2] sm:$0x1]
  %v533 = vlaneseq
  %v534 = vshrl.u32 %v533, 7
  %v535 = vsub.s32 0, %v534
  %v536 = vrot.slane %v531, %v535
  %v538 = vmul.f32 %v517, %v536
  %v539 = vmul.f32 %v520, %v536
  %v540 = vmul.f32 %v525, %v536
  %v541 = vmul.f32 %v528, %v536
  %v542 = vld [vmem:[%s3] sm:$0x1]
  %v544 = vlaneseq
  %v545 = vshrl.u32 %v544, 7
  %v546 = vsub.s32 0, %v545
  %v547 = vrot.slane %v542, %v546
  %v549 = vadd.f32 %v538, %v547
  %v550 = vadd.f32 %v539, %v547
  %v551 = vadd.f32 %v540, %v547
  %v552 = vadd.f32 %v541, %v547
  %v553 = vld [vmem:[%s4] sm:$0xf]
  %v554 = vld [vmem:[%s4 + $0x4] sm:$0xf]
  %v555 = vld [vmem:[%s4 + $0x8] sm:$0xf]
  %v556 = vld [vmem:[%s4 + $0xc] sm:$0xf]
  %v557 = vunpack.c.l.bf16 %v553
  %v558 = vunpack.c.l.bf16 %v554
  %v559 = vunpack.c.l.bf16 %v555
  %v560 = vunpack.c.l.bf16 %v556
  %v561 = vld [vmem:[%s5] sm:$0x1]
  %v563 = vlaneseq
  %v564 = vshrl.u32 %v563, 7
  %v565 = vsub.s32 0, %v564
  %v566 = vrot.slane %v561, %v565
  %v568 = vmul.f32 %v557, %v566
  %v569 = vmul.f32 %v558, %v566
  %v570 = vmul.f32 %v559, %v566
  %v571 = vmul.f32 %v560, %v566
  %v572 = vadd.f32 %v549, %v568
  %v573 = vadd.f32 %v550, %v569
  %v574 = vadd.f32 %v551, %v570
  %v575 = vadd.f32 %v552, %v571
  %v576 = vld [vmem:[%s6] sm:$0x1]
  %v578 = vlaneseq
  %v579 = vshrl.u32 %v578, 7
  %v580 = vsub.s32 0, %v579
  %v581 = vrot.slane %v576, %v580
  %v583 = vadd.f32 %v572, %v581
  %v584 = vadd.f32 %v573, %v581
  %v585 = vadd.f32 %v574, %v581
  %v586 = vadd.f32 %v575, %v581
  %v587 = vmax.f32 %v583, 0.0
  %v588 = vmax.f32 %v584, 0.0
  %v589 = vmax.f32 %v585, 0.0
  %v590 = vmax.f32 %v586, 0.0
  %v591 = vpack.c.bf16 %v588, %v587
  %v592 = vpack.c.bf16 %v590, %v589
  %v595 = vunpack.c.l.b16 %v591
  %v596 = vunpack.c.h.b16 %v591
  %v597 = vunpack.c.l.b16 %v592
  %v598 = vunpack.c.h.b16 %v592
  %v599 = vpack.c.b16 %v595, %v595
  %v600 = vpack.c.b16 %v596, %v596
  %v601 = vpack.c.b16 %v597, %v597
  %v602 = vpack.c.b16 %v598, %v598
  %607 = vst [vmem:[%s7] sm:$0xf] %v599
  %608 = vst [vmem:[%s7 + $0x4] sm:$0xf] %v600
  %609 = vst [vmem:[%s7 + $0x8] sm:$0xf] %v601
  %610 = vst [vmem:[%s7 + $0xc] sm:$0xf] %v602
  // Predicated region
  $region30: #{resnet_forward.14} parent=0 // pred_check
    _
  $region31: #{resnet_forward.14} parent=0 // pred_check_branch
    %612 = sbr.rel (0) target = $region33
  $region32: #{resnet_forward.14} parent=0 // pred_region
    _
  $region33: #{resnet_forward.14} parent=0 // pred_fallthru
    _
  // Predicated region
  $region34: #{resnet_forward.14} parent=0 // pred_check
    _
  $region35: #{resnet_forward.14} parent=0 // pred_check_branch
    %614 = sbr.rel (0) target = $region37
  $region36: #{resnet_forward.14} parent=0 // pred_region
    _
  $region37: #{resnet_forward.14} parent=0 // pred_fallthru
    _

</llo_original>
